<compile_context>
chip_gen: v6e
topology: v6e:2x2x1
jax: 0.10.0
libtpu: 0.0.40
codegen_flags: <defaults>
</compile_context>

<pallas_src>
import jax
import jax.numpy as jnp
from jax.experimental import pallas as pl
from jax.experimental.pallas import tpu as pltpu

HIDDEN = 128   # hidden_size
OUTPUT = 256   # output_size (vocab)
LAYERS = 5     # num_layers
BATCH = 8      # batch size


def decoder_kernel(tok_ref, h0_ref, emb_ref, wrz_ref, win_ref, whn_ref,
                   brz_ref, bin_ref, bhn_ref, wout_ref, bout_ref,
                   logits_ref, hout_ref, h_scr):
    """One token step; grid axis 0 walks the T tokens sequentially.

    tok_ref   : (1, B, 1)    int32  this step's token ids
    h0_ref    : (L, B, H)    f32    initial hidden (read only at t == 0)
    emb_ref   : (V, H)       bf16   embedding table (VMEM resident)
    wrz_ref   : (L, 2H, 2H)  bf16   fused [W_ih_rz ; W_hh_rz] (transposed)
    win_ref   : (L, H, H)    bf16   W_ih_n^T
    whn_ref   : (L, H, H)    bf16   W_hh_n^T
    brz_ref   : (L, 1, 2H)   f32    b_ih_rz + b_hh_rz
    bin_ref   : (L, 1, H)    f32    b_ih_n
    bhn_ref   : (L, 1, H)    f32    b_hh_n
    wout_ref  : (H, V)       bf16   Linear weight^T
    bout_ref  : (1, V)       f32    Linear bias
    logits_ref: (1, B, V)    f32    this step's logits tile
    hout_ref  : (L, B, H)    f32    final hidden (written at t == T-1)
    h_scr     : (L, B, H)    f32    VMEM carry of the hidden state
    """
    H = HIDDEN
    bf = jnp.bfloat16
    t = pl.program_id(0)

    @pl.when(t == 0)
    def _():
        h_scr[...] = h0_ref[...]

    # Embedding gather as a one-hot matmul on the (otherwise idle) MXU.
    # Exact: picks one bf16 row (all other products are 0 in the f32 sum).
    tok = tok_ref[0]                                               # (B, 1) int32
    cols = jax.lax.broadcasted_iota(jnp.int32, (BATCH, OUTPUT), 1)  # (B, V)
    onehot = (cols == tok).astype(bf)                              # (B, V)
    x = jnp.dot(onehot, emb_ref[...],
                preferred_element_type=jnp.float32).astype(bf)     # (B, H) bf16

    for l in range(LAYERS):                                        # static unroll
        h = h_scr[l]                                               # (B, H) f32
        hb = h.astype(bf)

        # Fused r,z gates: [x | h] (B,2H) @ W_rz (2H,2H) == gi_rz + gh_rz.
        xh = jnp.concatenate([x, hb], axis=1)                      # (B, 2H) bf16
        g_rz = jnp.dot(xh, wrz_ref[l],
                       preferred_element_type=jnp.float32) + brz_ref[l]
        r = jax.nn.sigmoid(g_rz[:, :H])
        z = jax.nn.sigmoid(g_rz[:, H:])

        # n-gate terms must stay separate: n = tanh(gi_n + r * gh_n).
        gi_n = jnp.dot(x, win_ref[l],
                       preferred_element_type=jnp.float32) + bin_ref[l]
        gh_n = jnp.dot(hb, whn_ref[l],
                       preferred_element_type=jnp.float32) + bhn_ref[l]
        n = jnp.tanh(gi_n + r * gh_n)

        h_new = (1.0 - z) * n + z * h                              # f32
        h_scr[l] = h_new
        x = h_new.astype(bf)                                       # next layer

    # Lane-dense (B, 256) per-token logits write; no (T,B,V) VMEM staging.
    logits_ref[0] = (jnp.dot(x, wout_ref[...],
                             preferred_element_type=jnp.float32)
                     + bout_ref[...])

    @pl.when(t == pl.num_programs(0) - 1)
    def _():
        hout_ref[...] = h_scr[...]


def decoder_forward(tokens, hidden, kp):
    """tokens: (B, T) int32; hidden: (L, B, H) f32.
    Returns (logits (B, T, V) f32, new_hidden (L, B, H) f32).
    T == 1 is exactly the PyTorch module forward (before the squeeze)."""
    B, T = tokens.shape
    assert B == BATCH
    tok_k = jnp.transpose(tokens, (1, 0)).astype(jnp.int32)[:, :, None]  # (T,B,1)

    c2 = lambda t: (0, 0)
    c3 = lambda t: (0, 0, 0)
    logits_tbv, h_out = pl.pallas_call(
        decoder_kernel,
        grid=(T,),
        in_specs=[
            pl.BlockSpec((1, BATCH, 1), lambda t: (t, 0, 0)),            # tokens
            pl.BlockSpec((LAYERS, BATCH, HIDDEN), c3),                   # h0
            pl.BlockSpec((OUTPUT, HIDDEN), c2),                          # embedding
            pl.BlockSpec((LAYERS, 2 * HIDDEN, 2 * HIDDEN), c3),          # w_rz
            pl.BlockSpec((LAYERS, HIDDEN, HIDDEN), c3),                  # w_in
            pl.BlockSpec((LAYERS, HIDDEN, HIDDEN), c3),                  # w_hn
            pl.BlockSpec((LAYERS, 1, 2 * HIDDEN), c3),                   # b_rz
            pl.BlockSpec((LAYERS, 1, HIDDEN), c3),                       # b_in
            pl.BlockSpec((LAYERS, 1, HIDDEN), c3),                       # b_hn
            pl.BlockSpec((HIDDEN, OUTPUT), c2),                          # w_out
            pl.BlockSpec((1, OUTPUT), c2),                               # b_out
        ],
        out_specs=(
            pl.BlockSpec((1, BATCH, OUTPUT), lambda t: (t, 0, 0)),       # logits
            pl.BlockSpec((LAYERS, BATCH, HIDDEN), c3),                   # hidden
        ),
        out_shape=(
            jax.ShapeDtypeStruct((T, BATCH, OUTPUT), jnp.float32),
            jax.ShapeDtypeStruct((LAYERS, BATCH, HIDDEN), jnp.float32),
        ),
        scratch_shapes=[pltpu.VMEM((LAYERS, BATCH, HIDDEN), jnp.float32)],
        input_output_aliases={1: 1},                  # hidden in -> hidden out
        compiler_params=pltpu.CompilerParams(
            dimension_semantics=("arbitrary",)),      # sequential carry over T
    )(tok_k, hidden, kp["embedding"], kp["w_rz"], kp["w_in"], kp["w_hn"],
      kp["b_rz"], kp["b_in"], kp["b_hn"], kp["w_out"], kp["b_out"])

    return jnp.transpose(logits_tbv, (1, 0, 2)), h_out


def decoder_step(tokens, hidden, kp):
    """Exact DecoderRNN.forward: tokens (B, 1) -> (logits (B, V), hidden)."""
    logits, h_out = decoder_forward(tokens, hidden, kp)
    return logits[:, 0, :], h_out


def init_torch_params(key):
    """PyTorch-shaped f32 parameters (nn.Embedding / nn.GRU / nn.Linear)."""
    ks = jax.random.split(key, 7)
    s = 1.0 / jnp.sqrt(jnp.float32(HIDDEN))
    u = lambda k, shape: jax.random.uniform(k, shape, jnp.float32, -s, s)
    return {
        "embedding": jax.random.normal(ks[0], (OUTPUT, HIDDEN), jnp.float32),
        "w_ih": u(ks[1], (LAYERS, 3 * HIDDEN, HIDDEN)),   # PyTorch layout (3H, H)
        "w_hh": u(ks[2], (LAYERS, 3 * HIDDEN, HIDDEN)),
        "b_ih": u(ks[3], (LAYERS, 3 * HIDDEN)),
        "b_hh": u(ks[4], (LAYERS, 3 * HIDDEN)),
        "w_out": u(ks[5], (OUTPUT, HIDDEN)),              # PyTorch Linear (V, H)
        "b_out": u(ks[6], (OUTPUT,)),
    }


def pack_params(tp):
    """PyTorch layout -> kernel layout: transpose, fuse r/z, bf16 weights."""
    H = HIDDEN
    bf = jnp.bfloat16
    wihT = jnp.transpose(tp["w_ih"], (0, 2, 1))           # (L, H, 3H)
    whhT = jnp.transpose(tp["w_hh"], (0, 2, 1))           # (L, H, 3H)
    return {
        "embedding": tp["embedding"].astype(bf),                           # (V, H)
        "w_rz": jnp.concatenate([wihT[:, :, :2 * H],
                                 whhT[:, :, :2 * H]], axis=1).astype(bf),  # (L,2H,2H)
        "w_in": wihT[:, :, 2 * H:].astype(bf),                             # (L, H, H)
        "w_hn": whhT[:, :, 2 * H:].astype(bf),                             # (L, H, H)
        "b_rz": (tp["b_ih"][:, :2 * H] + tp["b_hh"][:, :2 * H])[:, None, :],
        "b_in": tp["b_ih"][:, 2 * H:][:, None, :],
        "b_hn": tp["b_hh"][:, 2 * H:][:, None, :],
        "w_out": jnp.transpose(tp["w_out"]).astype(bf),                    # (H, V)
        "b_out": tp["b_out"][None, :],                                     # (1, V)
    }


def reference_forward(tokens, hidden, tp):
    """Pure-JAX reference matching PyTorch GRU semantics (gate order r, z, n),
    mirroring the kernel's bf16 weight storage with f32 accumulation.
    NOTE: this validates self-consistency of the bf16-weight scheme, not
    bit-fidelity to a full-f32 PyTorch GRU (stated design choice)."""
    H = HIDDEN
    bf = jnp.bfloat16
    B, T = tokens.shape
    emb = tp["embedding"].astype(bf)
    h = hidden
    logits_all = []
    for t in range(T):
        x = jnp.take(emb, tokens[:, t], axis=0)           # (B, H) bf16
        new_h = []
        for l in range(LAYERS):
            hl = h[l]
            hb = hl.astype(bf)
            wih = tp["w_ih"][l].astype(bf)
            whh = tp["w_hh"][l].astype(bf)
            gi = jnp.dot(x, wih.T, preferred_element_type=jnp.float32) + tp["b_ih"][l]
            gh = jnp.dot(hb, whh.T, preferred_element_type=jnp.float32) + tp["b_hh"][l]
            r = jax.nn.sigmoid(gi[:, :H] + gh[:, :H])
            z = jax.nn.sigmoid(gi[:, H:2 * H] + gh[:, H:2 * H])
            n = jnp.tanh(gi[:, 2 * H:] + r * gh[:, 2 * H:])
            h_new = (1.0 - z) * n + z * hl
            new_h.append(h_new)
            x = h_new.astype(bf)
        h = jnp.stack(new_h)
        logits = (jnp.dot(x, tp["w_out"].astype(bf).T,
                          preferred_element_type=jnp.float32) + tp["b_out"])
        logits_all.append(logits)
    return jnp.stack(logits_all, axis=1), h               # (B, T, V), (L, B, H)


if __name__ == "__main__":
    key = jax.random.PRNGKey(0)
    k1, k2, k3, k4 = jax.random.split(key, 4)

    tokens_step = jax.random.randint(k1, (BATCH, 1), 0, OUTPUT, dtype=jnp.int32)
    tokens_seq = jax.random.randint(k2, (BATCH, 6), 0, OUTPUT, dtype=jnp.int32)
    hidden = jax.random.normal(k3, (LAYERS, BATCH, HIDDEN), jnp.float32)
    torch_params = init_torch_params(k4)
    kernel_params = pack_params(torch_params)

    step_fn = jax.jit(decoder_step)
    fwd_fn = jax.jit(decoder_forward)

    # --- Single token step: exactly the module forward (seq_len = 1). ---
    logits1, h1 = step_fn(tokens_step, hidden, kernel_params)
    jax.block_until_ready((logits1, h1))
    ref_l, ref_h = reference_forward(tokens_step, hidden, torch_params)
    assert logits1.shape == (BATCH, OUTPUT)
    assert h1.shape == (LAYERS, BATCH, HIDDEN)
    assert jnp.allclose(logits1, ref_l[:, 0, :], rtol=2e-3, atol=2e-3), (
        float(jnp.max(jnp.abs(logits1 - ref_l[:, 0, :]))))
    assert jnp.allclose(h1, ref_h, rtol=2e-3, atol=2e-3), (
        float(jnp.max(jnp.abs(h1 - ref_h))))

    # --- Multi-token (teacher-forced) decode: exercises the in-kernel T loop,
    #     weight residency, hidden carry, and per-step logits writeback. ---
    logits6, h6 = fwd_fn(tokens_seq, hidden, kernel_params)
    jax.block_until_ready((logits6, h6))
    ref_l6, ref_h6 = reference_forward(tokens_seq, hidden, torch_params)
    assert logits6.shape == (BATCH, 6, OUTPUT)
    assert h6.shape == (LAYERS, BATCH, HIDDEN)
    assert jnp.allclose(logits6, ref_l6, rtol=3e-3, atol=3e-3), (
        float(jnp.max(jnp.abs(logits6 - ref_l6))))
    assert jnp.allclose(h6, ref_h6, rtol=3e-3, atol=3e-3), (
        float(jnp.max(jnp.abs(h6 - ref_h6))))

    print("KERNEL_OK")
</pallas_src>

<mosaic_0001>
module attributes {stable_mosaic.version = 11 : i64} {
  func.func @decoder_kernel(%arg0: i32, %arg1: memref<1x8x1xi32, #tpu.memory_space<vmem>>, %arg2: memref<5x8x128xf32, #tpu.memory_space<vmem>>, %arg3: memref<256x128xbf16, #tpu.memory_space<vmem>>, %arg4: memref<5x256x256xbf16, #tpu.memory_space<vmem>>, %arg5: memref<5x128x128xbf16, #tpu.memory_space<vmem>>, %arg6: memref<5x128x128xbf16, #tpu.memory_space<vmem>>, %arg7: memref<5x1x256xf32, #tpu.memory_space<vmem>>, %arg8: memref<5x1x128xf32, #tpu.memory_space<vmem>>, %arg9: memref<5x1x128xf32, #tpu.memory_space<vmem>>, %arg10: memref<128x256xbf16, #tpu.memory_space<vmem>>, %arg11: memref<1x256xf32, #tpu.memory_space<vmem>>, %arg12: memref<1x8x256xf32, #tpu.memory_space<vmem>>, %arg13: memref<5x8x128xf32, #tpu.memory_space<vmem>>, %arg14: memref<5x8x128xf32, #tpu.memory_space<vmem>>) attributes {dimension_semantics = [#tpu.dimension_semantics<arbitrary>], iteration_bounds = array<i64: 1>, scalar_prefetch = 0 : i64, scratch_operands = 1 : i64, tpu.core_type = #tpu.core_type<tc>, window_params = [{transform_indices = @transform_0, window_bounds = array<i64: 1, 8, 1>}, {pipeline_mode = #tpu.pipeline_mode<synchronous>, transform_indices = @transform_1, window_bounds = array<i64: 5, 8, 128>}, {pipeline_mode = #tpu.pipeline_mode<synchronous>, transform_indices = @transform_2, window_bounds = array<i64: 256, 128>}, {pipeline_mode = #tpu.pipeline_mode<synchronous>, transform_indices = @transform_3, window_bounds = array<i64: 5, 256, 256>}, {pipeline_mode = #tpu.pipeline_mode<synchronous>, transform_indices = @transform_4, window_bounds = array<i64: 5, 128, 128>}, {pipeline_mode = #tpu.pipeline_mode<synchronous>, transform_indices = @transform_5, window_bounds = array<i64: 5, 128, 128>}, {pipeline_mode = #tpu.pipeline_mode<synchronous>, transform_indices = @transform_6, window_bounds = array<i64: 5, 1, 256>}, {pipeline_mode = #tpu.pipeline_mode<synchronous>, transform_indices = @transform_7, window_bounds = array<i64: 5, 1, 128>}, {pipeline_mode = #tpu.pipeline_mode<synchronous>, transform_indices = @transform_8, window_bounds = array<i64: 5, 1, 128>}, {pipeline_mode = #tpu.pipeline_mode<synchronous>, transform_indices = @transform_9, window_bounds = array<i64: 128, 256>}, {pipeline_mode = #tpu.pipeline_mode<synchronous>, transform_indices = @transform_10, window_bounds = array<i64: 1, 256>}, {transform_indices = @transform_11, window_bounds = array<i64: 1, 8, 256>}, {pipeline_mode = #tpu.pipeline_mode<synchronous>, transform_indices = @transform_12, window_bounds = array<i64: 5, 8, 128>}]} {
    %c0_i32 = arith.constant 0 : i32
    %0 = arith.cmpi eq, %arg0, %c0_i32 : i32
    %1 = arith.extui %0 : i1 to i32
    %c0_i32_0 = arith.constant 0 : i32
    %2 = arith.cmpi ne, %1, %c0_i32_0 : i32
    scf.if %2 {
      %c0_161 = arith.constant 0 : index
      %c0_162 = arith.constant 0 : index
      %c0_163 = arith.constant 0 : index
      %270 = vector.load %arg2[%c0_161, %c0_162, %c0_163] : memref<5x8x128xf32, #tpu.memory_space<vmem>>, vector<5x8x128xf32>
      %c0_164 = arith.constant 0 : index
      %c0_165 = arith.constant 0 : index
      %c0_166 = arith.constant 0 : index
      %271 = vector.load %arg14[%c0_164, %c0_165, %c0_166] : memref<5x8x128xf32, #tpu.memory_space<vmem>>, vector<5x8x128xf32>
      tpu.vector_store %arg14[%c0_164, %c0_165, %c0_166], %270 {strides = array<i32>} : memref<5x8x128xf32, #tpu.memory_space<vmem>>, vector<5x8x128xf32>,
    } else {
    }
    %c0 = arith.constant 0 : index
    %c0_1 = arith.constant 0 : index
    %c0_2 = arith.constant 0 : index
    %3 = vector.load %arg1[%c0, %c0_1, %c0_2] : memref<1x8x1xi32, #tpu.memory_space<vmem>>, vector<1x8x1xi32>
    %4 = vector.shape_cast %3 : vector<1x8x1xi32> to vector<8x1xi32>
    %5 = tpu.iota {dimensions = array<i32: 1>} : vector<8x256xi32>
    %6 = vector.broadcast %4 : vector<8x1xi32> to vector<8x256xi32>
    %7 = arith.cmpi eq, %5, %6 : vector<8x256xi32>
    %8 = arith.extui %7 : vector<8x256xi1> to vector<8x256xi32>
    %9 = arith.sitofp %8 : vector<8x256xi32> to vector<8x256xf32>
    %10 = arith.truncf %9 : vector<8x256xf32> to vector<8x256xbf16>
    %c0_3 = arith.constant 0 : index
    %c0_4 = arith.constant 0 : index
    %11 = vector.load %arg3[%c0_3, %c0_4] : memref<256x128xbf16, #tpu.memory_space<vmem>>, vector<256x128xbf16>
    %cst = arith.constant dense<0.000000e+00> : vector<8x128xf32>
    %12 = tpu.matmul %10, %11, %cst {dimension_numbers = #tpu.dot_dimension_numbers<[1], [0], [0], [1], [0, 0, 1, 1], [], []>} : vector<8x256xbf16>, vector<256x128xbf16>, vector<8x128xf32> -> vector<8x128xf32>
    %13 = arith.truncf %12 : vector<8x128xf32> to vector<8x128xbf16>
    %c0_5 = arith.constant 0 : index
    %c0_6 = arith.constant 0 : index
    %c0_7 = arith.constant 0 : index
    %14 = vector.load %arg14[%c0_5, %c0_6, %c0_7] : memref<5x8x128xf32, #tpu.memory_space<vmem>>, vector<1x8x128xf32>
    %15 = vector.shape_cast %14 : vector<1x8x128xf32> to vector<8x128xf32>
    %16 = arith.truncf %15 : vector<8x128xf32> to vector<8x128xbf16>
    %17 = tpu.concatenate %13, %16 in 1 : vector<8x128xbf16>, vector<8x128xbf16> -> vector<8x256xbf16>
    %c0_8 = arith.constant 0 : index
    %c0_9 = arith.constant 0 : index
    %c0_10 = arith.constant 0 : index
    %18 = vector.load %arg4[%c0_8, %c0_9, %c0_10] : memref<5x256x256xbf16, #tpu.memory_space<vmem>>, vector<1x256x256xbf16>
    %19 = vector.shape_cast %18 : vector<1x256x256xbf16> to vector<256x256xbf16>
    %cst_11 = arith.constant dense<0.000000e+00> : vector<8x256xf32>
    %20 = tpu.matmul %17, %19, %cst_11 {dimension_numbers = #tpu.dot_dimension_numbers<[1], [0], [0], [1], [0, 0, 1, 1], [], []>} : vector<8x256xbf16>, vector<256x256xbf16>, vector<8x256xf32> -> vector<8x256xf32>
    %c0_12 = arith.constant 0 : index
    %c0_13 = arith.constant 0 : index
    %c0_14 = arith.constant 0 : index
    %21 = vector.load %arg7[%c0_12, %c0_13, %c0_14] : memref<5x1x256xf32, #tpu.memory_space<vmem>>, vector<1x1x256xf32>
    %22 = vector.shape_cast %21 : vector<1x1x256xf32> to vector<1x256xf32>
    %23 = vector.broadcast %22 : vector<1x256xf32> to vector<8x256xf32>
    %24 = arith.addf %20, %23 : vector<8x256xf32>
    %25 = vector.extract_strided_slice %24 {offsets = [0, 0], sizes = [8, 128], strides = [1, 1]} : vector<8x256xf32> to vector<8x128xf32>
    %26 = arith.negf %25 : vector<8x128xf32>
    %27 = math.exp %26 : vector<8x128xf32>
    %cst_15 = arith.constant 1.000000e+00 : f32
    %28 = vector.broadcast %cst_15 : f32 to vector<8x128xf32>
    %29 = arith.addf %28, %27 : vector<8x128xf32>
    %30 = arith.divf %28, %29 : vector<8x128xf32>
    %31 = vector.extract_strided_slice %24 {offsets = [0, 128], sizes = [8, 128], strides = [1, 1]} : vector<8x256xf32> to vector<8x128xf32>
    %32 = arith.negf %31 : vector<8x128xf32>
    %33 = math.exp %32 : vector<8x128xf32>
    %cst_16 = arith.constant 1.000000e+00 : f32
    %34 = vector.broadcast %cst_16 : f32 to vector<8x128xf32>
    %35 = arith.addf %34, %33 : vector<8x128xf32>
    %36 = arith.divf %34, %35 : vector<8x128xf32>
    %c0_17 = arith.constant 0 : index
    %c0_18 = arith.constant 0 : index
    %c0_19 = arith.constant 0 : index
    %37 = vector.load %arg5[%c0_17, %c0_18, %c0_19] : memref<5x128x128xbf16, #tpu.memory_space<vmem>>, vector<1x128x128xbf16>
    %38 = vector.shape_cast %37 : vector<1x128x128xbf16> to vector<128x128xbf16>
    %cst_20 = arith.constant dense<0.000000e+00> : vector<8x128xf32>
    %39 = tpu.matmul %13, %38, %cst_20 {dimension_numbers = #tpu.dot_dimension_numbers<[1], [0], [0], [1], [0, 0, 1, 1], [], []>} : vector<8x128xbf16>, vector<128x128xbf16>, vector<8x128xf32> -> vector<8x128xf32>
    %c0_21 = arith.constant 0 : index
    %c0_22 = arith.constant 0 : index
    %c0_23 = arith.constant 0 : index
    %40 = vector.load %arg8[%c0_21, %c0_22, %c0_23] : memref<5x1x128xf32, #tpu.memory_space<vmem>>, vector<1x1x128xf32>
    %41 = vector.shape_cast %40 : vector<1x1x128xf32> to vector<1x128xf32>
    %42 = vector.broadcast %41 : vector<1x128xf32> to vector<8x128xf32>
    %43 = arith.addf %39, %42 : vector<8x128xf32>
    %c0_24 = arith.constant 0 : index
    %c0_25 = arith.constant 0 : index
    %c0_26 = arith.constant 0 : index
    %44 = vector.load %arg6[%c0_24, %c0_25, %c0_26] : memref<5x128x128xbf16, #tpu.memory_space<vmem>>, vector<1x128x128xbf16>
    %45 = vector.shape_cast %44 : vector<1x128x128xbf16> to vector<128x128xbf16>
    %cst_27 = arith.constant dense<0.000000e+00> : vector<8x128xf32>
    %46 = tpu.matmul %16, %45, %cst_27 {dimension_numbers = #tpu.dot_dimension_numbers<[1], [0], [0], [1], [0, 0, 1, 1], [], []>} : vector<8x128xbf16>, vector<128x128xbf16>, vector<8x128xf32> -> vector<8x128xf32>
    %c0_28 = arith.constant 0 : index
    %c0_29 = arith.constant 0 : index
    %c0_30 = arith.constant 0 : index
    %47 = vector.load %arg9[%c0_28, %c0_29, %c0_30] : memref<5x1x128xf32, #tpu.memory_space<vmem>>, vector<1x1x128xf32>
    %48 = vector.shape_cast %47 : vector<1x1x128xf32> to vector<1x128xf32>
    %49 = vector.broadcast %48 : vector<1x128xf32> to vector<8x128xf32>
    %50 = arith.addf %46, %49 : vector<8x128xf32>
    %51 = arith.mulf %30, %50 : vector<8x128xf32>
    %52 = arith.addf %43, %51 : vector<8x128xf32>
    %53 = math.tanh %52 : vector<8x128xf32>
    %cst_31 = arith.constant 1.000000e+00 : f32
    %54 = vector.broadcast %cst_31 : f32 to vector<8x128xf32>
    %55 = arith.subf %54, %36 : vector<8x128xf32>
    %56 = arith.mulf %55, %53 : vector<8x128xf32>
    %57 = arith.mulf %36, %15 : vector<8x128xf32>
    %58 = arith.addf %56, %57 : vector<8x128xf32>
    %c0_32 = arith.constant 0 : index
    %c0_33 = arith.constant 0 : index
    %c0_34 = arith.constant 0 : index
    %59 = vector.load %arg14[%c0_32, %c0_33, %c0_34] : memref<5x8x128xf32, #tpu.memory_space<vmem>>, vector<1x8x128xf32>
    %60 = vector.shape_cast %59 : vector<1x8x128xf32> to vector<8x128xf32>
    %61 = vector.shape_cast %58 : vector<8x128xf32> to vector<1x8x128xf32>
    tpu.vector_store %arg14[%c0_32, %c0_33, %c0_34], %61 {strides = array<i32>} : memref<5x8x128xf32, #tpu.memory_space<vmem>>, vector<1x8x128xf32>,
    %62 = arith.truncf %58 : vector<8x128xf32> to vector<8x128xbf16>
    %c1 = arith.constant 1 : index
    %c0_35 = arith.constant 0 : index
    %c0_36 = arith.constant 0 : index
    %63 = vector.load %arg14[%c1, %c0_35, %c0_36] : memref<5x8x128xf32, #tpu.memory_space<vmem>>, vector<1x8x128xf32>
    %64 = vector.shape_cast %63 : vector<1x8x128xf32> to vector<8x128xf32>
    %65 = arith.truncf %64 : vector<8x128xf32> to vector<8x128xbf16>
    %66 = tpu.concatenate %62, %65 in 1 : vector<8x128xbf16>, vector<8x128xbf16> -> vector<8x256xbf16>
    %c1_37 = arith.constant 1 : index
    %c0_38 = arith.constant 0 : index
    %c0_39 = arith.constant 0 : index
    %67 = vector.load %arg4[%c1_37, %c0_38, %c0_39] : memref<5x256x256xbf16, #tpu.memory_space<vmem>>, vector<1x256x256xbf16>
    %68 = vector.shape_cast %67 : vector<1x256x256xbf16> to vector<256x256xbf16>
    %cst_40 = arith.constant dense<0.000000e+00> : vector<8x256xf32>
    %69 = tpu.matmul %66, %68, %cst_40 {dimension_numbers = #tpu.dot_dimension_numbers<[1], [0], [0], [1], [0, 0, 1, 1], [], []>} : vector<8x256xbf16>, vector<256x256xbf16>, vector<8x256xf32> -> vector<8x256xf32>
    %c1_41 = arith.constant 1 : index
    %c0_42 = arith.constant 0 : index
    %c0_43 = arith.constant 0 : index
    %70 = vector.load %arg7[%c1_41, %c0_42, %c0_43] : memref<5x1x256xf32, #tpu.memory_space<vmem>>, vector<1x1x256xf32>
    %71 = vector.shape_cast %70 : vector<1x1x256xf32> to vector<1x256xf32>
    %72 = vector.broadcast %71 : vector<1x256xf32> to vector<8x256xf32>
    %73 = arith.addf %69, %72 : vector<8x256xf32>
    %74 = vector.extract_strided_slice %73 {offsets = [0, 0], sizes = [8, 128], strides = [1, 1]} : vector<8x256xf32> to vector<8x128xf32>
    %75 = arith.negf %74 : vector<8x128xf32>
    %76 = math.exp %75 : vector<8x128xf32>
    %cst_44 = arith.constant 1.000000e+00 : f32
    %77 = vector.broadcast %cst_44 : f32 to vector<8x128xf32>
    %78 = arith.addf %77, %76 : vector<8x128xf32>
    %79 = arith.divf %77, %78 : vector<8x128xf32>
    %80 = vector.extract_strided_slice %73 {offsets = [0, 128], sizes = [8, 128], strides = [1, 1]} : vector<8x256xf32> to vector<8x128xf32>
    %81 = arith.negf %80 : vector<8x128xf32>
    %82 = math.exp %81 : vector<8x128xf32>
    %cst_45 = arith.constant 1.000000e+00 : f32
    %83 = vector.broadcast %cst_45 : f32 to vector<8x128xf32>
    %84 = arith.addf %83, %82 : vector<8x128xf32>
    %85 = arith.divf %83, %84 : vector<8x128xf32>
    %c1_46 = arith.constant 1 : index
    %c0_47 = arith.constant 0 : index
    %c0_48 = arith.constant 0 : index
    %86 = vector.load %arg5[%c1_46, %c0_47, %c0_48] : memref<5x128x128xbf16, #tpu.memory_space<vmem>>, vector<1x128x128xbf16>
    %87 = vector.shape_cast %86 : vector<1x128x128xbf16> to vector<128x128xbf16>
    %cst_49 = arith.constant dense<0.000000e+00> : vector<8x128xf32>
    %88 = tpu.matmul %62, %87, %cst_49 {dimension_numbers = #tpu.dot_dimension_numbers<[1], [0], [0], [1], [0, 0, 1, 1], [], []>} : vector<8x128xbf16>, vector<128x128xbf16>, vector<8x128xf32> -> vector<8x128xf32>
    %c1_50 = arith.constant 1 : index
    %c0_51 = arith.constant 0 : index
    %c0_52 = arith.constant 0 : index
    %89 = vector.load %arg8[%c1_50, %c0_51, %c0_52] : memref<5x1x128xf32, #tpu.memory_space<vmem>>, vector<1x1x128xf32>
    %90 = vector.shape_cast %89 : vector<1x1x128xf32> to vector<1x128xf32>
    %91 = vector.broadcast %90 : vector<1x128xf32> to vector<8x128xf32>
    %92 = arith.addf %88, %91 : vector<8x128xf32>
    %c1_53 = arith.constant 1 : index
    %c0_54 = arith.constant 0 : index
    %c0_55 = arith.constant 0 : index
    %93 = vector.load %arg6[%c1_53, %c0_54, %c0_55] : memref<5x128x128xbf16, #tpu.memory_space<vmem>>, vector<1x128x128xbf16>
    %94 = vector.shape_cast %93 : vector<1x128x128xbf16> to vector<128x128xbf16>
    %cst_56 = arith.constant dense<0.000000e+00> : vector<8x128xf32>
    %95 = tpu.matmul %65, %94, %cst_56 {dimension_numbers = #tpu.dot_dimension_numbers<[1], [0], [0], [1], [0, 0, 1, 1], [], []>} : vector<8x128xbf16>, vector<128x128xbf16>, vector<8x128xf32> -> vector<8x128xf32>
    %c1_57 = arith.constant 1 : index
    %c0_58 = arith.constant 0 : index
    %c0_59 = arith.constant 0 : index
    %96 = vector.load %arg9[%c1_57, %c0_58, %c0_59] : memref<5x1x128xf32, #tpu.memory_space<vmem>>, vector<1x1x128xf32>
    %97 = vector.shape_cast %96 : vector<1x1x128xf32> to vector<1x128xf32>
    %98 = vector.broadcast %97 : vector<1x128xf32> to vector<8x128xf32>
    %99 = arith.addf %95, %98 : vector<8x128xf32>
    %100 = arith.mulf %79, %99 : vector<8x128xf32>
    %101 = arith.addf %92, %100 : vector<8x128xf32>
    %102 = math.tanh %101 : vector<8x128xf32>
    %cst_60 = arith.constant 1.000000e+00 : f32
    %103 = vector.broadcast %cst_60 : f32 to vector<8x128xf32>
    %104 = arith.subf %103, %85 : vector<8x128xf32>
    %105 = arith.mulf %104, %102 : vector<8x128xf32>
    %106 = arith.mulf %85, %64 : vector<8x128xf32>
    %107 = arith.addf %105, %106 : vector<8x128xf32>
    %c1_61 = arith.constant 1 : index
    %c0_62 = arith.constant 0 : index
    %c0_63 = arith.constant 0 : index
    %108 = vector.load %arg14[%c1_61, %c0_62, %c0_63] : memref<5x8x128xf32, #tpu.memory_space<vmem>>, vector<1x8x128xf32>
    %109 = vector.shape_cast %108 : vector<1x8x128xf32> to vector<8x128xf32>
    %110 = vector.shape_cast %107 : vector<8x128xf32> to vector<1x8x128xf32>
    tpu.vector_store %arg14[%c1_61, %c0_62, %c0_63], %110 {strides = array<i32>} : memref<5x8x128xf32, #tpu.memory_space<vmem>>, vector<1x8x128xf32>,
    %111 = arith.truncf %107 : vector<8x128xf32> to vector<8x128xbf16>
    %c2 = arith.constant 2 : index
    %c0_64 = arith.constant 0 : index
    %c0_65 = arith.constant 0 : index
    %112 = vector.load %arg14[%c2, %c0_64, %c0_65] : memref<5x8x128xf32, #tpu.memory_space<vmem>>, vector<1x8x128xf32>
    %113 = vector.shape_cast %112 : vector<1x8x128xf32> to vector<8x128xf32>
    %114 = arith.truncf %113 : vector<8x128xf32> to vector<8x128xbf16>
    %115 = tpu.concatenate %111, %114 in 1 : vector<8x128xbf16>, vector<8x128xbf16> -> vector<8x256xbf16>
    %c2_66 = arith.constant 2 : index
    %c0_67 = arith.constant 0 : index
    %c0_68 = arith.constant 0 : index
    %116 = vector.load %arg4[%c2_66, %c0_67, %c0_68] : memref<5x256x256xbf16, #tpu.memory_space<vmem>>, vector<1x256x256xbf16>
    %117 = vector.shape_cast %116 : vector<1x256x256xbf16> to vector<256x256xbf16>
    %cst_69 = arith.constant dense<0.000000e+00> : vector<8x256xf32>
    %118 = tpu.matmul %115, %117, %cst_69 {dimension_numbers = #tpu.dot_dimension_numbers<[1], [0], [0], [1], [0, 0, 1, 1], [], []>} : vector<8x256xbf16>, vector<256x256xbf16>, vector<8x256xf32> -> vector<8x256xf32>
    %c2_70 = arith.constant 2 : index
    %c0_71 = arith.constant 0 : index
    %c0_72 = arith.constant 0 : index
    %119 = vector.load %arg7[%c2_70, %c0_71, %c0_72] : memref<5x1x256xf32, #tpu.memory_space<vmem>>, vector<1x1x256xf32>
    %120 = vector.shape_cast %119 : vector<1x1x256xf32> to vector<1x256xf32>
    %121 = vector.broadcast %120 : vector<1x256xf32> to vector<8x256xf32>
    %122 = arith.addf %118, %121 : vector<8x256xf32>
    %123 = vector.extract_strided_slice %122 {offsets = [0, 0], sizes = [8, 128], strides = [1, 1]} : vector<8x256xf32> to vector<8x128xf32>
    %124 = arith.negf %123 : vector<8x128xf32>
    %125 = math.exp %124 : vector<8x128xf32>
    %cst_73 = arith.constant 1.000000e+00 : f32
    %126 = vector.broadcast %cst_73 : f32 to vector<8x128xf32>
    %127 = arith.addf %126, %125 : vector<8x128xf32>
    %128 = arith.divf %126, %127 : vector<8x128xf32>
    %129 = vector.extract_strided_slice %122 {offsets = [0, 128], sizes = [8, 128], strides = [1, 1]} : vector<8x256xf32> to vector<8x128xf32>
    %130 = arith.negf %129 : vector<8x128xf32>
    %131 = math.exp %130 : vector<8x128xf32>
    %cst_74 = arith.constant 1.000000e+00 : f32
    %132 = vector.broadcast %cst_74 : f32 to vector<8x128xf32>
    %133 = arith.addf %132, %131 : vector<8x128xf32>
    %134 = arith.divf %132, %133 : vector<8x128xf32>
    %c2_75 = arith.constant 2 : index
    %c0_76 = arith.constant 0 : index
    %c0_77 = arith.constant 0 : index
    %135 = vector.load %arg5[%c2_75, %c0_76, %c0_77] : memref<5x128x128xbf16, #tpu.memory_space<vmem>>, vector<1x128x128xbf16>
    %136 = vector.shape_cast %135 : vector<1x128x128xbf16> to vector<128x128xbf16>
    %cst_78 = arith.constant dense<0.000000e+00> : vector<8x128xf32>
    %137 = tpu.matmul %111, %136, %cst_78 {dimension_numbers = #tpu.dot_dimension_numbers<[1], [0], [0], [1], [0, 0, 1, 1], [], []>} : vector<8x128xbf16>, vector<128x128xbf16>, vector<8x128xf32> -> vector<8x128xf32>
    %c2_79 = arith.constant 2 : index
    %c0_80 = arith.constant 0 : index
    %c0_81 = arith.constant 0 : index
    %138 = vector.load %arg8[%c2_79, %c0_80, %c0_81] : memref<5x1x128xf32, #tpu.memory_space<vmem>>, vector<1x1x128xf32>
    %139 = vector.shape_cast %138 : vector<1x1x128xf32> to vector<1x128xf32>
    %140 = vector.broadcast %139 : vector<1x128xf32> to vector<8x128xf32>
    %141 = arith.addf %137, %140 : vector<8x128xf32>
    %c2_82 = arith.constant 2 : index
    %c0_83 = arith.constant 0 : index
    %c0_84 = arith.constant 0 : index
    %142 = vector.load %arg6[%c2_82, %c0_83, %c0_84] : memref<5x128x128xbf16, #tpu.memory_space<vmem>>, vector<1x128x128xbf16>
    %143 = vector.shape_cast %142 : vector<1x128x128xbf16> to vector<128x128xbf16>
    %cst_85 = arith.constant dense<0.000000e+00> : vector<8x128xf32>
    %144 = tpu.matmul %114, %143, %cst_85 {dimension_numbers = #tpu.dot_dimension_numbers<[1], [0], [0], [1], [0, 0, 1, 1], [], []>} : vector<8x128xbf16>, vector<128x128xbf16>, vector<8x128xf32> -> vector<8x128xf32>
    %c2_86 = arith.constant 2 : index
    %c0_87 = arith.constant 0 : index
    %c0_88 = arith.constant 0 : index
    %145 = vector.load %arg9[%c2_86, %c0_87, %c0_88] : memref<5x1x128xf32, #tpu.memory_space<vmem>>, vector<1x1x128xf32>
    %146 = vector.shape_cast %145 : vector<1x1x128xf32> to vector<1x128xf32>
    %147 = vector.broadcast %146 : vector<1x128xf32> to vector<8x128xf32>
    %148 = arith.addf %144, %147 : vector<8x128xf32>
    %149 = arith.mulf %128, %148 : vector<8x128xf32>
    %150 = arith.addf %141, %149 : vector<8x128xf32>
    %151 = math.tanh %150 : vector<8x128xf32>
    %cst_89 = arith.constant 1.000000e+00 : f32
    %152 = vector.broadcast %cst_89 : f32 to vector<8x128xf32>
    %153 = arith.subf %152, %134 : vector<8x128xf32>
    %154 = arith.mulf %153, %151 : vector<8x128xf32>
    %155 = arith.mulf %134, %113 : vector<8x128xf32>
    %156 = arith.addf %154, %155 : vector<8x128xf32>
    %c2_90 = arith.constant 2 : index
    %c0_91 = arith.constant 0 : index
    %c0_92 = arith.constant 0 : index
    %157 = vector.load %arg14[%c2_90, %c0_91, %c0_92] : memref<5x8x128xf32, #tpu.memory_space<vmem>>, vector<1x8x128xf32>
    %158 = vector.shape_cast %157 : vector<1x8x128xf32> to vector<8x128xf32>
    %159 = vector.shape_cast %156 : vector<8x128xf32> to vector<1x8x128xf32>
    tpu.vector_store %arg14[%c2_90, %c0_91, %c0_92], %159 {strides = array<i32>} : memref<5x8x128xf32, #tpu.memory_space<vmem>>, vector<1x8x128xf32>,
    %160 = arith.truncf %156 : vector<8x128xf32> to vector<8x128xbf16>
    %c3 = arith.constant 3 : index
    %c0_93 = arith.constant 0 : index
    %c0_94 = arith.constant 0 : index
    %161 = vector.load %arg14[%c3, %c0_93, %c0_94] : memref<5x8x128xf32, #tpu.memory_space<vmem>>, vector<1x8x128xf32>
    %162 = vector.shape_cast %161 : vector<1x8x128xf32> to vector<8x128xf32>
    %163 = arith.truncf %162 : vector<8x128xf32> to vector<8x128xbf16>
    %164 = tpu.concatenate %160, %163 in 1 : vector<8x128xbf16>, vector<8x128xbf16> -> vector<8x256xbf16>
    %c3_95 = arith.constant 3 : index
    %c0_96 = arith.constant 0 : index
    %c0_97 = arith.constant 0 : index
    %165 = vector.load %arg4[%c3_95, %c0_96, %c0_97] : memref<5x256x256xbf16, #tpu.memory_space<vmem>>, vector<1x256x256xbf16>
    %166 = vector.shape_cast %165 : vector<1x256x256xbf16> to vector<256x256xbf16>
    %cst_98 = arith.constant dense<0.000000e+00> : vector<8x256xf32>
    %167 = tpu.matmul %164, %166, %cst_98 {dimension_numbers = #tpu.dot_dimension_numbers<[1], [0], [0], [1], [0, 0, 1, 1], [], []>} : vector<8x256xbf16>, vector<256x256xbf16>, vector<8x256xf32> -> vector<8x256xf32>
    %c3_99 = arith.constant 3 : index
    %c0_100 = arith.constant 0 : index
    %c0_101 = arith.constant 0 : index
    %168 = vector.load %arg7[%c3_99, %c0_100, %c0_101] : memref<5x1x256xf32, #tpu.memory_space<vmem>>, vector<1x1x256xf32>
    %169 = vector.shape_cast %168 : vector<1x1x256xf32> to vector<1x256xf32>
    %170 = vector.broadcast %169 : vector<1x256xf32> to vector<8x256xf32>
    %171 = arith.addf %167, %170 : vector<8x256xf32>
    %172 = vector.extract_strided_slice %171 {offsets = [0, 0], sizes = [8, 128], strides = [1, 1]} : vector<8x256xf32> to vector<8x128xf32>
    %173 = arith.negf %172 : vector<8x128xf32>
    %174 = math.exp %173 : vector<8x128xf32>
    %cst_102 = arith.constant 1.000000e+00 : f32
    %175 = vector.broadcast %cst_102 : f32 to vector<8x128xf32>
    %176 = arith.addf %175, %174 : vector<8x128xf32>
    %177 = arith.divf %175, %176 : vector<8x128xf32>
    %178 = vector.extract_strided_slice %171 {offsets = [0, 128], sizes = [8, 128], strides = [1, 1]} : vector<8x256xf32> to vector<8x128xf32>
    %179 = arith.negf %178 : vector<8x128xf32>
    %180 = math.exp %179 : vector<8x128xf32>
    %cst_103 = arith.constant 1.000000e+00 : f32
    %181 = vector.broadcast %cst_103 : f32 to vector<8x128xf32>
    %182 = arith.addf %181, %180 : vector<8x128xf32>
    %183 = arith.divf %181, %182 : vector<8x128xf32>
    %c3_104 = arith.constant 3 : index
    %c0_105 = arith.constant 0 : index
    %c0_106 = arith.constant 0 : index
    %184 = vector.load %arg5[%c3_104, %c0_105, %c0_106] : memref<5x128x128xbf16, #tpu.memory_space<vmem>>, vector<1x128x128xbf16>
    %185 = vector.shape_cast %184 : vector<1x128x128xbf16> to vector<128x128xbf16>
    %cst_107 = arith.constant dense<0.000000e+00> : vector<8x128xf32>
    %186 = tpu.matmul %160, %185, %cst_107 {dimension_numbers = #tpu.dot_dimension_numbers<[1], [0], [0], [1], [0, 0, 1, 1], [], []>} : vector<8x128xbf16>, vector<128x128xbf16>, vector<8x128xf32> -> vector<8x128xf32>
    %c3_108 = arith.constant 3 : index
    %c0_109 = arith.constant 0 : index
    %c0_110 = arith.constant 0 : index
    %187 = vector.load %arg8[%c3_108, %c0_109, %c0_110] : memref<5x1x128xf32, #tpu.memory_space<vmem>>, vector<1x1x128xf32>
    %188 = vector.shape_cast %187 : vector<1x1x128xf32> to vector<1x128xf32>
    %189 = vector.broadcast %188 : vector<1x128xf32> to vector<8x128xf32>
    %190 = arith.addf %186, %189 : vector<8x128xf32>
    %c3_111 = arith.constant 3 : index
    %c0_112 = arith.constant 0 : index
    %c0_113 = arith.constant 0 : index
    %191 = vector.load %arg6[%c3_111, %c0_112, %c0_113] : memref<5x128x128xbf16, #tpu.memory_space<vmem>>, vector<1x128x128xbf16>
    %192 = vector.shape_cast %191 : vector<1x128x128xbf16> to vector<128x128xbf16>
    %cst_114 = arith.constant dense<0.000000e+00> : vector<8x128xf32>
    %193 = tpu.matmul %163, %192, %cst_114 {dimension_numbers = #tpu.dot_dimension_numbers<[1], [0], [0], [1], [0, 0, 1, 1], [], []>} : vector<8x128xbf16>, vector<128x128xbf16>, vector<8x128xf32> -> vector<8x128xf32>
    %c3_115 = arith.constant 3 : index
    %c0_116 = arith.constant 0 : index
    %c0_117 = arith.constant 0 : index
    %194 = vector.load %arg9[%c3_115, %c0_116, %c0_117] : memref<5x1x128xf32, #tpu.memory_space<vmem>>, vector<1x1x128xf32>
    %195 = vector.shape_cast %194 : vector<1x1x128xf32> to vector<1x128xf32>
    %196 = vector.broadcast %195 : vector<1x128xf32> to vector<8x128xf32>
    %197 = arith.addf %193, %196 : vector<8x128xf32>
    %198 = arith.mulf %177, %197 : vector<8x128xf32>
    %199 = arith.addf %190, %198 : vector<8x128xf32>
    %200 = math.tanh %199 : vector<8x128xf32>
    %cst_118 = arith.constant 1.000000e+00 : f32
    %201 = vector.broadcast %cst_118 : f32 to vector<8x128xf32>
    %202 = arith.subf %201, %183 : vector<8x128xf32>
    %203 = arith.mulf %202, %200 : vector<8x128xf32>
    %204 = arith.mulf %183, %162 : vector<8x128xf32>
    %205 = arith.addf %203, %204 : vector<8x128xf32>
    %c3_119 = arith.constant 3 : index
    %c0_120 = arith.constant 0 : index
    %c0_121 = arith.constant 0 : index
    %206 = vector.load %arg14[%c3_119, %c0_120, %c0_121] : memref<5x8x128xf32, #tpu.memory_space<vmem>>, vector<1x8x128xf32>
    %207 = vector.shape_cast %206 : vector<1x8x128xf32> to vector<8x128xf32>
    %208 = vector.shape_cast %205 : vector<8x128xf32> to vector<1x8x128xf32>
    tpu.vector_store %arg14[%c3_119, %c0_120, %c0_121], %208 {strides = array<i32>} : memref<5x8x128xf32, #tpu.memory_space<vmem>>, vector<1x8x128xf32>,
    %209 = arith.truncf %205 : vector<8x128xf32> to vector<8x128xbf16>
    %c4 = arith.constant 4 : index
    %c0_122 = arith.constant 0 : index
    %c0_123 = arith.constant 0 : index
    %210 = vector.load %arg14[%c4, %c0_122, %c0_123] : memref<5x8x128xf32, #tpu.memory_space<vmem>>, vector<1x8x128xf32>
    %211 = vector.shape_cast %210 : vector<1x8x128xf32> to vector<8x128xf32>
    %212 = arith.truncf %211 : vector<8x128xf32> to vector<8x128xbf16>
    %213 = tpu.concatenate %209, %212 in 1 : vector<8x128xbf16>, vector<8x128xbf16> -> vector<8x256xbf16>
    %c4_124 = arith.constant 4 : index
    %c0_125 = arith.constant 0 : index
    %c0_126 = arith.constant 0 : index
    %214 = vector.load %arg4[%c4_124, %c0_125, %c0_126] : memref<5x256x256xbf16, #tpu.memory_space<vmem>>, vector<1x256x256xbf16>
    %215 = vector.shape_cast %214 : vector<1x256x256xbf16> to vector<256x256xbf16>
    %cst_127 = arith.constant dense<0.000000e+00> : vector<8x256xf32>
    %216 = tpu.matmul %213, %215, %cst_127 {dimension_numbers = #tpu.dot_dimension_numbers<[1], [0], [0], [1], [0, 0, 1, 1], [], []>} : vector<8x256xbf16>, vector<256x256xbf16>, vector<8x256xf32> -> vector<8x256xf32>
    %c4_128 = arith.constant 4 : index
    %c0_129 = arith.constant 0 : index
    %c0_130 = arith.constant 0 : index
    %217 = vector.load %arg7[%c4_128, %c0_129, %c0_130] : memref<5x1x256xf32, #tpu.memory_space<vmem>>, vector<1x1x256xf32>
    %218 = vector.shape_cast %217 : vector<1x1x256xf32> to vector<1x256xf32>
    %219 = vector.broadcast %218 : vector<1x256xf32> to vector<8x256xf32>
    %220 = arith.addf %216, %219 : vector<8x256xf32>
    %221 = vector.extract_strided_slice %220 {offsets = [0, 0], sizes = [8, 128], strides = [1, 1]} : vector<8x256xf32> to vector<8x128xf32>
    %222 = arith.negf %221 : vector<8x128xf32>
    %223 = math.exp %222 : vector<8x128xf32>
    %cst_131 = arith.constant 1.000000e+00 : f32
    %224 = vector.broadcast %cst_131 : f32 to vector<8x128xf32>
    %225 = arith.addf %224, %223 : vector<8x128xf32>
    %226 = arith.divf %224, %225 : vector<8x128xf32>
    %227 = vector.extract_strided_slice %220 {offsets = [0, 128], sizes = [8, 128], strides = [1, 1]} : vector<8x256xf32> to vector<8x128xf32>
    %228 = arith.negf %227 : vector<8x128xf32>
    %229 = math.exp %228 : vector<8x128xf32>
    %cst_132 = arith.constant 1.000000e+00 : f32
    %230 = vector.broadcast %cst_132 : f32 to vector<8x128xf32>
    %231 = arith.addf %230, %229 : vector<8x128xf32>
    %232 = arith.divf %230, %231 : vector<8x128xf32>
    %c4_133 = arith.constant 4 : index
    %c0_134 = arith.constant 0 : index
    %c0_135 = arith.constant 0 : index
    %233 = vector.load %arg5[%c4_133, %c0_134, %c0_135] : memref<5x128x128xbf16, #tpu.memory_space<vmem>>, vector<1x128x128xbf16>
    %234 = vector.shape_cast %233 : vector<1x128x128xbf16> to vector<128x128xbf16>
    %cst_136 = arith.constant dense<0.000000e+00> : vector<8x128xf32>
    %235 = tpu.matmul %209, %234, %cst_136 {dimension_numbers = #tpu.dot_dimension_numbers<[1], [0], [0], [1], [0, 0, 1, 1], [], []>} : vector<8x128xbf16>, vector<128x128xbf16>, vector<8x128xf32> -> vector<8x128xf32>
    %c4_137 = arith.constant 4 : index
    %c0_138 = arith.constant 0 : index
    %c0_139 = arith.constant 0 : index
    %236 = vector.load %arg8[%c4_137, %c0_138, %c0_139] : memref<5x1x128xf32, #tpu.memory_space<vmem>>, vector<1x1x128xf32>
    %237 = vector.shape_cast %236 : vector<1x1x128xf32> to vector<1x128xf32>
    %238 = vector.broadcast %237 : vector<1x128xf32> to vector<8x128xf32>
    %239 = arith.addf %235, %238 : vector<8x128xf32>
    %c4_140 = arith.constant 4 : index
    %c0_141 = arith.constant 0 : index
    %c0_142 = arith.constant 0 : index
    %240 = vector.load %arg6[%c4_140, %c0_141, %c0_142] : memref<5x128x128xbf16, #tpu.memory_space<vmem>>, vector<1x128x128xbf16>
    %241 = vector.shape_cast %240 : vector<1x128x128xbf16> to vector<128x128xbf16>
    %cst_143 = arith.constant dense<0.000000e+00> : vector<8x128xf32>
    %242 = tpu.matmul %212, %241, %cst_143 {dimension_numbers = #tpu.dot_dimension_numbers<[1], [0], [0], [1], [0, 0, 1, 1], [], []>} : vector<8x128xbf16>, vector<128x128xbf16>, vector<8x128xf32> -> vector<8x128xf32>
    %c4_144 = arith.constant 4 : index
    %c0_145 = arith.constant 0 : index
    %c0_146 = arith.constant 0 : index
    %243 = vector.load %arg9[%c4_144, %c0_145, %c0_146] : memref<5x1x128xf32, #tpu.memory_space<vmem>>, vector<1x1x128xf32>
    %244 = vector.shape_cast %243 : vector<1x1x128xf32> to vector<1x128xf32>
    %245 = vector.broadcast %244 : vector<1x128xf32> to vector<8x128xf32>
    %246 = arith.addf %242, %245 : vector<8x128xf32>
    %247 = arith.mulf %226, %246 : vector<8x128xf32>
    %248 = arith.addf %239, %247 : vector<8x128xf32>
    %249 = math.tanh %248 : vector<8x128xf32>
    %cst_147 = arith.constant 1.000000e+00 : f32
    %250 = vector.broadcast %cst_147 : f32 to vector<8x128xf32>
    %251 = arith.subf %250, %232 : vector<8x128xf32>
    %252 = arith.mulf %251, %249 : vector<8x128xf32>
    %253 = arith.mulf %232, %211 : vector<8x128xf32>
    %254 = arith.addf %252, %253 : vector<8x128xf32>
    %c4_148 = arith.constant 4 : index
    %c0_149 = arith.constant 0 : index
    %c0_150 = arith.constant 0 : index
    %255 = vector.load %arg14[%c4_148, %c0_149, %c0_150] : memref<5x8x128xf32, #tpu.memory_space<vmem>>, vector<1x8x128xf32>
    %256 = vector.shape_cast %255 : vector<1x8x128xf32> to vector<8x128xf32>
    %257 = vector.shape_cast %254 : vector<8x128xf32> to vector<1x8x128xf32>
    tpu.vector_store %arg14[%c4_148, %c0_149, %c0_150], %257 {strides = array<i32>} : memref<5x8x128xf32, #tpu.memory_space<vmem>>, vector<1x8x128xf32>,
    %258 = arith.truncf %254 : vector<8x128xf32> to vector<8x128xbf16>
    %c0_151 = arith.constant 0 : index
    %c0_152 = arith.constant 0 : index
    %259 = vector.load %arg10[%c0_151, %c0_152] : memref<128x256xbf16, #tpu.memory_space<vmem>>, vector<128x256xbf16>
    %cst_153 = arith.constant dense<0.000000e+00> : vector<8x256xf32>
    %260 = tpu.matmul %258, %259, %cst_153 {dimension_numbers = #tpu.dot_dimension_numbers<[1], [0], [0], [1], [0, 0, 1, 1], [], []>} : vector<8x128xbf16>, vector<128x256xbf16>, vector<8x256xf32> -> vector<8x256xf32>
    %c0_154 = arith.constant 0 : index
    %c0_155 = arith.constant 0 : index
    %261 = vector.load %arg11[%c0_154, %c0_155] : memref<1x256xf32, #tpu.memory_space<vmem>>, vector<1x256xf32>
    %262 = vector.broadcast %261 : vector<1x256xf32> to vector<8x256xf32>
    %263 = arith.addf %260, %262 : vector<8x256xf32>
    %c0_156 = arith.constant 0 : index
    %c0_157 = arith.constant 0 : index
    %c0_158 = arith.constant 0 : index
    %264 = vector.load %arg12[%c0_156, %c0_157, %c0_158] : memref<1x8x256xf32, #tpu.memory_space<vmem>>, vector<1x8x256xf32>
    %265 = vector.shape_cast %264 : vector<1x8x256xf32> to vector<8x256xf32>
    %266 = vector.shape_cast %263 : vector<8x256xf32> to vector<1x8x256xf32>
    tpu.vector_store %arg12[%c0_156, %c0_157, %c0_158], %266 {strides = array<i32>} : memref<1x8x256xf32, #tpu.memory_space<vmem>>, vector<1x8x256xf32>,
    %c0_i32_159 = arith.constant 0 : i32
    %267 = arith.cmpi eq, %arg0, %c0_i32_159 : i32
    %268 = arith.extui %267 : i1 to i32
    %c0_i32_160 = arith.constant 0 : i32
    %269 = arith.cmpi ne, %268, %c0_i32_160 : i32
    scf.if %269 {
      %c0_161 = arith.constant 0 : index
      %c0_162 = arith.constant 0 : index
      %c0_163 = arith.constant 0 : index
      %270 = vector.load %arg14[%c0_161, %c0_162, %c0_163] : memref<5x8x128xf32, #tpu.memory_space<vmem>>, vector<5x8x128xf32>
      %c0_164 = arith.constant 0 : index
      %c0_165 = arith.constant 0 : index
      %c0_166 = arith.constant 0 : index
      %271 = vector.load %arg13[%c0_164, %c0_165, %c0_166] : memref<5x8x128xf32, #tpu.memory_space<vmem>>, vector<5x8x128xf32>
      tpu.vector_store %arg13[%c0_164, %c0_165, %c0_166], %270 {strides = array<i32>} : memref<5x8x128xf32, #tpu.memory_space<vmem>>, vector<5x8x128xf32>,
    } else {
    }
    return
  }
  func.func @transform_0(%arg0: i32) -> (i32, i32, i32) {
    %c0_i32 = arith.constant 0 : i32
    %c0_i32_0 = arith.constant 0 : i32
    %c0_i32_1 = arith.constant 0 : i32
    return %arg0, %c0_i32, %c0_i32_0 : i32, i32, i32
  }
  func.func @transform_1(%arg0: i32) -> (i32, i32, i32) {
    %c0_i32 = arith.constant 0 : i32
    %c0_i32_0 = arith.constant 0 : i32
    %c0_i32_1 = arith.constant 0 : i32
    %c0_i32_2 = arith.constant 0 : i32
    return %c0_i32, %c0_i32_0, %c0_i32_1 : i32, i32, i32
  }
  func.func @transform_2(%arg0: i32) -> (i32, i32) {
    %c0_i32 = arith.constant 0 : i32
    %c0_i32_0 = arith.constant 0 : i32
    %c0_i32_1 = arith.constant 0 : i32
    return %c0_i32, %c0_i32_0 : i32, i32
  }
  func.func @transform_3(%arg0: i32) -> (i32, i32, i32) {
    %c0_i32 = arith.constant 0 : i32
    %c0_i32_0 = arith.constant 0 : i32
    %c0_i32_1 = arith.constant 0 : i32
    %c0_i32_2 = arith.constant 0 : i32
    return %c0_i32, %c0_i32_0, %c0_i32_1 : i32, i32, i32
  }
  func.func @transform_4(%arg0: i32) -> (i32, i32, i32) {
    %c0_i32 = arith.constant 0 : i32
    %c0_i32_0 = arith.constant 0 : i32
    %c0_i32_1 = arith.constant 0 : i32
    %c0_i32_2 = arith.constant 0 : i32
    return %c0_i32, %c0_i32_0, %c0_i32_1 : i32, i32, i32
  }
  func.func @transform_5(%arg0: i32) -> (i32, i32, i32) {
    %c0_i32 = arith.constant 0 : i32
    %c0_i32_0 = arith.constant 0 : i32
    %c0_i32_1 = arith.constant 0 : i32
    %c0_i32_2 = arith.constant 0 : i32
    return %c0_i32, %c0_i32_0, %c0_i32_1 : i32, i32, i32
  }
  func.func @transform_6(%arg0: i32) -> (i32, i32, i32) {
    %c0_i32 = arith.constant 0 : i32
    %c0_i32_0 = arith.constant 0 : i32
    %c0_i32_1 = arith.constant 0 : i32
    %c0_i32_2 = arith.constant 0 : i32
    return %c0_i32, %c0_i32_0, %c0_i32_1 : i32, i32, i32
  }
  func.func @transform_7(%arg0: i32) -> (i32, i32, i32) {
    %c0_i32 = arith.constant 0 : i32
    %c0_i32_0 = arith.constant 0 : i32
    %c0_i32_1 = arith.constant 0 : i32
    %c0_i32_2 = arith.constant 0 : i32
    return %c0_i32, %c0_i32_0, %c0_i32_1 : i32, i32, i32
  }
  func.func @transform_8(%arg0: i32) -> (i32, i32, i32) {
    %c0_i32 = arith.constant 0 : i32
    %c0_i32_0 = arith.constant 0 : i32
    %c0_i32_1 = arith.constant 0 : i32
    %c0_i32_2 = arith.constant 0 : i32
    return %c0_i32, %c0_i32_0, %c0_i32_1 : i32, i32, i32
  }
  func.func @transform_9(%arg0: i32) -> (i32, i32) {
    %c0_i32 = arith.constant 0 : i32
    %c0_i32_0 = arith.constant 0 : i32
    %c0_i32_1 = arith.constant 0 : i32
    return %c0_i32, %c0_i32_0 : i32, i32
  }
  func.func @transform_10(%arg0: i32) -> (i32, i32) {
    %c0_i32 = arith.constant 0 : i32
    %c0_i32_0 = arith.constant 0 : i32
    %c0_i32_1 = arith.constant 0 : i32
    return %c0_i32, %c0_i32_0 : i32, i32
  }
  func.func @transform_11(%arg0: i32) -> (i32, i32, i32) {
    %c0_i32 = arith.constant 0 : i32
    %c0_i32_0 = arith.constant 0 : i32
    %c0_i32_1 = arith.constant 0 : i32
    return %arg0, %c0_i32, %c0_i32_0 : i32, i32, i32
  }
  func.func @transform_12(%arg0: i32) -> (i32, i32, i32) {
    %c0_i32 = arith.constant 0 : i32
    %c0_i32_0 = arith.constant 0 : i32
    %c0_i32_1 = arith.constant 0 : i32
    %c0_i32_2 = arith.constant 0 : i32
    return %c0_i32, %c0_i32_0, %c0_i32_1 : i32, i32, i32
  }
}

</mosaic_0001>

<llo_original>
// kernel: decoder_step.1
$region0: #{decoder_step.1}
  #allocation0 [shape = 'u32[]', space=smem, size = 0x4, offset = 0x4, fixed_abs, tag = 'smem constant byte address 0x4 - core index']
  #allocation1 [shape = 'u32[144,128]{1,0:T(1,128)}', space=vmem, size = 0x12000, scoped, tag = 'internal scratch']
  #allocation2 [shape = 'f32[5,8,128]{2,1,0:T(8,128)}', space=vmem, size = 0x5000, scoped, tag = 'scratch operand']
  %s0 = inlined_call_operand.vmem [shape: s32[1,8,1], index: 0, kind: input, shape index: {}]
  %s1 = inlined_call_operand.vmem [shape: f32[5,8,128], index: 1, kind: input, shape index: {}, may-alias: {1,12}]
  %s2 = inlined_call_operand.hbm [shape: bf16[256,128], index: 2, kind: input, shape index: {}]
  %s3 = inlined_call_operand.hbm [shape: bf16[5,256,256], index: 3, kind: input, shape index: {}]
  %s4 = inlined_call_operand.hbm [shape: bf16[5,128,128], index: 4, kind: input, shape index: {}]
  %s5 = inlined_call_operand.hbm [shape: bf16[5,128,128], index: 5, kind: input, shape index: {}]
  %s6 = inlined_call_operand.vmem [shape: f32[5,1,256], index: 6, kind: input, shape index: {}]
  %s7 = inlined_call_operand.vmem [shape: f32[5,1,128], index: 7, kind: input, shape index: {}]
  %s8 = inlined_call_operand.vmem [shape: f32[5,1,128], index: 8, kind: input, shape index: {}]
  %s9 = inlined_call_operand.hbm [shape: bf16[128,256], index: 9, kind: input, shape index: {}]
  %s10 = inlined_call_operand.vmem [shape: f32[1,256], index: 10, kind: input, shape index: {}]
  %s11 = inlined_call_operand.hbm [shape: f32[1,8,256], index: 11, kind: output, shape index: {0}]
  %s12 = inlined_call_operand.vmem [shape: f32[5,8,128], index: 12, kind: output, shape index: {1}, may-alias: {1,12}]
  %13 = xla_tuple %s11, %s12
  %s14 = sld [smem:[#allocation0]]
  $region90: #{decoder_step.1} parent=0
    _
  %s16 = ssub.s32 1, %s14
  %s17 = scalar_select 0, %s16, %s14
  $region1: #{decoder_step.1} parent=0
    #allocation3 [shape = 'u8[65536]{0}', space=vmem, size = 0x10000, scoped, tag = 'input window, operand 2, single buffered']
    #allocation4 [shape = 's32[1]{0}', space=sflag, size = 0x4, scoped, tag = 'scoped memory for decoder_step.1']
    #allocation5 [shape = 's32[1]{0}', space=sflag, size = 0x4, scoped, tag = 'scoped memory for decoder_step.1']
    #allocation6 [shape = 'u8[655360]{0}', space=vmem, size = 0xa0000, scoped, tag = 'input window, operand 3, single buffered']
    #allocation7 [shape = 's32[1]{0}', space=sflag, size = 0x4, scoped, tag = 'scoped memory for decoder_step.1']
    #allocation8 [shape = 'u8[163840]{0}', space=vmem, size = 0x28000, scoped, tag = 'input window, operand 4, single buffered']
    #allocation9 [shape = 'u8[163840]{0}', space=vmem, size = 0x28000, scoped, tag = 'input window, operand 5, single buffered']
    #allocation10 [shape = 's32[1]{0}', space=sflag, size = 0x4, scoped, tag = 'scoped memory for decoder_step.1']
    #allocation11 [shape = 'u8[65536]{0}', space=vmem, size = 0x10000, scoped, tag = 'input window, operand 9, single buffered']
    #allocation12 [shape = 'u8[8192]{0}', space=vmem, size = 0x2000, scoped, tag = 'output window, operand 0, single buffered']
    %18 = vsyncpa [#allocation4], 0
    %19 = vsyncpa [#allocation7], 0
    %20 = vsyncpa [#allocation10], 0
    %21 = vsyncpa [#allocation5], 0
    // Predicated region
    $region2: #{decoder_step.1} parent=1 // pred_check
      _
    $region3: #{decoder_step.1} parent=1 // pred_check_branch
      %23 = sbr.rel (0) target = $region5
    $region4: #{decoder_step.1} parent=1 // pred_region
      _
    $region5: #{decoder_step.1} parent=1 // pred_fallthru
      _
    // Predicated region
    $region6: #{decoder_step.1} parent=1 // pred_check
      _
    $region7: #{decoder_step.1} parent=1 // pred_check_branch
      %25 = sbr.rel (0) target = $region9
    $region8: #{decoder_step.1} parent=1 // pred_region
      _
    $region9: #{decoder_step.1} parent=1 // pred_fallthru
      _
    // Predicated region
    $region10: #{decoder_step.1} parent=1 // pred_check
      _
    $region11: #{decoder_step.1} parent=1 // pred_check_branch
      %27 = sbr.rel (0) target = $region13
    $region12: #{decoder_step.1} parent=1 // pred_region
      %s29 = ssub.s32 2048, 2048
      %30 = vsyncadd [#allocation4], %s29
      %s31 = sshll.u32 [#allocation3], 4
      %s32 = int_to_ptr.vmem [resolvable:$true] %s31
      %37 = dma.hbm_to_vmem [thread:$0]  %s2, 2048, %s32, [#allocation4], 64, 64, 4
    $region13: #{decoder_step.1} parent=1 // pred_fallthru
      _
    // Predicated region
    $region14: #{decoder_step.1} parent=1 // pred_check
      _
    $region15: #{decoder_step.1} parent=1 // pred_check_branch
      %39 = sbr.rel (0) target = $region17
    $region16: #{decoder_step.1} parent=1 // pred_region
      %s41 = ssub.s32 20480, 20480
      %42 = vsyncadd [#allocation7], %s41
      %s43 = sshll.u32 [#allocation6], 4
      %s44 = int_to_ptr.vmem [resolvable:$true] %s43
      %49 = dma.hbm_to_vmem [thread:$0]  %s3, 20480, %s44, [#allocation7], 128, 128, 8
    $region17: #{decoder_step.1} parent=1 // pred_fallthru
      _
    // Predicated region
    $region18: #{decoder_step.1} parent=1 // pred_check
      _
    $region19: #{decoder_step.1} parent=1 // pred_check_branch
      %51 = sbr.rel (0) target = $region21
    $region20: #{decoder_step.1} parent=1 // pred_region
      %s53 = ssub.s32 5120, 5120
      %54 = vsyncadd [#allocation7], %s53
      %s55 = sshll.u32 [#allocation8], 4
      %s56 = int_to_ptr.vmem [resolvable:$true] %s55
      %61 = dma.hbm_to_vmem [thread:$0]  %s4, 5120, %s56, [#allocation7], 64, 64, 4
    $region21: #{decoder_step.1} parent=1 // pred_fallthru
      _
    // Predicated region
    $region22: #{decoder_step.1} parent=1 // pred_check
      _
    $region23: #{decoder_step.1} parent=1 // pred_check_branch
      %63 = sbr.rel (0) target = $region25
    $region24: #{decoder_step.1} parent=1 // pred_region
      %s65 = ssub.s32 5120, 5120
      %66 = vsyncadd [#allocation10], %s65
      %s67 = sshll.u32 [#allocation9], 4
      %s68 = int_to_ptr.vmem [resolvable:$true] %s67
      %73 = dma.hbm_to_vmem [thread:$0]  %s5, 5120, %s68, [#allocation10], 64, 64, 4
    $region25: #{decoder_step.1} parent=1 // pred_fallthru
      _
    // Predicated region
    $region26: #{decoder_step.1} parent=1 // pred_check
      _
    $region27: #{decoder_step.1} parent=1 // pred_check_branch
      %75 = sbr.rel (0) target = $region29
    $region28: #{decoder_step.1} parent=1 // pred_region
      _
    $region29: #{decoder_step.1} parent=1 // pred_fallthru
      _
    // Predicated region
    $region30: #{decoder_step.1} parent=1 // pred_check
      _
    $region31: #{decoder_step.1} parent=1 // pred_check_branch
      %77 = sbr.rel (0) target = $region33
    $region32: #{decoder_step.1} parent=1 // pred_region
      _
    $region33: #{decoder_step.1} parent=1 // pred_fallthru
      _
    // Predicated region
    $region34: #{decoder_step.1} parent=1 // pred_check
      _
    $region35: #{decoder_step.1} parent=1 // pred_check_branch
      %79 = sbr.rel (0) target = $region37
    $region36: #{decoder_step.1} parent=1 // pred_region
      _
    $region37: #{decoder_step.1} parent=1 // pred_fallthru
      _
    // Predicated region
    $region38: #{decoder_step.1} parent=1 // pred_check
      _
    $region39: #{decoder_step.1} parent=1 // pred_check_branch
      %81 = sbr.rel (0) target = $region41
    $region40: #{decoder_step.1} parent=1 // pred_region
      %s83 = ssub.s32 2048, 2048
      %84 = vsyncadd [#allocation10], %s83
      %s85 = sshll.u32 [#allocation11], 4
      %s86 = int_to_ptr.vmem [resolvable:$true] %s85
      %91 = dma.hbm_to_vmem [thread:$0]  %s9, 2048, %s86, [#allocation10], 128, 128, 8
    $region41: #{decoder_step.1} parent=1 // pred_fallthru
      _
    // Predicated region
    $region42: #{decoder_step.1} parent=1 // pred_check
      _
    $region43: #{decoder_step.1} parent=1 // pred_check_branch
      %93 = sbr.rel (0) target = $region45
    $region44: #{decoder_step.1} parent=1 // pred_region
      _
    $region45: #{decoder_step.1} parent=1 // pred_fallthru
      _
    // Predicated region
    $region46: #{decoder_step.1} parent=1 // pred_check
      _
    $region47: #{decoder_step.1} parent=1 // pred_check_branch
      %95 = sbr.rel (0) target = $region49
    $region48: #{decoder_step.1} parent=1 // pred_region
      %96 = dma.done [#allocation4], 2048
    $region49: #{decoder_step.1} parent=1 // pred_fallthru
      _
    // Predicated region
    $region50: #{decoder_step.1} parent=1 // pred_check
      _
    $region51: #{decoder_step.1} parent=1 // pred_check_branch
      %98 = sbr.rel (0) target = $region53
    $region52: #{decoder_step.1} parent=1 // pred_region
      %99 = dma.done [#allocation7], 20480
    $region53: #{decoder_step.1} parent=1 // pred_fallthru
      _
    // Predicated region
    $region54: #{decoder_step.1} parent=1 // pred_check
      _
    $region55: #{decoder_step.1} parent=1 // pred_check_branch
      %101 = sbr.rel (0) target = $region57
    $region56: #{decoder_step.1} parent=1 // pred_region
      %102 = dma.done [#allocation7], 5120
    $region57: #{decoder_step.1} parent=1 // pred_fallthru
      _
    // Predicated region
    $region58: #{decoder_step.1} parent=1 // pred_check
      _
    $region59: #{decoder_step.1} parent=1 // pred_check_branch
      %104 = sbr.rel (0) target = $region61
    $region60: #{decoder_step.1} parent=1 // pred_region
      %105 = dma.done [#allocation10], 5120
    $region61: #{decoder_step.1} parent=1 // pred_fallthru
      _
    // Predicated region
    $region62: #{decoder_step.1} parent=1 // pred_check
      _
    $region63: #{decoder_step.1} parent=1 // pred_check_branch
      %107 = sbr.rel (0) target = $region65
    $region64: #{decoder_step.1} parent=1 // pred_region
      %108 = dma.done [#allocation10], 2048
    $region65: #{decoder_step.1} parent=1 // pred_fallthru
      _
    %p110 = scmp.eq.s32.totalorder 0, 0
    // Predicated region
    $region66: #{decoder_step.1} parent=1 // pred_check
      %p111 = pneg %p110
    $region67: #{decoder_step.1} parent=1 // pred_check_branch
      %113 = sbr.rel (%p111) target = $region69
    $region68: #{decoder_step.1} parent=1 // pred_region
      %v114 = vld [vmem:[%s1] sm:$0xff]
      %v115 = vld [vmem:[%s1 + $0x8] sm:$0xff]
      %v116 = vld [vmem:[%s1 + $0x10] sm:$0xff]
      %v117 = vld [vmem:[%s1 + $0x18] sm:$0xff]
      %v118 = vld [vmem:[%s1 + $0x20] sm:$0xff]
      %119 = vst [vmem:[#allocation2] sm:$0xff] %v114
      %120 = vst [vmem:[#allocation2 + $0x8] sm:$0xff] %v115
      %121 = vst [vmem:[#allocation2 + $0x10] sm:$0xff] %v116
      %122 = vst [vmem:[#allocation2 + $0x18] sm:$0xff] %v117
      %123 = vst [vmem:[#allocation2 + $0x20] sm:$0xff] %v118
    $region69: #{decoder_step.1} parent=1 // pred_fallthru
      _
    %v124 = vld [vmem:[%s0] sm:$0xff]
    %v125 = vlaneseq
    %v126 = vand.u32 %v125, 127
    %v127 = vadd.s32 %v126, 128
    %128 = vset.pattern.permute.xlu0 0
    %129 = vperm.xlu0 %128, %v124
    %v130 = vpop.permute.xlu0 %129
    %vm131 = vcmp.eq.s32.totalorder %v126, %v130
    %vm132 = vcmp.eq.s32.totalorder %v127, %v130
    %v133 = vsel %vm131, 1, 0
    %v134 = vsel %vm132, 1, 0
    %v135 = vcvt.s32.f32 %v133
    %v136 = vcvt.s32.f32 %v134
    %v137 = vpack.c.bf16 %v135, %v135
    %v138 = vpack.c.bf16 %v136, %v136
    %v139 = vld [vmem:[#allocation3] sm:$0xf]
    %v140 = vld [vmem:[#allocation3 + $0x4] sm:$0xf]
    %v141 = vld [vmem:[#allocation3 + $0x8] sm:$0xf]
    %v142 = vld [vmem:[#allocation3 + $0xc] sm:$0xf]
    %v143 = vld [vmem:[#allocation3 + $0x10] sm:$0xf]
    %v144 = vld [vmem:[#allocation3 + $0x14] sm:$0xf]
    %v145 = vld [vmem:[#allocation3 + $0x18] sm:$0xf]
    %v146 = vld [vmem:[#allocation3 + $0x1c] sm:$0xf]
    %v147 = vld [vmem:[#allocation3 + $0x20] sm:$0xf]
    %v148 = vld [vmem:[#allocation3 + $0x24] sm:$0xf]
    %v149 = vld [vmem:[#allocation3 + $0x28] sm:$0xf]
    %v150 = vld [vmem:[#allocation3 + $0x2c] sm:$0xf]
    %v151 = vld [vmem:[#allocation3 + $0x30] sm:$0xf]
    %v152 = vld [vmem:[#allocation3 + $0x34] sm:$0xf]
    %v153 = vld [vmem:[#allocation3 + $0x38] sm:$0xf]
    %v154 = vld [vmem:[#allocation3 + $0x3c] sm:$0xf]
    %v155 = vld [vmem:[#allocation3 + $0x40] sm:$0xf]
    %v156 = vld [vmem:[#allocation3 + $0x44] sm:$0xf]
    %v157 = vld [vmem:[#allocation3 + $0x48] sm:$0xf]
    %v158 = vld [vmem:[#allocation3 + $0x4c] sm:$0xf]
    %v159 = vld [vmem:[#allocation3 + $0x50] sm:$0xf]
    %v160 = vld [vmem:[#allocation3 + $0x54] sm:$0xf]
    %v161 = vld [vmem:[#allocation3 + $0x58] sm:$0xf]
    %v162 = vld [vmem:[#allocation3 + $0x5c] sm:$0xf]
    %v163 = vld [vmem:[#allocation3 + $0x60] sm:$0xf]
    %v164 = vld [vmem:[#allocation3 + $0x64] sm:$0xf]
    %v165 = vld [vmem:[#allocation3 + $0x68] sm:$0xf]
    %v166 = vld [vmem:[#allocation3 + $0x6c] sm:$0xf]
    %v167 = vld [vmem:[#allocation3 + $0x70] sm:$0xf]
    %v168 = vld [vmem:[#allocation3 + $0x74] sm:$0xf]
    %v169 = vld [vmem:[#allocation3 + $0x78] sm:$0xf]
    %v170 = vld [vmem:[#allocation3 + $0x7c] sm:$0xf]
    %v203 = vunpack.c.l.b16 %v139
    %v204 = vunpack.c.l.b16 %v140
    %v205 = vunpack.c.l.b16 %v141
    %v206 = vunpack.c.l.b16 %v142
    %v207 = vunpack.c.l.b16 %v143
    %v208 = vunpack.c.l.b16 %v144
    %v209 = vunpack.c.l.b16 %v145
    %v210 = vunpack.c.l.b16 %v146
    %v211 = vunpack.c.l.b16 %v147
    %v212 = vunpack.c.l.b16 %v148
    %v213 = vunpack.c.l.b16 %v149
    %v214 = vunpack.c.l.b16 %v150
    %v215 = vunpack.c.l.b16 %v151
    %v216 = vunpack.c.l.b16 %v152
    %v217 = vunpack.c.l.b16 %v153
    %v218 = vunpack.c.l.b16 %v154
    %v219 = vunpack.c.l.b16 %v155
    %v220 = vunpack.c.l.b16 %v156
    %v221 = vunpack.c.l.b16 %v157
    %v222 = vunpack.c.l.b16 %v158
    %v223 = vunpack.c.l.b16 %v159
    %v224 = vunpack.c.l.b16 %v160
    %v225 = vunpack.c.l.b16 %v161
    %v226 = vunpack.c.l.b16 %v162
    %v227 = vunpack.c.l.b16 %v163
    %v228 = vunpack.c.l.b16 %v164
    %v229 = vunpack.c.l.b16 %v165
    %v230 = vunpack.c.l.b16 %v166
    %v231 = vunpack.c.l.b16 %v167
    %v232 = vunpack.c.l.b16 %v168
    %v233 = vunpack.c.l.b16 %v169
    %v234 = vunpack.c.l.b16 %v170
    %v235 = vpack.c.b16 %v204, %v203
    %v236 = vpack.c.b16 %v206, %v205
    %v237 = vpack.c.b16 %v208, %v207
    %v238 = vpack.c.b16 %v210, %v209
    %v239 = vpack.c.b16 %v212, %v211
    %v240 = vpack.c.b16 %v214, %v213
    %v241 = vpack.c.b16 %v216, %v215
    %v242 = vpack.c.b16 %v218, %v217
    %v243 = vpack.c.b16 %v220, %v219
    %v244 = vpack.c.b16 %v222, %v221
    %v245 = vpack.c.b16 %v224, %v223
    %v246 = vpack.c.b16 %v226, %v225
    %v247 = vpack.c.b16 %v228, %v227
    %v248 = vpack.c.b16 %v230, %v229
    %v249 = vpack.c.b16 %v232, %v231
    %v250 = vpack.c.b16 %v234, %v233
    %267 = vmatprep.subr.bf16.mxu0 0
    %268 = vmatpush1.bf16.msra.mxu0 %v242
    %269 = vmatprep.subr.bf16.mxu0 0
    %270 = vmatpush1.bf16.msra.mxu0 %v241
    %271 = vmatprep.subr.bf16.mxu0 0
    %272 = vmatpush1.bf16.msra.mxu0 %v240
    %273 = vmatprep.subr.bf16.mxu0 0
    %274 = vmatpush1.bf16.msra.mxu0 %v239
    %275 = vmatprep.subr.bf16.mxu0 0
    %276 = vmatpush1.bf16.msra.mxu0 %v238
    %277 = vmatprep.subr.bf16.mxu0 0
    %278 = vmatpush1.bf16.msra.mxu0 %v237
    %279 = vmatprep.subr.bf16.mxu0 0
    %280 = vmatpush1.bf16.msra.mxu0 %v236
    %281 = vmatprep.subr.bf16.mxu0 0
    %282 = vmatpush1.bf16.msra.mxu0 %v235
    %283 = vmatprep.subr.bf16.mxu0 0
    %284 = vmatpush2.bf16.msra.mxu0 %v250
    %285 = vmatprep.subr.bf16.mxu0 0
    %286 = vmatpush2.bf16.msra.mxu0 %v249
    %287 = vmatprep.subr.bf16.mxu0 0
    %288 = vmatpush2.bf16.msra.mxu0 %v248
    %289 = vmatprep.subr.bf16.mxu0 0
    %290 = vmatpush2.bf16.msra.mxu0 %v247
    %291 = vmatprep.subr.bf16.mxu0 0
    %292 = vmatpush2.bf16.msra.mxu0 %v246
    %293 = vmatprep.subr.bf16.mxu0 0
    %294 = vmatpush2.bf16.msra.mxu0 %v245
    %295 = vmatprep.subr.bf16.mxu0 0
    %296 = vmatpush2.bf16.msra.mxu0 %v244
    %297 = vmatprep.subr.bf16.mxu0 0
    %298 = vmatpush2.bf16.msra.mxu0 %v243
    %299 = vmatprep.mubr.bf16.mxu0 %v138
    %300 = vmatmul.mubr.bf16.gmra.mxu0 %v137
    %v301 = vpop.f32.mrf.mxu0
    %v302 = vadd.f32 0.0, %v301
    %v303 = vpop.f32.mrf.mxu0
    %v304 = vpop.f32.mrf.mxu0
    %v305 = vpop.f32.mrf.mxu0
    %306 = vdwg.mxu0
    %v307 = vpack.c.bf16 %v302, %v302
    %v308 = vld [vmem:[#allocation2] sm:$0xff]
    %v309 = vpack.c.bf16 %v308, %v308
    %v310 = vld [vmem:[#allocation6] sm:$0xff]
    %v311 = vld [vmem:[#allocation6 + $0x8] sm:$0xff]
    %v312 = vld [vmem:[#allocation6 + $0x10] sm:$0xff]
    %v313 = vld [vmem:[#allocation6 + $0x18] sm:$0xff]
    %v314 = vld [vmem:[#allocation6 + $0x20] sm:$0xff]
    %v315 = vld [vmem:[#allocation6 + $0x28] sm:$0xff]
    %v316 = vld [vmem:[#allocation6 + $0x30] sm:$0xff]
    %v317 = vld [vmem:[#allocation6 + $0x38] sm:$0xff]
    %v318 = vld [vmem:[#allocation6 + $0x40] sm:$0xff]
    %v319 = vld [vmem:[#allocation6 + $0x48] sm:$0xff]
    %v320 = vld [vmem:[#allocation6 + $0x50] sm:$0xff]
    %v321 = vld [vmem:[#allocation6 + $0x58] sm:$0xff]
    %v322 = vld [vmem:[#allocation6 + $0x60] sm:$0xff]
    %v323 = vld [vmem:[#allocation6 + $0x68] sm:$0xff]
    %v324 = vld [vmem:[#allocation6 + $0x70] sm:$0xff]
    %v325 = vld [vmem:[#allocation6 + $0x78] sm:$0xff]
    %v326 = vld [vmem:[#allocation6 + $0x80] sm:$0xff]
    %v327 = vld [vmem:[#allocation6 + $0x88] sm:$0xff]
    %v328 = vld [vmem:[#allocation6 + $0x90] sm:$0xff]
    %v329 = vld [vmem:[#allocation6 + $0x98] sm:$0xff]
    %v330 = vld [vmem:[#allocation6 + $0xa0] sm:$0xff]
    %v331 = vld [vmem:[#allocation6 + $0xa8] sm:$0xff]
    %v332 = vld [vmem:[#allocation6 + $0xb0] sm:$0xff]
    %v333 = vld [vmem:[#allocation6 + $0xb8] sm:$0xff]
    %v334 = vld [vmem:[#allocation6 + $0xc0] sm:$0xff]
    %v335 = vld [vmem:[#allocation6 + $0xc8] sm:$0xff]
    %v336 = vld [vmem:[#allocation6 + $0xd0] sm:$0xff]
    %v337 = vld [vmem:[#allocation6 + $0xd8] sm:$0xff]
    %v338 = vld [vmem:[#allocation6 + $0xe0] sm:$0xff]
    %v339 = vld [vmem:[#allocation6 + $0xe8] sm:$0xff]
    %v340 = vld [vmem:[#allocation6 + $0xf0] sm:$0xff]
    %v341 = vld [vmem:[#allocation6 + $0xf8] sm:$0xff]
    %v342 = vld [vmem:[%s6] sm:$0x3]
    %v344 = vlaneseq
    %v345 = vshrl.u32 %v344, 7
    %v346 = vsub.s32 0, %v345
    %v347 = vrot.slane %v342, %v346
    %v348 = vlaneseq
    %v349 = vshrl.u32 %v348, 7
    %v350 = vsub.s32 1, %v349
    %v351 = vrot.slane %v342, %v350
    %v386 = vunpack.c.l.b16 %v310
    %v387 = vunpack.c.h.b16 %v310
    %v388 = vunpack.c.l.b16 %v311
    %v389 = vunpack.c.h.b16 %v311
    %v390 = vunpack.c.l.b16 %v312
    %v391 = vunpack.c.h.b16 %v312
    %v392 = vunpack.c.l.b16 %v313
    %v393 = vunpack.c.h.b16 %v313
    %v394 = vunpack.c.l.b16 %v314
    %v395 = vunpack.c.h.b16 %v314
    %v396 = vunpack.c.l.b16 %v315
    %v397 = vunpack.c.h.b16 %v315
    %v398 = vunpack.c.l.b16 %v316
    %v399 = vunpack.c.h.b16 %v316
    %v400 = vunpack.c.l.b16 %v317
    %v401 = vunpack.c.h.b16 %v317
    %v402 = vunpack.c.l.b16 %v318
    %v403 = vunpack.c.h.b16 %v318
    %v404 = vunpack.c.l.b16 %v319
    %v405 = vunpack.c.h.b16 %v319
    %v406 = vunpack.c.l.b16 %v320
    %v407 = vunpack.c.h.b16 %v320
    %v408 = vunpack.c.l.b16 %v321
    %v409 = vunpack.c.h.b16 %v321
    %v410 = vunpack.c.l.b16 %v322
    %v411 = vunpack.c.h.b16 %v322
    %v412 = vunpack.c.l.b16 %v323
    %v413 = vunpack.c.h.b16 %v323
    %v414 = vunpack.c.l.b16 %v324
    %v415 = vunpack.c.h.b16 %v324
    %v416 = vunpack.c.l.b16 %v325
    %v417 = vunpack.c.h.b16 %v325
    %v418 = vunpack.c.l.b16 %v326
    %v419 = vunpack.c.h.b16 %v326
    %v420 = vunpack.c.l.b16 %v327
    %v421 = vunpack.c.h.b16 %v327
    %v422 = vunpack.c.l.b16 %v328
    %v423 = vunpack.c.h.b16 %v328
    %v424 = vunpack.c.l.b16 %v329
    %v425 = vunpack.c.h.b16 %v329
    %v426 = vunpack.c.l.b16 %v330
    %v427 = vunpack.c.h.b16 %v330
    %v428 = vunpack.c.l.b16 %v331
    %v429 = vunpack.c.h.b16 %v331
    %v430 = vunpack.c.l.b16 %v332
    %v431 = vunpack.c.h.b16 %v332
    %v432 = vunpack.c.l.b16 %v333
    %v433 = vunpack.c.h.b16 %v333
    %v434 = vunpack.c.l.b16 %v334
    %v435 = vunpack.c.h.b16 %v334
    %v436 = vunpack.c.l.b16 %v335
    %v437 = vunpack.c.h.b16 %v335
    %v438 = vunpack.c.l.b16 %v336
    %v439 = vunpack.c.h.b16 %v336
    %v440 = vunpack.c.l.b16 %v337
    %v441 = vunpack.c.h.b16 %v337
    %v442 = vunpack.c.l.b16 %v338
    %v443 = vunpack.c.h.b16 %v338
    %v444 = vunpack.c.l.b16 %v339
    %v445 = vunpack.c.h.b16 %v339
    %v446 = vunpack.c.l.b16 %v340
    %v447 = vunpack.c.h.b16 %v340
    %v448 = vunpack.c.l.b16 %v341
    %v449 = vunpack.c.h.b16 %v341
    %v450 = vpack.c.b16 %v388, %v386
    %v451 = vpack.c.b16 %v389, %v387
    %v452 = vpack.c.b16 %v392, %v390
    %v453 = vpack.c.b16 %v393, %v391
    %v454 = vpack.c.b16 %v396, %v394
    %v455 = vpack.c.b16 %v397, %v395
    %v456 = vpack.c.b16 %v400, %v398
    %v457 = vpack.c.b16 %v401, %v399
    %v458 = vpack.c.b16 %v404, %v402
    %v459 = vpack.c.b16 %v405, %v403
    %v460 = vpack.c.b16 %v408, %v406
    %v461 = vpack.c.b16 %v409, %v407
    %v462 = vpack.c.b16 %v412, %v410
    %v463 = vpack.c.b16 %v413, %v411
    %v464 = vpack.c.b16 %v416, %v414
    %v465 = vpack.c.b16 %v417, %v415
    %v466 = vpack.c.b16 %v420, %v418
    %v467 = vpack.c.b16 %v421, %v419
    %v468 = vpack.c.b16 %v424, %v422
    %v469 = vpack.c.b16 %v425, %v423
    %v470 = vpack.c.b16 %v428, %v426
    %v471 = vpack.c.b16 %v429, %v427
    %v472 = vpack.c.b16 %v432, %v430
    %v473 = vpack.c.b16 %v433, %v431
    %v474 = vpack.c.b16 %v436, %v434
    %v475 = vpack.c.b16 %v437, %v435
    %v476 = vpack.c.b16 %v440, %v438
    %v477 = vpack.c.b16 %v441, %v439
    %v478 = vpack.c.b16 %v444, %v442
    %v479 = vpack.c.b16 %v445, %v443
    %v480 = vpack.c.b16 %v448, %v446
    %v481 = vpack.c.b16 %v449, %v447
    %514 = vmatprep.subr.bf16.mxu0 %v465
    %515 = vmatpush1.bf16.msra.mxu0 %v464
    %516 = vmatprep.subr.bf16.mxu0 %v463
    %517 = vmatpush1.bf16.msra.mxu0 %v462
    %518 = vmatprep.subr.bf16.mxu0 %v461
    %519 = vmatpush1.bf16.msra.mxu0 %v460
    %520 = vmatprep.subr.bf16.mxu0 %v459
    %521 = vmatpush1.bf16.msra.mxu0 %v458
    %522 = vmatprep.subr.bf16.mxu0 %v457
    %523 = vmatpush1.bf16.msra.mxu0 %v456
    %524 = vmatprep.subr.bf16.mxu0 %v455
    %525 = vmatpush1.bf16.msra.mxu0 %v454
    %526 = vmatprep.subr.bf16.mxu0 %v453
    %527 = vmatpush1.bf16.msra.mxu0 %v452
    %528 = vmatprep.subr.bf16.mxu0 %v451
    %529 = vmatpush1.bf16.msra.mxu0 %v450
    %530 = vmatprep.subr.bf16.mxu0 %v481
    %531 = vmatpush2.bf16.msra.mxu0 %v480
    %532 = vmatprep.subr.bf16.mxu0 %v479
    %533 = vmatpush2.bf16.msra.mxu0 %v478
    %534 = vmatprep.subr.bf16.mxu0 %v477
    %535 = vmatpush2.bf16.msra.mxu0 %v476
    %536 = vmatprep.subr.bf16.mxu0 %v475
    %537 = vmatpush2.bf16.msra.mxu0 %v474
    %538 = vmatprep.subr.bf16.mxu0 %v473
    %539 = vmatpush2.bf16.msra.mxu0 %v472
    %540 = vmatprep.subr.bf16.mxu0 %v471
    %541 = vmatpush2.bf16.msra.mxu0 %v470
    %542 = vmatprep.subr.bf16.mxu0 %v469
    %543 = vmatpush2.bf16.msra.mxu0 %v468
    %544 = vmatprep.subr.bf16.mxu0 %v467
    %545 = vmatpush2.bf16.msra.mxu0 %v466
    %546 = vmatprep.mubr.bf16.mxu0 %v309
    %547 = vmatmul.mubr.bf16.gmra.mxu0 %v307
    %v548 = vpop.f32.mrf.mxu0
    %v549 = vadd.f32 %v347, %v548
    %v550 = vpop.f32.mrf.mxu0
    %v551 = vadd.f32 %v351, %v550
    %v552 = vpop.f32.mrf.mxu0
    %v553 = vpop.f32.mrf.mxu0
    %554 = vdwg.mxu0
    %v555 = vxor.u32 %v549, 2147483648
    %v556 = vmul.f32 %v555, 1.442695
    %v557 = vpow.pop %v556
    %v558 = vadd.f32 %v557, 1.0
    %v559 = vrcp.pop %v558
    %v560 = vmul.f32 1.0, %v559
    %v561 = vxor.u32 %v551, 2147483648
    %v562 = vmul.f32 %v561, 1.442695
    %v563 = vpow.pop %v562
    %v564 = vadd.f32 %v563, 1.0
    %v565 = vrcp.pop %v564
    %v566 = vmul.f32 1.0, %v565
    %v567 = vld [vmem:[#allocation8] sm:$0xf]
    %v568 = vld [vmem:[#allocation8 + $0x4] sm:$0xf]
    %v569 = vld [vmem:[#allocation8 + $0x8] sm:$0xf]
    %v570 = vld [vmem:[#allocation8 + $0xc] sm:$0xf]
    %v571 = vld [vmem:[#allocation8 + $0x10] sm:$0xf]
    %v572 = vld [vmem:[#allocation8 + $0x14] sm:$0xf]
    %v573 = vld [vmem:[#allocation8 + $0x18] sm:$0xf]
    %v574 = vld [vmem:[#allocation8 + $0x1c] sm:$0xf]
    %v575 = vld [vmem:[#allocation8 + $0x20] sm:$0xf]
    %v576 = vld [vmem:[#allocation8 + $0x24] sm:$0xf]
    %v577 = vld [vmem:[#allocation8 + $0x28] sm:$0xf]
    %v578 = vld [vmem:[#allocation8 + $0x2c] sm:$0xf]
    %v579 = vld [vmem:[#allocation8 + $0x30] sm:$0xf]
    %v580 = vld [vmem:[#allocation8 + $0x34] sm:$0xf]
    %v581 = vld [vmem:[#allocation8 + $0x38] sm:$0xf]
    %v582 = vld [vmem:[#allocation8 + $0x3c] sm:$0xf]
    %v583 = vld [vmem:[%s7] sm:$0x1]
    %v585 = vlaneseq
    %v586 = vshrl.u32 %v585, 7
    %v587 = vsub.s32 0, %v586
    %v588 = vrot.slane %v583, %v587
    %v606 = vunpack.c.l.b16 %v567
    %v607 = vunpack.c.l.b16 %v568
    %v608 = vunpack.c.l.b16 %v569
    %v609 = vunpack.c.l.b16 %v570
    %v610 = vunpack.c.l.b16 %v571
    %v611 = vunpack.c.l.b16 %v572
    %v612 = vunpack.c.l.b16 %v573
    %v613 = vunpack.c.l.b16 %v574
    %v614 = vunpack.c.l.b16 %v575
    %v615 = vunpack.c.l.b16 %v576
    %v616 = vunpack.c.l.b16 %v577
    %v617 = vunpack.c.l.b16 %v578
    %v618 = vunpack.c.l.b16 %v579
    %v619 = vunpack.c.l.b16 %v580
    %v620 = vunpack.c.l.b16 %v581
    %v621 = vunpack.c.l.b16 %v582
    %v622 = vpack.c.b16 %v607, %v606
    %v623 = vpack.c.b16 %v609, %v608
    %v624 = vpack.c.b16 %v611, %v610
    %v625 = vpack.c.b16 %v613, %v612
    %v626 = vpack.c.b16 %v615, %v614
    %v627 = vpack.c.b16 %v617, %v616
    %v628 = vpack.c.b16 %v619, %v618
    %v629 = vpack.c.b16 %v621, %v620
    %638 = vmatprep.subr.bf16.mxu0 0
    %639 = vmatpush1.bf16.msra.mxu0 %v629
    %640 = vmatprep.subr.bf16.mxu0 0
    %641 = vmatpush1.bf16.msra.mxu0 %v628
    %642 = vmatprep.subr.bf16.mxu0 0
    %643 = vmatpush1.bf16.msra.mxu0 %v627
    %644 = vmatprep.subr.bf16.mxu0 0
    %645 = vmatpush1.bf16.msra.mxu0 %v626
    %646 = vmatprep.subr.bf16.mxu0 0
    %647 = vmatpush1.bf16.msra.mxu0 %v625
    %648 = vmatprep.subr.bf16.mxu0 0
    %649 = vmatpush1.bf16.msra.mxu0 %v624
    %650 = vmatprep.subr.bf16.mxu0 0
    %651 = vmatpush1.bf16.msra.mxu0 %v623
    %652 = vmatprep.subr.bf16.mxu0 0
    %653 = vmatpush1.bf16.msra.mxu0 %v622
    %654 = vmatprep.subr.bf16.mxu0 0
    %655 = vmatpush2.bf16.msra.mxu0 0
    %656 = vmatprep.subr.bf16.mxu0 0
    %657 = vmatpush2.bf16.msra.mxu0 0
    %658 = vmatprep.subr.bf16.mxu0 0
    %659 = vmatpush2.bf16.msra.mxu0 0
    %660 = vmatprep.subr.bf16.mxu0 0
    %661 = vmatpush2.bf16.msra.mxu0 0
    %662 = vmatprep.subr.bf16.mxu0 0
    %663 = vmatpush2.bf16.msra.mxu0 0
    %664 = vmatprep.subr.bf16.mxu0 0
    %665 = vmatpush2.bf16.msra.mxu0 0
    %666 = vmatprep.subr.bf16.mxu0 0
    %667 = vmatpush2.bf16.msra.mxu0 0
    %668 = vmatprep.subr.bf16.mxu0 0
    %669 = vmatpush2.bf16.msra.mxu0 0
    %670 = vmatprep.mubr.bf16.mxu0 0
    %671 = vmatmul.mubr.bf16.gmra.mxu0 %v307
    %v672 = vpop.f32.mrf.mxu0
    %v673 = vadd.f32 %v588, %v672
    %v674 = vpop.f32.mrf.mxu0
    %v675 = vpop.f32.mrf.mxu0
    %v676 = vpop.f32.mrf.mxu0
    %677 = vdwg.mxu0
    %v678 = vld [vmem:[#allocation9] sm:$0xf]
    %v679 = vld [vmem:[#allocation9 + $0x4] sm:$0xf]
    %v680 = vld [vmem:[#allocation9 + $0x8] sm:$0xf]
    %v681 = vld [vmem:[#allocation9 + $0xc] sm:$0xf]
    %v682 = vld [vmem:[#allocation9 + $0x10] sm:$0xf]
    %v683 = vld [vmem:[#allocation9 + $0x14] sm:$0xf]
    %v684 = vld [vmem:[#allocation9 + $0x18] sm:$0xf]
    %v685 = vld [vmem:[#allocation9 + $0x1c] sm:$0xf]
    %v686 = vld [vmem:[#allocation9 + $0x20] sm:$0xf]
    %v687 = vld [vmem:[#allocation9 + $0x24] sm:$0xf]
    %v688 = vld [vmem:[#allocation9 + $0x28] sm:$0xf]
    %v689 = vld [vmem:[#allocation9 + $0x2c] sm:$0xf]
    %v690 = vld [vmem:[#allocation9 + $0x30] sm:$0xf]
    %v691 = vld [vmem:[#allocation9 + $0x34] sm:$0xf]
    %v692 = vld [vmem:[#allocation9 + $0x38] sm:$0xf]
    %v693 = vld [vmem:[#allocation9 + $0x3c] sm:$0xf]
    %v694 = vld [vmem:[%s8] sm:$0x1]
    %v696 = vlaneseq
    %v697 = vshrl.u32 %v696, 7
    %v698 = vsub.s32 0, %v697
    %v699 = vrot.slane %v694, %v698
    %v717 = vunpack.c.l.b16 %v678
    %v718 = vunpack.c.l.b16 %v679
    %v719 = vunpack.c.l.b16 %v680
    %v720 = vunpack.c.l.b16 %v681
    %v721 = vunpack.c.l.b16 %v682
    %v722 = vunpack.c.l.b16 %v683
    %v723 = vunpack.c.l.b16 %v684
    %v724 = vunpack.c.l.b16 %v685
    %v725 = vunpack.c.l.b16 %v686
    %v726 = vunpack.c.l.b16 %v687
    %v727 = vunpack.c.l.b16 %v688
    %v728 = vunpack.c.l.b16 %v689
    %v729 = vunpack.c.l.b16 %v690
    %v730 = vunpack.c.l.b16 %v691
    %v731 = vunpack.c.l.b16 %v692
    %v732 = vunpack.c.l.b16 %v693
    %v733 = vpack.c.b16 %v718, %v717
    %v734 = vpack.c.b16 %v720, %v719
    %v735 = vpack.c.b16 %v722, %v721
    %v736 = vpack.c.b16 %v724, %v723
    %v737 = vpack.c.b16 %v726, %v725
    %v738 = vpack.c.b16 %v728, %v727
    %v739 = vpack.c.b16 %v730, %v729
    %v740 = vpack.c.b16 %v732, %v731
    %749 = vmatprep.subr.bf16.mxu0 0
    %750 = vmatpush1.bf16.msra.mxu0 %v740
    %751 = vmatprep.subr.bf16.mxu0 0
    %752 = vmatpush1.bf16.msra.mxu0 %v739
    %753 = vmatprep.subr.bf16.mxu0 0
    %754 = vmatpush1.bf16.msra.mxu0 %v738
    %755 = vmatprep.subr.bf16.mxu0 0
    %756 = vmatpush1.bf16.msra.mxu0 %v737
    %757 = vmatprep.subr.bf16.mxu0 0
    %758 = vmatpush1.bf16.msra.mxu0 %v736
    %759 = vmatprep.subr.bf16.mxu0 0
    %760 = vmatpush1.bf16.msra.mxu0 %v735
    %761 = vmatprep.subr.bf16.mxu0 0
    %762 = vmatpush1.bf16.msra.mxu0 %v734
    %763 = vmatprep.subr.bf16.mxu0 0
    %764 = vmatpush1.bf16.msra.mxu0 %v733
    %765 = vmatprep.subr.bf16.mxu0 0
    %766 = vmatpush2.bf16.msra.mxu0 0
    %767 = vmatprep.subr.bf16.mxu0 0
    %768 = vmatpush2.bf16.msra.mxu0 0
    %769 = vmatprep.subr.bf16.mxu0 0
    %770 = vmatpush2.bf16.msra.mxu0 0
    %771 = vmatprep.subr.bf16.mxu0 0
    %772 = vmatpush2.bf16.msra.mxu0 0
    %773 = vmatprep.subr.bf16.mxu0 0
    %774 = vmatpush2.bf16.msra.mxu0 0
    %775 = vmatprep.subr.bf16.mxu0 0
    %776 = vmatpush2.bf16.msra.mxu0 0
    %777 = vmatprep.subr.bf16.mxu0 0
    %778 = vmatpush2.bf16.msra.mxu0 0
    %779 = vmatprep.subr.bf16.mxu0 0
    %780 = vmatpush2.bf16.msra.mxu0 0
    %781 = vmatprep.mubr.bf16.mxu0 0
    %782 = vmatmul.mubr.bf16.gmra.mxu0 %v309
    %v783 = vpop.f32.mrf.mxu0
    %v784 = vadd.f32 %v699, %v783
    %v785 = vpop.f32.mrf.mxu0
    %v786 = vpop.f32.mrf.mxu0
    %v787 = vpop.f32.mrf.mxu0
    %788 = vdwg.mxu0
    %v789 = vmul.f32 %v560, %v784
    %v790 = vadd.f32 %v673, %v789
    %v791 = vtanh.pop %v790
    %v792 = vsub.f32 1.0, %v566
    %v793 = vmul.f32 %v792, %v791
    %v794 = vmul.f32 %v566, %v308
    %v795 = vadd.f32 %v793, %v794
    %796 = vst [vmem:[#allocation2] sm:$0xff] %v795
    %v797 = vpack.c.bf16 %v795, %v795
    %s798 = scalar_lea.vmem [#allocation2], 8
    %v799 = vld [vmem:[%s798] sm:$0xff]
    %v800 = vpack.c.bf16 %v799, %v799
    %s801 = scalar_lea.vmem [#allocation6], 256
    %v802 = vld [vmem:[%s801] sm:$0xff]
    %v803 = vld [vmem:[%s801 + $0x8] sm:$0xff]
    %v804 = vld [vmem:[%s801 + $0x10] sm:$0xff]
    %v805 = vld [vmem:[%s801 + $0x18] sm:$0xff]
    %v806 = vld [vmem:[%s801 + $0x20] sm:$0xff]
    %v807 = vld [vmem:[%s801 + $0x28] sm:$0xff]
    %v808 = vld [vmem:[%s801 + $0x30] sm:$0xff]
    %v809 = vld [vmem:[%s801 + $0x38] sm:$0xff]
    %v810 = vld [vmem:[%s801 + $0x40] sm:$0xff]
    %v811 = vld [vmem:[%s801 + $0x48] sm:$0xff]
    %v812 = vld [vmem:[%s801 + $0x50] sm:$0xff]
    %v813 = vld [vmem:[%s801 + $0x58] sm:$0xff]
    %v814 = vld [vmem:[%s801 + $0x60] sm:$0xff]
    %v815 = vld [vmem:[%s801 + $0x68] sm:$0xff]
    %v816 = vld [vmem:[%s801 + $0x70] sm:$0xff]
    %v817 = vld [vmem:[%s801 + $0x78] sm:$0xff]
    %v818 = vld [vmem:[%s801 + $0x80] sm:$0xff]
    %v819 = vld [vmem:[%s801 + $0x88] sm:$0xff]
    %v820 = vld [vmem:[%s801 + $0x90] sm:$0xff]
    %v821 = vld [vmem:[%s801 + $0x98] sm:$0xff]
    %v822 = vld [vmem:[%s801 + $0xa0] sm:$0xff]
    %v823 = vld [vmem:[%s801 + $0xa8] sm:$0xff]
    %v824 = vld [vmem:[%s801 + $0xb0] sm:$0xff]
    %v825 = vld [vmem:[%s801 + $0xb8] sm:$0xff]
    %v826 = vld [vmem:[%s801 + $0xc0] sm:$0xff]
    %v827 = vld [vmem:[%s801 + $0xc8] sm:$0xff]
    %v828 = vld [vmem:[%s801 + $0xd0] sm:$0xff]
    %v829 = vld [vmem:[%s801 + $0xd8] sm:$0xff]
    %v830 = vld [vmem:[%s801 + $0xe0] sm:$0xff]
    %v831 = vld [vmem:[%s801 + $0xe8] sm:$0xff]
    %v832 = vld [vmem:[%s801 + $0xf0] sm:$0xff]
    %v833 = vld [vmem:[%s801 + $0xf8] sm:$0xff]
    %s834 = scalar_lea.vmem %s6, 2
    %v835 = vld [vmem:[%s834] sm:$0x3]
    %v837 = vlaneseq
    %v838 = vshrl.u32 %v837, 7
    %v839 = vsub.s32 0, %v838
    %v840 = vrot.slane %v835, %v839
    %v841 = vlaneseq
    %v842 = vshrl.u32 %v841, 7
    %v843 = vsub.s32 1, %v842
    %v844 = vrot.slane %v835, %v843
    %v879 = vunpack.c.l.b16 %v802
    %v880 = vunpack.c.h.b16 %v802
    %v881 = vunpack.c.l.b16 %v803
    %v882 = vunpack.c.h.b16 %v803
    %v883 = vunpack.c.l.b16 %v804
    %v884 = vunpack.c.h.b16 %v804
    %v885 = vunpack.c.l.b16 %v805
    %v886 = vunpack.c.h.b16 %v805
    %v887 = vunpack.c.l.b16 %v806
    %v888 = vunpack.c.h.b16 %v806
    %v889 = vunpack.c.l.b16 %v807
    %v890 = vunpack.c.h.b16 %v807
    %v891 = vunpack.c.l.b16 %v808
    %v892 = vunpack.c.h.b16 %v808
    %v893 = vunpack.c.l.b16 %v809
    %v894 = vunpack.c.h.b16 %v809
    %v895 = vunpack.c.l.b16 %v810
    %v896 = vunpack.c.h.b16 %v810
    %v897 = vunpack.c.l.b16 %v811
    %v898 = vunpack.c.h.b16 %v811
    %v899 = vunpack.c.l.b16 %v812
    %v900 = vunpack.c.h.b16 %v812
    %v901 = vunpack.c.l.b16 %v813
    %v902 = vunpack.c.h.b16 %v813
    %v903 = vunpack.c.l.b16 %v814
    %v904 = vunpack.c.h.b16 %v814
    %v905 = vunpack.c.l.b16 %v815
    %v906 = vunpack.c.h.b16 %v815
    %v907 = vunpack.c.l.b16 %v816
    %v908 = vunpack.c.h.b16 %v816
    %v909 = vunpack.c.l.b16 %v817
    %v910 = vunpack.c.h.b16 %v817
    %v911 = vunpack.c.l.b16 %v818
    %v912 = vunpack.c.h.b16 %v818
    %v913 = vunpack.c.l.b16 %v819
    %v914 = vunpack.c.h.b16 %v819
    %v915 = vunpack.c.l.b16 %v820
    %v916 = vunpack.c.h.b16 %v820
    %v917 = vunpack.c.l.b16 %v821
    %v918 = vunpack.c.h.b16 %v821
    %v919 = vunpack.c.l.b16 %v822
    %v920 = vunpack.c.h.b16 %v822
    %v921 = vunpack.c.l.b16 %v823
    %v922 = vunpack.c.h.b16 %v823
    %v923 = vunpack.c.l.b16 %v824
    %v924 = vunpack.c.h.b16 %v824
    %v925 = vunpack.c.l.b16 %v825
    %v926 = vunpack.c.h.b16 %v825
    %v927 = vunpack.c.l.b16 %v826
    %v928 = vunpack.c.h.b16 %v826
    %v929 = vunpack.c.l.b16 %v827
    %v930 = vunpack.c.h.b16 %v827
    %v931 = vunpack.c.l.b16 %v828
    %v932 = vunpack.c.h.b16 %v828
    %v933 = vunpack.c.l.b16 %v829
    %v934 = vunpack.c.h.b16 %v829
    %v935 = vunpack.c.l.b16 %v830
    %v936 = vunpack.c.h.b16 %v830
    %v937 = vunpack.c.l.b16 %v831
    %v938 = vunpack.c.h.b16 %v831
    %v939 = vunpack.c.l.b16 %v832
    %v940 = vunpack.c.h.b16 %v832
    %v941 = vunpack.c.l.b16 %v833
    %v942 = vunpack.c.h.b16 %v833
    %v943 = vpack.c.b16 %v881, %v879
    %v944 = vpack.c.b16 %v882, %v880
    %v945 = vpack.c.b16 %v885, %v883
    %v946 = vpack.c.b16 %v886, %v884
    %v947 = vpack.c.b16 %v889, %v887
    %v948 = vpack.c.b16 %v890, %v888
    %v949 = vpack.c.b16 %v893, %v891
    %v950 = vpack.c.b16 %v894, %v892
    %v951 = vpack.c.b16 %v897, %v895
    %v952 = vpack.c.b16 %v898, %v896
    %v953 = vpack.c.b16 %v901, %v899
    %v954 = vpack.c.b16 %v902, %v900
    %v955 = vpack.c.b16 %v905, %v903
    %v956 = vpack.c.b16 %v906, %v904
    %v957 = vpack.c.b16 %v909, %v907
    %v958 = vpack.c.b16 %v910, %v908
    %v959 = vpack.c.b16 %v913, %v911
    %v960 = vpack.c.b16 %v914, %v912
    %v961 = vpack.c.b16 %v917, %v915
    %v962 = vpack.c.b16 %v918, %v916
    %v963 = vpack.c.b16 %v921, %v919
    %v964 = vpack.c.b16 %v922, %v920
    %v965 = vpack.c.b16 %v925, %v923
    %v966 = vpack.c.b16 %v926, %v924
    %v967 = vpack.c.b16 %v929, %v927
    %v968 = vpack.c.b16 %v930, %v928
    %v969 = vpack.c.b16 %v933, %v931
    %v970 = vpack.c.b16 %v934, %v932
    %v971 = vpack.c.b16 %v937, %v935
    %v972 = vpack.c.b16 %v938, %v936
    %v973 = vpack.c.b16 %v941, %v939
    %v974 = vpack.c.b16 %v942, %v940
    %1007 = vmatprep.subr.bf16.mxu0 %v958
    %1008 = vmatpush1.bf16.msra.mxu0 %v957
    %1009 = vmatprep.subr.bf16.mxu0 %v956
    %1010 = vmatpush1.bf16.msra.mxu0 %v955
    %1011 = vmatprep.subr.bf16.mxu0 %v954
    %1012 = vmatpush1.bf16.msra.mxu0 %v953
    %1013 = vmatprep.subr.bf16.mxu0 %v952
    %1014 = vmatpush1.bf16.msra.mxu0 %v951
    %1015 = vmatprep.subr.bf16.mxu0 %v950
    %1016 = vmatpush1.bf16.msra.mxu0 %v949
    %1017 = vmatprep.subr.bf16.mxu0 %v948
    %1018 = vmatpush1.bf16.msra.mxu0 %v947
    %1019 = vmatprep.subr.bf16.mxu0 %v946
    %1020 = vmatpush1.bf16.msra.mxu0 %v945
    %1021 = vmatprep.subr.bf16.mxu0 %v944
    %1022 = vmatpush1.bf16.msra.mxu0 %v943
    %1023 = vmatprep.subr.bf16.mxu0 %v974
    %1024 = vmatpush2.bf16.msra.mxu0 %v973
    %1025 = vmatprep.subr.bf16.mxu0 %v972
    %1026 = vmatpush2.bf16.msra.mxu0 %v971
    %1027 = vmatprep.subr.bf16.mxu0 %v970
    %1028 = vmatpush2.bf16.msra.mxu0 %v969
    %1029 = vmatprep.subr.bf16.mxu0 %v968
    %1030 = vmatpush2.bf16.msra.mxu0 %v967
    %1031 = vmatprep.subr.bf16.mxu0 %v966
    %1032 = vmatpush2.bf16.msra.mxu0 %v965
    %1033 = vmatprep.subr.bf16.mxu0 %v964
    %1034 = vmatpush2.bf16.msra.mxu0 %v963
    %1035 = vmatprep.subr.bf16.mxu0 %v962
    %1036 = vmatpush2.bf16.msra.mxu0 %v961
    %1037 = vmatprep.subr.bf16.mxu0 %v960
    %1038 = vmatpush2.bf16.msra.mxu0 %v959
    %1039 = vmatprep.mubr.bf16.mxu0 %v800
    %1040 = vmatmul.mubr.bf16.gmra.mxu0 %v797
    %v1041 = vpop.f32.mrf.mxu0
    %v1042 = vadd.f32 %v840, %v1041
    %v1043 = vpop.f32.mrf.mxu0
    %v1044 = vadd.f32 %v844, %v1043
    %v1045 = vpop.f32.mrf.mxu0
    %v1046 = vpop.f32.mrf.mxu0
    %1047 = vdwg.mxu0
    %v1048 = vxor.u32 %v1042, 2147483648
    %v1049 = vmul.f32 %v1048, 1.442695
    %v1050 = vpow.pop %v1049
    %v1051 = vadd.f32 %v1050, 1.0
    %v1052 = vrcp.pop %v1051
    %v1053 = vmul.f32 1.0, %v1052
    %v1054 = vxor.u32 %v1044, 2147483648
    %v1055 = vmul.f32 %v1054, 1.442695
    %v1056 = vpow.pop %v1055
    %v1057 = vadd.f32 %v1056, 1.0
    %v1058 = vrcp.pop %v1057
    %v1059 = vmul.f32 1.0, %v1058
    %s1060 = scalar_lea.vmem [#allocation8], 64
    %v1061 = vld [vmem:[%s1060] sm:$0xf]
    %v1062 = vld [vmem:[%s1060 + $0x4] sm:$0xf]
    %v1063 = vld [vmem:[%s1060 + $0x8] sm:$0xf]
    %v1064 = vld [vmem:[%s1060 + $0xc] sm:$0xf]
    %v1065 = vld [vmem:[%s1060 + $0x10] sm:$0xf]
    %v1066 = vld [vmem:[%s1060 + $0x14] sm:$0xf]
    %v1067 = vld [vmem:[%s1060 + $0x18] sm:$0xf]
    %v1068 = vld [vmem:[%s1060 + $0x1c] sm:$0xf]
    %v1069 = vld [vmem:[%s1060 + $0x20] sm:$0xf]
    %v1070 = vld [vmem:[%s1060 + $0x24] sm:$0xf]
    %v1071 = vld [vmem:[%s1060 + $0x28] sm:$0xf]
    %v1072 = vld [vmem:[%s1060 + $0x2c] sm:$0xf]
    %v1073 = vld [vmem:[%s1060 + $0x30] sm:$0xf]
    %v1074 = vld [vmem:[%s1060 + $0x34] sm:$0xf]
    %v1075 = vld [vmem:[%s1060 + $0x38] sm:$0xf]
    %v1076 = vld [vmem:[%s1060 + $0x3c] sm:$0xf]
    %s1077 = scalar_lea.vmem %s7, 1
    %v1078 = vld [vmem:[%s1077] sm:$0x1]
    %v1080 = vlaneseq
    %v1081 = vshrl.u32 %v1080, 7
    %v1082 = vsub.s32 0, %v1081
    %v1083 = vrot.slane %v1078, %v1082
    %v1101 = vunpack.c.l.b16 %v1061
    %v1102 = vunpack.c.l.b16 %v1062
    %v1103 = vunpack.c.l.b16 %v1063
    %v1104 = vunpack.c.l.b16 %v1064
    %v1105 = vunpack.c.l.b16 %v1065
    %v1106 = vunpack.c.l.b16 %v1066
    %v1107 = vunpack.c.l.b16 %v1067
    %v1108 = vunpack.c.l.b16 %v1068
    %v1109 = vunpack.c.l.b16 %v1069
    %v1110 = vunpack.c.l.b16 %v1070
    %v1111 = vunpack.c.l.b16 %v1071
    %v1112 = vunpack.c.l.b16 %v1072
    %v1113 = vunpack.c.l.b16 %v1073
    %v1114 = vunpack.c.l.b16 %v1074
    %v1115 = vunpack.c.l.b16 %v1075
    %v1116 = vunpack.c.l.b16 %v1076
    %v1117 = vpack.c.b16 %v1102, %v1101
    %v1118 = vpack.c.b16 %v1104, %v1103
    %v1119 = vpack.c.b16 %v1106, %v1105
    %v1120 = vpack.c.b16 %v1108, %v1107
    %v1121 = vpack.c.b16 %v1110, %v1109
    %v1122 = vpack.c.b16 %v1112, %v1111
    %v1123 = vpack.c.b16 %v1114, %v1113
    %v1124 = vpack.c.b16 %v1116, %v1115
    %1133 = vmatprep.subr.bf16.mxu0 0
    %1134 = vmatpush1.bf16.msra.mxu0 %v1124
    %1135 = vmatprep.subr.bf16.mxu0 0
    %1136 = vmatpush1.bf16.msra.mxu0 %v1123
    %1137 = vmatprep.subr.bf16.mxu0 0
    %1138 = vmatpush1.bf16.msra.mxu0 %v1122
    %1139 = vmatprep.subr.bf16.mxu0 0
    %1140 = vmatpush1.bf16.msra.mxu0 %v1121
    %1141 = vmatprep.subr.bf16.mxu0 0
    %1142 = vmatpush1.bf16.msra.mxu0 %v1120
    %1143 = vmatprep.subr.bf16.mxu0 0
    %1144 = vmatpush1.bf16.msra.mxu0 %v1119
    %1145 = vmatprep.subr.bf16.mxu0 0
    %1146 = vmatpush1.bf16.msra.mxu0 %v1118
    %1147 = vmatprep.subr.bf16.mxu0 0
    %1148 = vmatpush1.bf16.msra.mxu0 %v1117
    %1149 = vmatprep.subr.bf16.mxu0 0
    %1150 = vmatpush2.bf16.msra.mxu0 0
    %1151 = vmatprep.subr.bf16.mxu0 0
    %1152 = vmatpush2.bf16.msra.mxu0 0
    %1153 = vmatprep.subr.bf16.mxu0 0
    %1154 = vmatpush2.bf16.msra.mxu0 0
    %1155 = vmatprep.subr.bf16.mxu0 0
    %1156 = vmatpush2.bf16.msra.mxu0 0
    %1157 = vmatprep.subr.bf16.mxu0 0
    %1158 = vmatpush2.bf16.msra.mxu0 0
    %1159 = vmatprep.subr.bf16.mxu0 0
    %1160 = vmatpush2.bf16.msra.mxu0 0
    %1161 = vmatprep.subr.bf16.mxu0 0
    %1162 = vmatpush2.bf16.msra.mxu0 0
    %1163 = vmatprep.subr.bf16.mxu0 0
    %1164 = vmatpush2.bf16.msra.mxu0 0
    %1165 = vmatprep.mubr.bf16.mxu0 0
    %1166 = vmatmul.mubr.bf16.gmra.mxu0 %v797
    %v1167 = vpop.f32.mrf.mxu0
    %v1168 = vadd.f32 %v1083, %v1167
    %v1169 = vpop.f32.mrf.mxu0
    %v1170 = vpop.f32.mrf.mxu0
    %v1171 = vpop.f32.mrf.mxu0
    %1172 = vdwg.mxu0
    %s1173 = scalar_lea.vmem [#allocation9], 64
    %v1174 = vld [vmem:[%s1173] sm:$0xf]
    %v1175 = vld [vmem:[%s1173 + $0x4] sm:$0xf]
    %v1176 = vld [vmem:[%s1173 + $0x8] sm:$0xf]
    %v1177 = vld [vmem:[%s1173 + $0xc] sm:$0xf]
    %v1178 = vld [vmem:[%s1173 + $0x10] sm:$0xf]
    %v1179 = vld [vmem:[%s1173 + $0x14] sm:$0xf]
    %v1180 = vld [vmem:[%s1173 + $0x18] sm:$0xf]
    %v1181 = vld [vmem:[%s1173 + $0x1c] sm:$0xf]
    %v1182 = vld [vmem:[%s1173 + $0x20] sm:$0xf]
    %v1183 = vld [vmem:[%s1173 + $0x24] sm:$0xf]
    %v1184 = vld [vmem:[%s1173 + $0x28] sm:$0xf]
    %v1185 = vld [vmem:[%s1173 + $0x2c] sm:$0xf]
    %v1186 = vld [vmem:[%s1173 + $0x30] sm:$0xf]
    %v1187 = vld [vmem:[%s1173 + $0x34] sm:$0xf]
    %v1188 = vld [vmem:[%s1173 + $0x38] sm:$0xf]
    %v1189 = vld [vmem:[%s1173 + $0x3c] sm:$0xf]
    %s1190 = scalar_lea.vmem %s8, 1
    %v1191 = vld [vmem:[%s1190] sm:$0x1]
    %v1193 = vlaneseq
    %v1194 = vshrl.u32 %v1193, 7
    %v1195 = vsub.s32 0, %v1194
    %v1196 = vrot.slane %v1191, %v1195
    %v1214 = vunpack.c.l.b16 %v1174
    %v1215 = vunpack.c.l.b16 %v1175
    %v1216 = vunpack.c.l.b16 %v1176
    %v1217 = vunpack.c.l.b16 %v1177
    %v1218 = vunpack.c.l.b16 %v1178
    %v1219 = vunpack.c.l.b16 %v1179
    %v1220 = vunpack.c.l.b16 %v1180
    %v1221 = vunpack.c.l.b16 %v1181
    %v1222 = vunpack.c.l.b16 %v1182
    %v1223 = vunpack.c.l.b16 %v1183
    %v1224 = vunpack.c.l.b16 %v1184
    %v1225 = vunpack.c.l.b16 %v1185
    %v1226 = vunpack.c.l.b16 %v1186
    %v1227 = vunpack.c.l.b16 %v1187
    %v1228 = vunpack.c.l.b16 %v1188
    %v1229 = vunpack.c.l.b16 %v1189
    %v1230 = vpack.c.b16 %v1215, %v1214
    %v1231 = vpack.c.b16 %v1217, %v1216
    %v1232 = vpack.c.b16 %v1219, %v1218
    %v1233 = vpack.c.b16 %v1221, %v1220
    %v1234 = vpack.c.b16 %v1223, %v1222
    %v1235 = vpack.c.b16 %v1225, %v1224
    %v1236 = vpack.c.b16 %v1227, %v1226
    %v1237 = vpack.c.b16 %v1229, %v1228
    %1246 = vmatprep.subr.bf16.mxu0 0
    %1247 = vmatpush1.bf16.msra.mxu0 %v1237
    %1248 = vmatprep.subr.bf16.mxu0 0
    %1249 = vmatpush1.bf16.msra.mxu0 %v1236
    %1250 = vmatprep.subr.bf16.mxu0 0
    %1251 = vmatpush1.bf16.msra.mxu0 %v1235
    %1252 = vmatprep.subr.bf16.mxu0 0
    %1253 = vmatpush1.bf16.msra.mxu0 %v1234
    %1254 = vmatprep.subr.bf16.mxu0 0
    %1255 = vmatpush1.bf16.msra.mxu0 %v1233
    %1256 = vmatprep.subr.bf16.mxu0 0
    %1257 = vmatpush1.bf16.msra.mxu0 %v1232
    %1258 = vmatprep.subr.bf16.mxu0 0
    %1259 = vmatpush1.bf16.msra.mxu0 %v1231
    %1260 = vmatprep.subr.bf16.mxu0 0
    %1261 = vmatpush1.bf16.msra.mxu0 %v1230
    %1262 = vmatprep.subr.bf16.mxu0 0
    %1263 = vmatpush2.bf16.msra.mxu0 0
    %1264 = vmatprep.subr.bf16.mxu0 0
    %1265 = vmatpush2.bf16.msra.mxu0 0
    %1266 = vmatprep.subr.bf16.mxu0 0
    %1267 = vmatpush2.bf16.msra.mxu0 0
    %1268 = vmatprep.subr.bf16.mxu0 0
    %1269 = vmatpush2.bf16.msra.mxu0 0
    %1270 = vmatprep.subr.bf16.mxu0 0
    %1271 = vmatpush2.bf16.msra.mxu0 0
    %1272 = vmatprep.subr.bf16.mxu0 0
    %1273 = vmatpush2.bf16.msra.mxu0 0
    %1274 = vmatprep.subr.bf16.mxu0 0
    %1275 = vmatpush2.bf16.msra.mxu0 0
    %1276 = vmatprep.subr.bf16.mxu0 0
    %1277 = vmatpush2.bf16.msra.mxu0 0
    %1278 = vmatprep.mubr.bf16.mxu0 0
    %1279 = vmatmul.mubr.bf16.gmra.mxu0 %v800
    %v1280 = vpop.f32.mrf.mxu0
    %v1281 = vadd.f32 %v1196, %v1280
    %v1282 = vpop.f32.mrf.mxu0
    %v1283 = vpop.f32.mrf.mxu0
    %v1284 = vpop.f32.mrf.mxu0
    %1285 = vdwg.mxu0
    %v1286 = vmul.f32 %v1053, %v1281
    %v1287 = vadd.f32 %v1168, %v1286
    %v1288 = vtanh.pop %v1287
    %v1289 = vsub.f32 1.0, %v1059
    %v1290 = vmul.f32 %v1289, %v1288
    %v1291 = vmul.f32 %v1059, %v799
    %v1292 = vadd.f32 %v1290, %v1291
    %1293 = vst [vmem:[%s798] sm:$0xff] %v1292
    %v1294 = vpack.c.bf16 %v1292, %v1292
    %s1295 = scalar_lea.vmem [#allocation2], 16
    %v1296 = vld [vmem:[%s1295] sm:$0xff]
    %v1297 = vpack.c.bf16 %v1296, %v1296
    %s1298 = scalar_lea.vmem [#allocation6], 512
    %v1299 = vld [vmem:[%s1298] sm:$0xff]
    %v1300 = vld [vmem:[%s1298 + $0x8] sm:$0xff]
    %v1301 = vld [vmem:[%s1298 + $0x10] sm:$0xff]
    %v1302 = vld [vmem:[%s1298 + $0x18] sm:$0xff]
    %v1303 = vld [vmem:[%s1298 + $0x20] sm:$0xff]
    %v1304 = vld [vmem:[%s1298 + $0x28] sm:$0xff]
    %v1305 = vld [vmem:[%s1298 + $0x30] sm:$0xff]
    %v1306 = vld [vmem:[%s1298 + $0x38] sm:$0xff]
    %v1307 = vld [vmem:[%s1298 + $0x40] sm:$0xff]
    %v1308 = vld [vmem:[%s1298 + $0x48] sm:$0xff]
    %v1309 = vld [vmem:[%s1298 + $0x50] sm:$0xff]
    %v1310 = vld [vmem:[%s1298 + $0x58] sm:$0xff]
    %v1311 = vld [vmem:[%s1298 + $0x60] sm:$0xff]
    %v1312 = vld [vmem:[%s1298 + $0x68] sm:$0xff]
    %v1313 = vld [vmem:[%s1298 + $0x70] sm:$0xff]
    %v1314 = vld [vmem:[%s1298 + $0x78] sm:$0xff]
    %v1315 = vld [vmem:[%s1298 + $0x80] sm:$0xff]
    %v1316 = vld [vmem:[%s1298 + $0x88] sm:$0xff]
    %v1317 = vld [vmem:[%s1298 + $0x90] sm:$0xff]
    %v1318 = vld [vmem:[%s1298 + $0x98] sm:$0xff]
    %v1319 = vld [vmem:[%s1298 + $0xa0] sm:$0xff]
    %v1320 = vld [vmem:[%s1298 + $0xa8] sm:$0xff]
    %v1321 = vld [vmem:[%s1298 + $0xb0] sm:$0xff]
    %v1322 = vld [vmem:[%s1298 + $0xb8] sm:$0xff]
    %v1323 = vld [vmem:[%s1298 + $0xc0] sm:$0xff]
    %v1324 = vld [vmem:[%s1298 + $0xc8] sm:$0xff]
    %v1325 = vld [vmem:[%s1298 + $0xd0] sm:$0xff]
    %v1326 = vld [vmem:[%s1298 + $0xd8] sm:$0xff]
    %v1327 = vld [vmem:[%s1298 + $0xe0] sm:$0xff]
    %v1328 = vld [vmem:[%s1298 + $0xe8] sm:$0xff]
    %v1329 = vld [vmem:[%s1298 + $0xf0] sm:$0xff]
    %v1330 = vld [vmem:[%s1298 + $0xf8] sm:$0xff]
    %s1331 = scalar_lea.vmem %s6, 4
    %v1332 = vld [vmem:[%s1331] sm:$0x3]
    %v1334 = vlaneseq
    %v1335 = vshrl.u32 %v1334, 7
    %v1336 = vsub.s32 0, %v1335
    %v1337 = vrot.slane %v1332, %v1336
    %v1338 = vlaneseq
    %v1339 = vshrl.u32 %v1338, 7
    %v1340 = vsub.s32 1, %v1339
    %v1341 = vrot.slane %v1332, %v1340
    %v1376 = vunpack.c.l.b16 %v1299
    %v1377 = vunpack.c.h.b16 %v1299
    %v1378 = vunpack.c.l.b16 %v1300
    %v1379 = vunpack.c.h.b16 %v1300
    %v1380 = vunpack.c.l.b16 %v1301
    %v1381 = vunpack.c.h.b16 %v1301
    %v1382 = vunpack.c.l.b16 %v1302
    %v1383 = vunpack.c.h.b16 %v1302
    %v1384 = vunpack.c.l.b16 %v1303
    %v1385 = vunpack.c.h.b16 %v1303
    %v1386 = vunpack.c.l.b16 %v1304
    %v1387 = vunpack.c.h.b16 %v1304
    %v1388 = vunpack.c.l.b16 %v1305
    %v1389 = vunpack.c.h.b16 %v1305
    %v1390 = vunpack.c.l.b16 %v1306
    %v1391 = vunpack.c.h.b16 %v1306
    %v1392 = vunpack.c.l.b16 %v1307
    %v1393 = vunpack.c.h.b16 %v1307
    %v1394 = vunpack.c.l.b16 %v1308
    %v1395 = vunpack.c.h.b16 %v1308
    %v1396 = vunpack.c.l.b16 %v1309
    %v1397 = vunpack.c.h.b16 %v1309
    %v1398 = vunpack.c.l.b16 %v1310
    %v1399 = vunpack.c.h.b16 %v1310
    %v1400 = vunpack.c.l.b16 %v1311
    %v1401 = vunpack.c.h.b16 %v1311
    %v1402 = vunpack.c.l.b16 %v1312
    %v1403 = vunpack.c.h.b16 %v1312
    %v1404 = vunpack.c.l.b16 %v1313
    %v1405 = vunpack.c.h.b16 %v1313
    %v1406 = vunpack.c.l.b16 %v1314
    %v1407 = vunpack.c.h.b16 %v1314
    %v1408 = vunpack.c.l.b16 %v1315
    %v1409 = vunpack.c.h.b16 %v1315
    %v1410 = vunpack.c.l.b16 %v1316
    %v1411 = vunpack.c.h.b16 %v1316
    %v1412 = vunpack.c.l.b16 %v1317
    %v1413 = vunpack.c.h.b16 %v1317
    %v1414 = vunpack.c.l.b16 %v1318
    %v1415 = vunpack.c.h.b16 %v1318
    %v1416 = vunpack.c.l.b16 %v1319
    %v1417 = vunpack.c.h.b16 %v1319
    %v1418 = vunpack.c.l.b16 %v1320
    %v1419 = vunpack.c.h.b16 %v1320
    %v1420 = vunpack.c.l.b16 %v1321
    %v1421 = vunpack.c.h.b16 %v1321
    %v1422 = vunpack.c.l.b16 %v1322
    %v1423 = vunpack.c.h.b16 %v1322
    %v1424 = vunpack.c.l.b16 %v1323
    %v1425 = vunpack.c.h.b16 %v1323
    %v1426 = vunpack.c.l.b16 %v1324
    %v1427 = vunpack.c.h.b16 %v1324
    %v1428 = vunpack.c.l.b16 %v1325
    %v1429 = vunpack.c.h.b16 %v1325
    %v1430 = vunpack.c.l.b16 %v1326
    %v1431 = vunpack.c.h.b16 %v1326
    %v1432 = vunpack.c.l.b16 %v1327
    %v1433 = vunpack.c.h.b16 %v1327
    %v1434 = vunpack.c.l.b16 %v1328
    %v1435 = vunpack.c.h.b16 %v1328
    %v1436 = vunpack.c.l.b16 %v1329
    %v1437 = vunpack.c.h.b16 %v1329
    %v1438 = vunpack.c.l.b16 %v1330
    %v1439 = vunpack.c.h.b16 %v1330
    %v1440 = vpack.c.b16 %v1378, %v1376
    %v1441 = vpack.c.b16 %v1379, %v1377
    %v1442 = vpack.c.b16 %v1382, %v1380
    %v1443 = vpack.c.b16 %v1383, %v1381
    %v1444 = vpack.c.b16 %v1386, %v1384
    %v1445 = vpack.c.b16 %v1387, %v1385
    %v1446 = vpack.c.b16 %v1390, %v1388
    %v1447 = vpack.c.b16 %v1391, %v1389
    %v1448 = vpack.c.b16 %v1394, %v1392
    %v1449 = vpack.c.b16 %v1395, %v1393
    %v1450 = vpack.c.b16 %v1398, %v1396
    %v1451 = vpack.c.b16 %v1399, %v1397
    %v1452 = vpack.c.b16 %v1402, %v1400
    %v1453 = vpack.c.b16 %v1403, %v1401
    %v1454 = vpack.c.b16 %v1406, %v1404
    %v1455 = vpack.c.b16 %v1407, %v1405
    %v1456 = vpack.c.b16 %v1410, %v1408
    %v1457 = vpack.c.b16 %v1411, %v1409
    %v1458 = vpack.c.b16 %v1414, %v1412
    %v1459 = vpack.c.b16 %v1415, %v1413
    %v1460 = vpack.c.b16 %v1418, %v1416
    %v1461 = vpack.c.b16 %v1419, %v1417
    %v1462 = vpack.c.b16 %v1422, %v1420
    %v1463 = vpack.c.b16 %v1423, %v1421
    %v1464 = vpack.c.b16 %v1426, %v1424
    %v1465 = vpack.c.b16 %v1427, %v1425
    %v1466 = vpack.c.b16 %v1430, %v1428
    %v1467 = vpack.c.b16 %v1431, %v1429
    %v1468 = vpack.c.b16 %v1434, %v1432
    %v1469 = vpack.c.b16 %v1435, %v1433
    %v1470 = vpack.c.b16 %v1438, %v1436
    %v1471 = vpack.c.b16 %v1439, %v1437
    %1504 = vmatprep.subr.bf16.mxu0 %v1455
    %1505 = vmatpush1.bf16.msra.mxu0 %v1454
    %1506 = vmatprep.subr.bf16.mxu0 %v1453
    %1507 = vmatpush1.bf16.msra.mxu0 %v1452
    %1508 = vmatprep.subr.bf16.mxu0 %v1451
    %1509 = vmatpush1.bf16.msra.mxu0 %v1450
    %1510 = vmatprep.subr.bf16.mxu0 %v1449
    %1511 = vmatpush1.bf16.msra.mxu0 %v1448
    %1512 = vmatprep.subr.bf16.mxu0 %v1447
    %1513 = vmatpush1.bf16.msra.mxu0 %v1446
    %1514 = vmatprep.subr.bf16.mxu0 %v1445
    %1515 = vmatpush1.bf16.msra.mxu0 %v1444
    %1516 = vmatprep.subr.bf16.mxu0 %v1443
    %1517 = vmatpush1.bf16.msra.mxu0 %v1442
    %1518 = vmatprep.subr.bf16.mxu0 %v1441
    %1519 = vmatpush1.bf16.msra.mxu0 %v1440
    %1520 = vmatprep.subr.bf16.mxu0 %v1471
    %1521 = vmatpush2.bf16.msra.mxu0 %v1470
    %1522 = vmatprep.subr.bf16.mxu0 %v1469
    %1523 = vmatpush2.bf16.msra.mxu0 %v1468
    %1524 = vmatprep.subr.bf16.mxu0 %v1467
    %1525 = vmatpush2.bf16.msra.mxu0 %v1466
    %1526 = vmatprep.subr.bf16.mxu0 %v1465
    %1527 = vmatpush2.bf16.msra.mxu0 %v1464
    %1528 = vmatprep.subr.bf16.mxu0 %v1463
    %1529 = vmatpush2.bf16.msra.mxu0 %v1462
    %1530 = vmatprep.subr.bf16.mxu0 %v1461
    %1531 = vmatpush2.bf16.msra.mxu0 %v1460
    %1532 = vmatprep.subr.bf16.mxu0 %v1459
    %1533 = vmatpush2.bf16.msra.mxu0 %v1458
    %1534 = vmatprep.subr.bf16.mxu0 %v1457
    %1535 = vmatpush2.bf16.msra.mxu0 %v1456
    %1536 = vmatprep.mubr.bf16.mxu0 %v1297
    %1537 = vmatmul.mubr.bf16.gmra.mxu0 %v1294
    %v1538 = vpop.f32.mrf.mxu0
    %v1539 = vadd.f32 %v1337, %v1538
    %v1540 = vpop.f32.mrf.mxu0
    %v1541 = vadd.f32 %v1341, %v1540
    %v1542 = vpop.f32.mrf.mxu0
    %v1543 = vpop.f32.mrf.mxu0
    %1544 = vdwg.mxu0
    %v1545 = vxor.u32 %v1539, 2147483648
    %v1546 = vmul.f32 %v1545, 1.442695
    %v1547 = vpow.pop %v1546
    %v1548 = vadd.f32 %v1547, 1.0
    %v1549 = vrcp.pop %v1548
    %v1550 = vmul.f32 1.0, %v1549
    %v1551 = vxor.u32 %v1541, 2147483648
    %v1552 = vmul.f32 %v1551, 1.442695
    %v1553 = vpow.pop %v1552
    %v1554 = vadd.f32 %v1553, 1.0
    %v1555 = vrcp.pop %v1554
    %v1556 = vmul.f32 1.0, %v1555
    %s1557 = scalar_lea.vmem [#allocation8], 128
    %v1558 = vld [vmem:[%s1557] sm:$0xf]
    %v1559 = vld [vmem:[%s1557 + $0x4] sm:$0xf]
    %v1560 = vld [vmem:[%s1557 + $0x8] sm:$0xf]
    %v1561 = vld [vmem:[%s1557 + $0xc] sm:$0xf]
    %v1562 = vld [vmem:[%s1557 + $0x10] sm:$0xf]
    %v1563 = vld [vmem:[%s1557 + $0x14] sm:$0xf]
    %v1564 = vld [vmem:[%s1557 + $0x18] sm:$0xf]
    %v1565 = vld [vmem:[%s1557 + $0x1c] sm:$0xf]
    %v1566 = vld [vmem:[%s1557 + $0x20] sm:$0xf]
    %v1567 = vld [vmem:[%s1557 + $0x24] sm:$0xf]
    %v1568 = vld [vmem:[%s1557 + $0x28] sm:$0xf]
    %v1569 = vld [vmem:[%s1557 + $0x2c] sm:$0xf]
    %v1570 = vld [vmem:[%s1557 + $0x30] sm:$0xf]
    %v1571 = vld [vmem:[%s1557 + $0x34] sm:$0xf]
    %v1572 = vld [vmem:[%s1557 + $0x38] sm:$0xf]
    %v1573 = vld [vmem:[%s1557 + $0x3c] sm:$0xf]
    %s1574 = scalar_lea.vmem %s7, 2
    %v1575 = vld [vmem:[%s1574] sm:$0x1]
    %v1577 = vlaneseq
    %v1578 = vshrl.u32 %v1577, 7
    %v1579 = vsub.s32 0, %v1578
    %v1580 = vrot.slane %v1575, %v1579
    %v1598 = vunpack.c.l.b16 %v1558
    %v1599 = vunpack.c.l.b16 %v1559
    %v1600 = vunpack.c.l.b16 %v1560
    %v1601 = vunpack.c.l.b16 %v1561
    %v1602 = vunpack.c.l.b16 %v1562
    %v1603 = vunpack.c.l.b16 %v1563
    %v1604 = vunpack.c.l.b16 %v1564
    %v1605 = vunpack.c.l.b16 %v1565
    %v1606 = vunpack.c.l.b16 %v1566
    %v1607 = vunpack.c.l.b16 %v1567
    %v1608 = vunpack.c.l.b16 %v1568
    %v1609 = vunpack.c.l.b16 %v1569
    %v1610 = vunpack.c.l.b16 %v1570
    %v1611 = vunpack.c.l.b16 %v1571
    %v1612 = vunpack.c.l.b16 %v1572
    %v1613 = vunpack.c.l.b16 %v1573
    %v1614 = vpack.c.b16 %v1599, %v1598
    %v1615 = vpack.c.b16 %v1601, %v1600
    %v1616 = vpack.c.b16 %v1603, %v1602
    %v1617 = vpack.c.b16 %v1605, %v1604
    %v1618 = vpack.c.b16 %v1607, %v1606
    %v1619 = vpack.c.b16 %v1609, %v1608
    %v1620 = vpack.c.b16 %v1611, %v1610
    %v1621 = vpack.c.b16 %v1613, %v1612
    %1630 = vmatprep.subr.bf16.mxu0 0
    %1631 = vmatpush1.bf16.msra.mxu0 %v1621
    %1632 = vmatprep.subr.bf16.mxu0 0
    %1633 = vmatpush1.bf16.msra.mxu0 %v1620
    %1634 = vmatprep.subr.bf16.mxu0 0
    %1635 = vmatpush1.bf16.msra.mxu0 %v1619
    %1636 = vmatprep.subr.bf16.mxu0 0
    %1637 = vmatpush1.bf16.msra.mxu0 %v1618
    %1638 = vmatprep.subr.bf16.mxu0 0
    %1639 = vmatpush1.bf16.msra.mxu0 %v1617
    %1640 = vmatprep.subr.bf16.mxu0 0
    %1641 = vmatpush1.bf16.msra.mxu0 %v1616
    %1642 = vmatprep.subr.bf16.mxu0 0
    %1643 = vmatpush1.bf16.msra.mxu0 %v1615
    %1644 = vmatprep.subr.bf16.mxu0 0
    %1645 = vmatpush1.bf16.msra.mxu0 %v1614
    %1646 = vmatprep.subr.bf16.mxu0 0
    %1647 = vmatpush2.bf16.msra.mxu0 0
    %1648 = vmatprep.subr.bf16.mxu0 0
    %1649 = vmatpush2.bf16.msra.mxu0 0
    %1650 = vmatprep.subr.bf16.mxu0 0
    %1651 = vmatpush2.bf16.msra.mxu0 0
    %1652 = vmatprep.subr.bf16.mxu0 0
    %1653 = vmatpush2.bf16.msra.mxu0 0
    %1654 = vmatprep.subr.bf16.mxu0 0
    %1655 = vmatpush2.bf16.msra.mxu0 0
    %1656 = vmatprep.subr.bf16.mxu0 0
    %1657 = vmatpush2.bf16.msra.mxu0 0
    %1658 = vmatprep.subr.bf16.mxu0 0
    %1659 = vmatpush2.bf16.msra.mxu0 0
    %1660 = vmatprep.subr.bf16.mxu0 0
    %1661 = vmatpush2.bf16.msra.mxu0 0
    %1662 = vmatprep.mubr.bf16.mxu0 0
    %1663 = vmatmul.mubr.bf16.gmra.mxu0 %v1294
    %v1664 = vpop.f32.mrf.mxu0
    %v1665 = vadd.f32 %v1580, %v1664
    %v1666 = vpop.f32.mrf.mxu0
    %v1667 = vpop.f32.mrf.mxu0
    %v1668 = vpop.f32.mrf.mxu0
    %1669 = vdwg.mxu0
    %s1670 = scalar_lea.vmem [#allocation9], 128
    %v1671 = vld [vmem:[%s1670] sm:$0xf]
    %v1672 = vld [vmem:[%s1670 + $0x4] sm:$0xf]
    %v1673 = vld [vmem:[%s1670 + $0x8] sm:$0xf]
    %v1674 = vld [vmem:[%s1670 + $0xc] sm:$0xf]
    %v1675 = vld [vmem:[%s1670 + $0x10] sm:$0xf]
    %v1676 = vld [vmem:[%s1670 + $0x14] sm:$0xf]
    %v1677 = vld [vmem:[%s1670 + $0x18] sm:$0xf]
    %v1678 = vld [vmem:[%s1670 + $0x1c] sm:$0xf]
    %v1679 = vld [vmem:[%s1670 + $0x20] sm:$0xf]
    %v1680 = vld [vmem:[%s1670 + $0x24] sm:$0xf]
    %v1681 = vld [vmem:[%s1670 + $0x28] sm:$0xf]
    %v1682 = vld [vmem:[%s1670 + $0x2c] sm:$0xf]
    %v1683 = vld [vmem:[%s1670 + $0x30] sm:$0xf]
    %v1684 = vld [vmem:[%s1670 + $0x34] sm:$0xf]
    %v1685 = vld [vmem:[%s1670 + $0x38] sm:$0xf]
    %v1686 = vld [vmem:[%s1670 + $0x3c] sm:$0xf]
    %s1687 = scalar_lea.vmem %s8, 2
    %v1688 = vld [vmem:[%s1687] sm:$0x1]
    %v1690 = vlaneseq
    %v1691 = vshrl.u32 %v1690, 7
    %v1692 = vsub.s32 0, %v1691
    %v1693 = vrot.slane %v1688, %v1692
    %v1711 = vunpack.c.l.b16 %v1671
    %v1712 = vunpack.c.l.b16 %v1672
    %v1713 = vunpack.c.l.b16 %v1673
    %v1714 = vunpack.c.l.b16 %v1674
    %v1715 = vunpack.c.l.b16 %v1675
    %v1716 = vunpack.c.l.b16 %v1676
    %v1717 = vunpack.c.l.b16 %v1677
    %v1718 = vunpack.c.l.b16 %v1678
    %v1719 = vunpack.c.l.b16 %v1679
    %v1720 = vunpack.c.l.b16 %v1680
    %v1721 = vunpack.c.l.b16 %v1681
    %v1722 = vunpack.c.l.b16 %v1682
    %v1723 = vunpack.c.l.b16 %v1683
    %v1724 = vunpack.c.l.b16 %v1684
    %v1725 = vunpack.c.l.b16 %v1685
    %v1726 = vunpack.c.l.b16 %v1686
    %v1727 = vpack.c.b16 %v1712, %v1711
    %v1728 = vpack.c.b16 %v1714, %v1713
    %v1729 = vpack.c.b16 %v1716, %v1715
    %v1730 = vpack.c.b16 %v1718, %v1717
    %v1731 = vpack.c.b16 %v1720, %v1719
    %v1732 = vpack.c.b16 %v1722, %v1721
    %v1733 = vpack.c.b16 %v1724, %v1723
    %v1734 = vpack.c.b16 %v1726, %v1725
    %1743 = vmatprep.subr.bf16.mxu0 0
    %1744 = vmatpush1.bf16.msra.mxu0 %v1734
    %1745 = vmatprep.subr.bf16.mxu0 0
    %1746 = vmatpush1.bf16.msra.mxu0 %v1733
    %1747 = vmatprep.subr.bf16.mxu0 0
    %1748 = vmatpush1.bf16.msra.mxu0 %v1732
    %1749 = vmatprep.subr.bf16.mxu0 0
    %1750 = vmatpush1.bf16.msra.mxu0 %v1731
    %1751 = vmatprep.subr.bf16.mxu0 0
    %1752 = vmatpush1.bf16.msra.mxu0 %v1730
    %1753 = vmatprep.subr.bf16.mxu0 0
    %1754 = vmatpush1.bf16.msra.mxu0 %v1729
    %1755 = vmatprep.subr.bf16.mxu0 0
    %1756 = vmatpush1.bf16.msra.mxu0 %v1728
    %1757 = vmatprep.subr.bf16.mxu0 0
    %1758 = vmatpush1.bf16.msra.mxu0 %v1727
    %1759 = vmatprep.subr.bf16.mxu0 0
    %1760 = vmatpush2.bf16.msra.mxu0 0
    %1761 = vmatprep.subr.bf16.mxu0 0
    %1762 = vmatpush2.bf16.msra.mxu0 0
    %1763 = vmatprep.subr.bf16.mxu0 0
    %1764 = vmatpush2.bf16.msra.mxu0 0
    %1765 = vmatprep.subr.bf16.mxu0 0
    %1766 = vmatpush2.bf16.msra.mxu0 0
    %1767 = vmatprep.subr.bf16.mxu0 0
    %1768 = vmatpush2.bf16.msra.mxu0 0
    %1769 = vmatprep.subr.bf16.mxu0 0
    %1770 = vmatpush2.bf16.msra.mxu0 0
    %1771 = vmatprep.subr.bf16.mxu0 0
    %1772 = vmatpush2.bf16.msra.mxu0 0
    %1773 = vmatprep.subr.bf16.mxu0 0
    %1774 = vmatpush2.bf16.msra.mxu0 0
    %1775 = vmatprep.mubr.bf16.mxu0 0
    %1776 = vmatmul.mubr.bf16.gmra.mxu0 %v1297
    %v1777 = vpop.f32.mrf.mxu0
    %v1778 = vadd.f32 %v1693, %v1777
    %v1779 = vpop.f32.mrf.mxu0
    %v1780 = vpop.f32.mrf.mxu0
    %v1781 = vpop.f32.mrf.mxu0
    %1782 = vdwg.mxu0
    %v1783 = vmul.f32 %v1550, %v1778
    %v1784 = vadd.f32 %v1665, %v1783
    %v1785 = vtanh.pop %v1784
    %v1786 = vsub.f32 1.0, %v1556
    %v1787 = vmul.f32 %v1786, %v1785
    %v1788 = vmul.f32 %v1556, %v1296
    %v1789 = vadd.f32 %v1787, %v1788
    %1790 = vst [vmem:[%s1295] sm:$0xff] %v1789
    %v1791 = vpack.c.bf16 %v1789, %v1789
    %s1792 = scalar_lea.vmem [#allocation2], 24
    %v1793 = vld [vmem:[%s1792] sm:$0xff]
    %v1794 = vpack.c.bf16 %v1793, %v1793
    %s1795 = scalar_lea.vmem [#allocation6], 768
    %v1796 = vld [vmem:[%s1795] sm:$0xff]
    %v1797 = vld [vmem:[%s1795 + $0x8] sm:$0xff]
    %v1798 = vld [vmem:[%s1795 + $0x10] sm:$0xff]
    %v1799 = vld [vmem:[%s1795 + $0x18] sm:$0xff]
    %v1800 = vld [vmem:[%s1795 + $0x20] sm:$0xff]
    %v1801 = vld [vmem:[%s1795 + $0x28] sm:$0xff]
    %v1802 = vld [vmem:[%s1795 + $0x30] sm:$0xff]
    %v1803 = vld [vmem:[%s1795 + $0x38] sm:$0xff]
    %v1804 = vld [vmem:[%s1795 + $0x40] sm:$0xff]
    %v1805 = vld [vmem:[%s1795 + $0x48] sm:$0xff]
    %v1806 = vld [vmem:[%s1795 + $0x50] sm:$0xff]
    %v1807 = vld [vmem:[%s1795 + $0x58] sm:$0xff]
    %v1808 = vld [vmem:[%s1795 + $0x60] sm:$0xff]
    %v1809 = vld [vmem:[%s1795 + $0x68] sm:$0xff]
    %v1810 = vld [vmem:[%s1795 + $0x70] sm:$0xff]
    %v1811 = vld [vmem:[%s1795 + $0x78] sm:$0xff]
    %v1812 = vld [vmem:[%s1795 + $0x80] sm:$0xff]
    %v1813 = vld [vmem:[%s1795 + $0x88] sm:$0xff]
    %v1814 = vld [vmem:[%s1795 + $0x90] sm:$0xff]
    %v1815 = vld [vmem:[%s1795 + $0x98] sm:$0xff]
    %v1816 = vld [vmem:[%s1795 + $0xa0] sm:$0xff]
    %v1817 = vld [vmem:[%s1795 + $0xa8] sm:$0xff]
    %v1818 = vld [vmem:[%s1795 + $0xb0] sm:$0xff]
    %v1819 = vld [vmem:[%s1795 + $0xb8] sm:$0xff]
    %v1820 = vld [vmem:[%s1795 + $0xc0] sm:$0xff]
    %v1821 = vld [vmem:[%s1795 + $0xc8] sm:$0xff]
    %v1822 = vld [vmem:[%s1795 + $0xd0] sm:$0xff]
    %v1823 = vld [vmem:[%s1795 + $0xd8] sm:$0xff]
    %v1824 = vld [vmem:[%s1795 + $0xe0] sm:$0xff]
    %v1825 = vld [vmem:[%s1795 + $0xe8] sm:$0xff]
    %v1826 = vld [vmem:[%s1795 + $0xf0] sm:$0xff]
    %v1827 = vld [vmem:[%s1795 + $0xf8] sm:$0xff]
    %s1828 = scalar_lea.vmem %s6, 6
    %v1829 = vld [vmem:[%s1828] sm:$0x3]
    %v1831 = vlaneseq
    %v1832 = vshrl.u32 %v1831, 7
    %v1833 = vsub.s32 0, %v1832
    %v1834 = vrot.slane %v1829, %v1833
    %v1835 = vlaneseq
    %v1836 = vshrl.u32 %v1835, 7
    %v1837 = vsub.s32 1, %v1836
    %v1838 = vrot.slane %v1829, %v1837
    %v1873 = vunpack.c.l.b16 %v1796
    %v1874 = vunpack.c.h.b16 %v1796
    %v1875 = vunpack.c.l.b16 %v1797
    %v1876 = vunpack.c.h.b16 %v1797
    %v1877 = vunpack.c.l.b16 %v1798
    %v1878 = vunpack.c.h.b16 %v1798
    %v1879 = vunpack.c.l.b16 %v1799
    %v1880 = vunpack.c.h.b16 %v1799
    %v1881 = vunpack.c.l.b16 %v1800
    %v1882 = vunpack.c.h.b16 %v1800
    %v1883 = vunpack.c.l.b16 %v1801
    %v1884 = vunpack.c.h.b16 %v1801
    %v1885 = vunpack.c.l.b16 %v1802
    %v1886 = vunpack.c.h.b16 %v1802
    %v1887 = vunpack.c.l.b16 %v1803
    %v1888 = vunpack.c.h.b16 %v1803
    %v1889 = vunpack.c.l.b16 %v1804
    %v1890 = vunpack.c.h.b16 %v1804
    %v1891 = vunpack.c.l.b16 %v1805
    %v1892 = vunpack.c.h.b16 %v1805
    %v1893 = vunpack.c.l.b16 %v1806
    %v1894 = vunpack.c.h.b16 %v1806
    %v1895 = vunpack.c.l.b16 %v1807
    %v1896 = vunpack.c.h.b16 %v1807
    %v1897 = vunpack.c.l.b16 %v1808
    %v1898 = vunpack.c.h.b16 %v1808
    %v1899 = vunpack.c.l.b16 %v1809
    %v1900 = vunpack.c.h.b16 %v1809
    %v1901 = vunpack.c.l.b16 %v1810
    %v1902 = vunpack.c.h.b16 %v1810
    %v1903 = vunpack.c.l.b16 %v1811
    %v1904 = vunpack.c.h.b16 %v1811
    %v1905 = vunpack.c.l.b16 %v1812
    %v1906 = vunpack.c.h.b16 %v1812
    %v1907 = vunpack.c.l.b16 %v1813
    %v1908 = vunpack.c.h.b16 %v1813
    %v1909 = vunpack.c.l.b16 %v1814
    %v1910 = vunpack.c.h.b16 %v1814
    %v1911 = vunpack.c.l.b16 %v1815
    %v1912 = vunpack.c.h.b16 %v1815
    %v1913 = vunpack.c.l.b16 %v1816
    %v1914 = vunpack.c.h.b16 %v1816
    %v1915 = vunpack.c.l.b16 %v1817
    %v1916 = vunpack.c.h.b16 %v1817
    %v1917 = vunpack.c.l.b16 %v1818
    %v1918 = vunpack.c.h.b16 %v1818
    %v1919 = vunpack.c.l.b16 %v1819
    %v1920 = vunpack.c.h.b16 %v1819
    %v1921 = vunpack.c.l.b16 %v1820
    %v1922 = vunpack.c.h.b16 %v1820
    %v1923 = vunpack.c.l.b16 %v1821
    %v1924 = vunpack.c.h.b16 %v1821
    %v1925 = vunpack.c.l.b16 %v1822
    %v1926 = vunpack.c.h.b16 %v1822
    %v1927 = vunpack.c.l.b16 %v1823
    %v1928 = vunpack.c.h.b16 %v1823
    %v1929 = vunpack.c.l.b16 %v1824
    %v1930 = vunpack.c.h.b16 %v1824
    %v1931 = vunpack.c.l.b16 %v1825
    %v1932 = vunpack.c.h.b16 %v1825
    %v1933 = vunpack.c.l.b16 %v1826
    %v1934 = vunpack.c.h.b16 %v1826
    %v1935 = vunpack.c.l.b16 %v1827
    %v1936 = vunpack.c.h.b16 %v1827
    %v1937 = vpack.c.b16 %v1875, %v1873
    %v1938 = vpack.c.b16 %v1876, %v1874
    %v1939 = vpack.c.b16 %v1879, %v1877
    %v1940 = vpack.c.b16 %v1880, %v1878
    %v1941 = vpack.c.b16 %v1883, %v1881
    %v1942 = vpack.c.b16 %v1884, %v1882
    %v1943 = vpack.c.b16 %v1887, %v1885
    %v1944 = vpack.c.b16 %v1888, %v1886
    %v1945 = vpack.c.b16 %v1891, %v1889
    %v1946 = vpack.c.b16 %v1892, %v1890
    %v1947 = vpack.c.b16 %v1895, %v1893
    %v1948 = vpack.c.b16 %v1896, %v1894
    %v1949 = vpack.c.b16 %v1899, %v1897
    %v1950 = vpack.c.b16 %v1900, %v1898
    %v1951 = vpack.c.b16 %v1903, %v1901
    %v1952 = vpack.c.b16 %v1904, %v1902
    %v1953 = vpack.c.b16 %v1907, %v1905
    %v1954 = vpack.c.b16 %v1908, %v1906
    %v1955 = vpack.c.b16 %v1911, %v1909
    %v1956 = vpack.c.b16 %v1912, %v1910
    %v1957 = vpack.c.b16 %v1915, %v1913
    %v1958 = vpack.c.b16 %v1916, %v1914
    %v1959 = vpack.c.b16 %v1919, %v1917
    %v1960 = vpack.c.b16 %v1920, %v1918
    %v1961 = vpack.c.b16 %v1923, %v1921
    %v1962 = vpack.c.b16 %v1924, %v1922
    %v1963 = vpack.c.b16 %v1927, %v1925
    %v1964 = vpack.c.b16 %v1928, %v1926
    %v1965 = vpack.c.b16 %v1931, %v1929
    %v1966 = vpack.c.b16 %v1932, %v1930
    %v1967 = vpack.c.b16 %v1935, %v1933
    %v1968 = vpack.c.b16 %v1936, %v1934
    %2001 = vmatprep.subr.bf16.mxu0 %v1952
    %2002 = vmatpush1.bf16.msra.mxu0 %v1951
    %2003 = vmatprep.subr.bf16.mxu0 %v1950
    %2004 = vmatpush1.bf16.msra.mxu0 %v1949
    %2005 = vmatprep.subr.bf16.mxu0 %v1948
    %2006 = vmatpush1.bf16.msra.mxu0 %v1947
    %2007 = vmatprep.subr.bf16.mxu0 %v1946
    %2008 = vmatpush1.bf16.msra.mxu0 %v1945
    %2009 = vmatprep.subr.bf16.mxu0 %v1944
    %2010 = vmatpush1.bf16.msra.mxu0 %v1943
    %2011 = vmatprep.subr.bf16.mxu0 %v1942
    %2012 = vmatpush1.bf16.msra.mxu0 %v1941
    %2013 = vmatprep.subr.bf16.mxu0 %v1940
    %2014 = vmatpush1.bf16.msra.mxu0 %v1939
    %2015 = vmatprep.subr.bf16.mxu0 %v1938
    %2016 = vmatpush1.bf16.msra.mxu0 %v1937
    %2017 = vmatprep.subr.bf16.mxu0 %v1968
    %2018 = vmatpush2.bf16.msra.mxu0 %v1967
    %2019 = vmatprep.subr.bf16.mxu0 %v1966
    %2020 = vmatpush2.bf16.msra.mxu0 %v1965
    %2021 = vmatprep.subr.bf16.mxu0 %v1964
    %2022 = vmatpush2.bf16.msra.mxu0 %v1963
    %2023 = vmatprep.subr.bf16.mxu0 %v1962
    %2024 = vmatpush2.bf16.msra.mxu0 %v1961
    %2025 = vmatprep.subr.bf16.mxu0 %v1960
    %2026 = vmatpush2.bf16.msra.mxu0 %v1959
    %2027 = vmatprep.subr.bf16.mxu0 %v1958
    %2028 = vmatpush2.bf16.msra.mxu0 %v1957
    %2029 = vmatprep.subr.bf16.mxu0 %v1956
    %2030 = vmatpush2.bf16.msra.mxu0 %v1955
    %2031 = vmatprep.subr.bf16.mxu0 %v1954
    %2032 = vmatpush2.bf16.msra.mxu0 %v1953
    %2033 = vmatprep.mubr.bf16.mxu0 %v1794
    %2034 = vmatmul.mubr.bf16.gmra.mxu0 %v1791
    %v2035 = vpop.f32.mrf.mxu0
    %v2036 = vadd.f32 %v1834, %v2035
    %v2037 = vpop.f32.mrf.mxu0
    %v2038 = vadd.f32 %v1838, %v2037
    %v2039 = vpop.f32.mrf.mxu0
    %v2040 = vpop.f32.mrf.mxu0
    %2041 = vdwg.mxu0
    %v2042 = vxor.u32 %v2036, 2147483648
    %v2043 = vmul.f32 %v2042, 1.442695
    %v2044 = vpow.pop %v2043
    %v2045 = vadd.f32 %v2044, 1.0
    %v2046 = vrcp.pop %v2045
    %v2047 = vmul.f32 1.0, %v2046
    %v2048 = vxor.u32 %v2038, 2147483648
    %v2049 = vmul.f32 %v2048, 1.442695
    %v2050 = vpow.pop %v2049
    %v2051 = vadd.f32 %v2050, 1.0
    %v2052 = vrcp.pop %v2051
    %v2053 = vmul.f32 1.0, %v2052
    %s2054 = scalar_lea.vmem [#allocation8], 192
    %v2055 = vld [vmem:[%s2054] sm:$0xf]
    %v2056 = vld [vmem:[%s2054 + $0x4] sm:$0xf]
    %v2057 = vld [vmem:[%s2054 + $0x8] sm:$0xf]
    %v2058 = vld [vmem:[%s2054 + $0xc] sm:$0xf]
    %v2059 = vld [vmem:[%s2054 + $0x10] sm:$0xf]
    %v2060 = vld [vmem:[%s2054 + $0x14] sm:$0xf]
    %v2061 = vld [vmem:[%s2054 + $0x18] sm:$0xf]
    %v2062 = vld [vmem:[%s2054 + $0x1c] sm:$0xf]
    %v2063 = vld [vmem:[%s2054 + $0x20] sm:$0xf]
    %v2064 = vld [vmem:[%s2054 + $0x24] sm:$0xf]
    %v2065 = vld [vmem:[%s2054 + $0x28] sm:$0xf]
    %v2066 = vld [vmem:[%s2054 + $0x2c] sm:$0xf]
    %v2067 = vld [vmem:[%s2054 + $0x30] sm:$0xf]
    %v2068 = vld [vmem:[%s2054 + $0x34] sm:$0xf]
    %v2069 = vld [vmem:[%s2054 + $0x38] sm:$0xf]
    %v2070 = vld [vmem:[%s2054 + $0x3c] sm:$0xf]
    %s2071 = scalar_lea.vmem %s7, 3
    %v2072 = vld [vmem:[%s2071] sm:$0x1]
    %v2074 = vlaneseq
    %v2075 = vshrl.u32 %v2074, 7
    %v2076 = vsub.s32 0, %v2075
    %v2077 = vrot.slane %v2072, %v2076
    %v2095 = vunpack.c.l.b16 %v2055
    %v2096 = vunpack.c.l.b16 %v2056
    %v2097 = vunpack.c.l.b16 %v2057
    %v2098 = vunpack.c.l.b16 %v2058
    %v2099 = vunpack.c.l.b16 %v2059
    %v2100 = vunpack.c.l.b16 %v2060
    %v2101 = vunpack.c.l.b16 %v2061
    %v2102 = vunpack.c.l.b16 %v2062
    %v2103 = vunpack.c.l.b16 %v2063
    %v2104 = vunpack.c.l.b16 %v2064
    %v2105 = vunpack.c.l.b16 %v2065
    %v2106 = vunpack.c.l.b16 %v2066
    %v2107 = vunpack.c.l.b16 %v2067
    %v2108 = vunpack.c.l.b16 %v2068
    %v2109 = vunpack.c.l.b16 %v2069
    %v2110 = vunpack.c.l.b16 %v2070
    %v2111 = vpack.c.b16 %v2096, %v2095
    %v2112 = vpack.c.b16 %v2098, %v2097
    %v2113 = vpack.c.b16 %v2100, %v2099
    %v2114 = vpack.c.b16 %v2102, %v2101
    %v2115 = vpack.c.b16 %v2104, %v2103
    %v2116 = vpack.c.b16 %v2106, %v2105
    %v2117 = vpack.c.b16 %v2108, %v2107
    %v2118 = vpack.c.b16 %v2110, %v2109
    %2127 = vmatprep.subr.bf16.mxu0 0
    %2128 = vmatpush1.bf16.msra.mxu0 %v2118
    %2129 = vmatprep.subr.bf16.mxu0 0
    %2130 = vmatpush1.bf16.msra.mxu0 %v2117
    %2131 = vmatprep.subr.bf16.mxu0 0
    %2132 = vmatpush1.bf16.msra.mxu0 %v2116
    %2133 = vmatprep.subr.bf16.mxu0 0
    %2134 = vmatpush1.bf16.msra.mxu0 %v2115
    %2135 = vmatprep.subr.bf16.mxu0 0
    %2136 = vmatpush1.bf16.msra.mxu0 %v2114
    %2137 = vmatprep.subr.bf16.mxu0 0
    %2138 = vmatpush1.bf16.msra.mxu0 %v2113
    %2139 = vmatprep.subr.bf16.mxu0 0
    %2140 = vmatpush1.bf16.msra.mxu0 %v2112
    %2141 = vmatprep.subr.bf16.mxu0 0
    %2142 = vmatpush1.bf16.msra.mxu0 %v2111
    %2143 = vmatprep.subr.bf16.mxu0 0
    %2144 = vmatpush2.bf16.msra.mxu0 0
    %2145 = vmatprep.subr.bf16.mxu0 0
    %2146 = vmatpush2.bf16.msra.mxu0 0
    %2147 = vmatprep.subr.bf16.mxu0 0
    %2148 = vmatpush2.bf16.msra.mxu0 0
    %2149 = vmatprep.subr.bf16.mxu0 0
    %2150 = vmatpush2.bf16.msra.mxu0 0
    %2151 = vmatprep.subr.bf16.mxu0 0
    %2152 = vmatpush2.bf16.msra.mxu0 0
    %2153 = vmatprep.subr.bf16.mxu0 0
    %2154 = vmatpush2.bf16.msra.mxu0 0
    %2155 = vmatprep.subr.bf16.mxu0 0
    %2156 = vmatpush2.bf16.msra.mxu0 0
    %2157 = vmatprep.subr.bf16.mxu0 0
    %2158 = vmatpush2.bf16.msra.mxu0 0
    %2159 = vmatprep.mubr.bf16.mxu0 0
    %2160 = vmatmul.mubr.bf16.gmra.mxu0 %v1791
    %v2161 = vpop.f32.mrf.mxu0
    %v2162 = vadd.f32 %v2077, %v2161
    %v2163 = vpop.f32.mrf.mxu0
    %v2164 = vpop.f32.mrf.mxu0
    %v2165 = vpop.f32.mrf.mxu0
    %2166 = vdwg.mxu0
    %s2167 = scalar_lea.vmem [#allocation9], 192
    %v2168 = vld [vmem:[%s2167] sm:$0xf]
    %v2169 = vld [vmem:[%s2167 + $0x4] sm:$0xf]
    %v2170 = vld [vmem:[%s2167 + $0x8] sm:$0xf]
    %v2171 = vld [vmem:[%s2167 + $0xc] sm:$0xf]
    %v2172 = vld [vmem:[%s2167 + $0x10] sm:$0xf]
    %v2173 = vld [vmem:[%s2167 + $0x14] sm:$0xf]
    %v2174 = vld [vmem:[%s2167 + $0x18] sm:$0xf]
    %v2175 = vld [vmem:[%s2167 + $0x1c] sm:$0xf]
    %v2176 = vld [vmem:[%s2167 + $0x20] sm:$0xf]
    %v2177 = vld [vmem:[%s2167 + $0x24] sm:$0xf]
    %v2178 = vld [vmem:[%s2167 + $0x28] sm:$0xf]
    %v2179 = vld [vmem:[%s2167 + $0x2c] sm:$0xf]
    %v2180 = vld [vmem:[%s2167 + $0x30] sm:$0xf]
    %v2181 = vld [vmem:[%s2167 + $0x34] sm:$0xf]
    %v2182 = vld [vmem:[%s2167 + $0x38] sm:$0xf]
    %v2183 = vld [vmem:[%s2167 + $0x3c] sm:$0xf]
    %s2184 = scalar_lea.vmem %s8, 3
    %v2185 = vld [vmem:[%s2184] sm:$0x1]
    %v2187 = vlaneseq
    %v2188 = vshrl.u32 %v2187, 7
    %v2189 = vsub.s32 0, %v2188
    %v2190 = vrot.slane %v2185, %v2189
    %v2208 = vunpack.c.l.b16 %v2168
    %v2209 = vunpack.c.l.b16 %v2169
    %v2210 = vunpack.c.l.b16 %v2170
    %v2211 = vunpack.c.l.b16 %v2171
    %v2212 = vunpack.c.l.b16 %v2172
    %v2213 = vunpack.c.l.b16 %v2173
    %v2214 = vunpack.c.l.b16 %v2174
    %v2215 = vunpack.c.l.b16 %v2175
    %v2216 = vunpack.c.l.b16 %v2176
    %v2217 = vunpack.c.l.b16 %v2177
    %v2218 = vunpack.c.l.b16 %v2178
    %v2219 = vunpack.c.l.b16 %v2179
    %v2220 = vunpack.c.l.b16 %v2180
    %v2221 = vunpack.c.l.b16 %v2181
    %v2222 = vunpack.c.l.b16 %v2182
    %v2223 = vunpack.c.l.b16 %v2183
    %v2224 = vpack.c.b16 %v2209, %v2208
    %v2225 = vpack.c.b16 %v2211, %v2210
    %v2226 = vpack.c.b16 %v2213, %v2212
    %v2227 = vpack.c.b16 %v2215, %v2214
    %v2228 = vpack.c.b16 %v2217, %v2216
    %v2229 = vpack.c.b16 %v2219, %v2218
    %v2230 = vpack.c.b16 %v2221, %v2220
    %v2231 = vpack.c.b16 %v2223, %v2222
    %2240 = vmatprep.subr.bf16.mxu0 0
    %2241 = vmatpush1.bf16.msra.mxu0 %v2231
    %2242 = vmatprep.subr.bf16.mxu0 0
    %2243 = vmatpush1.bf16.msra.mxu0 %v2230
    %2244 = vmatprep.subr.bf16.mxu0 0
    %2245 = vmatpush1.bf16.msra.mxu0 %v2229
    %2246 = vmatprep.subr.bf16.mxu0 0
    %2247 = vmatpush1.bf16.msra.mxu0 %v2228
    %2248 = vmatprep.subr.bf16.mxu0 0
    %2249 = vmatpush1.bf16.msra.mxu0 %v2227
    %2250 = vmatprep.subr.bf16.mxu0 0
    %2251 = vmatpush1.bf16.msra.mxu0 %v2226
    %2252 = vmatprep.subr.bf16.mxu0 0
    %2253 = vmatpush1.bf16.msra.mxu0 %v2225
    %2254 = vmatprep.subr.bf16.mxu0 0
    %2255 = vmatpush1.bf16.msra.mxu0 %v2224
    %2256 = vmatprep.subr.bf16.mxu0 0
    %2257 = vmatpush2.bf16.msra.mxu0 0
    %2258 = vmatprep.subr.bf16.mxu0 0
    %2259 = vmatpush2.bf16.msra.mxu0 0
    %2260 = vmatprep.subr.bf16.mxu0 0
    %2261 = vmatpush2.bf16.msra.mxu0 0
    %2262 = vmatprep.subr.bf16.mxu0 0
    %2263 = vmatpush2.bf16.msra.mxu0 0
    %2264 = vmatprep.subr.bf16.mxu0 0
    %2265 = vmatpush2.bf16.msra.mxu0 0
    %2266 = vmatprep.subr.bf16.mxu0 0
    %2267 = vmatpush2.bf16.msra.mxu0 0
    %2268 = vmatprep.subr.bf16.mxu0 0
    %2269 = vmatpush2.bf16.msra.mxu0 0
    %2270 = vmatprep.subr.bf16.mxu0 0
    %2271 = vmatpush2.bf16.msra.mxu0 0
    %2272 = vmatprep.mubr.bf16.mxu0 0
    %2273 = vmatmul.mubr.bf16.gmra.mxu0 %v1794
    %v2274 = vpop.f32.mrf.mxu0
    %v2275 = vadd.f32 %v2190, %v2274
    %v2276 = vpop.f32.mrf.mxu0
    %v2277 = vpop.f32.mrf.mxu0
    %v2278 = vpop.f32.mrf.mxu0
    %2279 = vdwg.mxu0
    %v2280 = vmul.f32 %v2047, %v2275
    %v2281 = vadd.f32 %v2162, %v2280
    %v2282 = vtanh.pop %v2281
    %v2283 = vsub.f32 1.0, %v2053
    %v2284 = vmul.f32 %v2283, %v2282
    %v2285 = vmul.f32 %v2053, %v1793
    %v2286 = vadd.f32 %v2284, %v2285
    %2287 = vst [vmem:[%s1792] sm:$0xff] %v2286
    %v2288 = vpack.c.bf16 %v2286, %v2286
    %s2289 = scalar_lea.vmem [#allocation2], 32
    %v2290 = vld [vmem:[%s2289] sm:$0xff]
    %v2291 = vpack.c.bf16 %v2290, %v2290
    %s2292 = scalar_lea.vmem [#allocation6], 1024
    %v2293 = vld [vmem:[%s2292] sm:$0xff]
    %v2294 = vld [vmem:[%s2292 + $0x8] sm:$0xff]
    %v2295 = vld [vmem:[%s2292 + $0x10] sm:$0xff]
    %v2296 = vld [vmem:[%s2292 + $0x18] sm:$0xff]
    %v2297 = vld [vmem:[%s2292 + $0x20] sm:$0xff]
    %v2298 = vld [vmem:[%s2292 + $0x28] sm:$0xff]
    %v2299 = vld [vmem:[%s2292 + $0x30] sm:$0xff]
    %v2300 = vld [vmem:[%s2292 + $0x38] sm:$0xff]
    %v2301 = vld [vmem:[%s2292 + $0x40] sm:$0xff]
    %v2302 = vld [vmem:[%s2292 + $0x48] sm:$0xff]
    %v2303 = vld [vmem:[%s2292 + $0x50] sm:$0xff]
    %v2304 = vld [vmem:[%s2292 + $0x58] sm:$0xff]
    %v2305 = vld [vmem:[%s2292 + $0x60] sm:$0xff]
    %v2306 = vld [vmem:[%s2292 + $0x68] sm:$0xff]
    %v2307 = vld [vmem:[%s2292 + $0x70] sm:$0xff]
    %v2308 = vld [vmem:[%s2292 + $0x78] sm:$0xff]
    %v2309 = vld [vmem:[%s2292 + $0x80] sm:$0xff]
    %v2310 = vld [vmem:[%s2292 + $0x88] sm:$0xff]
    %v2311 = vld [vmem:[%s2292 + $0x90] sm:$0xff]
    %v2312 = vld [vmem:[%s2292 + $0x98] sm:$0xff]
    %v2313 = vld [vmem:[%s2292 + $0xa0] sm:$0xff]
    %v2314 = vld [vmem:[%s2292 + $0xa8] sm:$0xff]
    %v2315 = vld [vmem:[%s2292 + $0xb0] sm:$0xff]
    %v2316 = vld [vmem:[%s2292 + $0xb8] sm:$0xff]
    %v2317 = vld [vmem:[%s2292 + $0xc0] sm:$0xff]
    %v2318 = vld [vmem:[%s2292 + $0xc8] sm:$0xff]
    %v2319 = vld [vmem:[%s2292 + $0xd0] sm:$0xff]
    %v2320 = vld [vmem:[%s2292 + $0xd8] sm:$0xff]
    %v2321 = vld [vmem:[%s2292 + $0xe0] sm:$0xff]
    %v2322 = vld [vmem:[%s2292 + $0xe8] sm:$0xff]
    %v2323 = vld [vmem:[%s2292 + $0xf0] sm:$0xff]
    %v2324 = vld [vmem:[%s2292 + $0xf8] sm:$0xff]
    %s2325 = scalar_lea.vmem %s6, 8
    %v2326 = vld [vmem:[%s2325] sm:$0x3]
    %v2328 = vlaneseq
    %v2329 = vshrl.u32 %v2328, 7
    %v2330 = vsub.s32 0, %v2329
    %v2331 = vrot.slane %v2326, %v2330
    %v2332 = vlaneseq
    %v2333 = vshrl.u32 %v2332, 7
    %v2334 = vsub.s32 1, %v2333
    %v2335 = vrot.slane %v2326, %v2334
    %v2370 = vunpack.c.l.b16 %v2293
    %v2371 = vunpack.c.h.b16 %v2293
    %v2372 = vunpack.c.l.b16 %v2294
    %v2373 = vunpack.c.h.b16 %v2294
    %v2374 = vunpack.c.l.b16 %v2295
    %v2375 = vunpack.c.h.b16 %v2295
    %v2376 = vunpack.c.l.b16 %v2296
    %v2377 = vunpack.c.h.b16 %v2296
    %v2378 = vunpack.c.l.b16 %v2297
    %v2379 = vunpack.c.h.b16 %v2297
    %v2380 = vunpack.c.l.b16 %v2298
    %v2381 = vunpack.c.h.b16 %v2298
    %v2382 = vunpack.c.l.b16 %v2299
    %v2383 = vunpack.c.h.b16 %v2299
    %v2384 = vunpack.c.l.b16 %v2300
    %v2385 = vunpack.c.h.b16 %v2300
    %v2386 = vunpack.c.l.b16 %v2301
    %v2387 = vunpack.c.h.b16 %v2301
    %v2388 = vunpack.c.l.b16 %v2302
    %v2389 = vunpack.c.h.b16 %v2302
    %v2390 = vunpack.c.l.b16 %v2303
    %v2391 = vunpack.c.h.b16 %v2303
    %v2392 = vunpack.c.l.b16 %v2304
    %v2393 = vunpack.c.h.b16 %v2304
    %v2394 = vunpack.c.l.b16 %v2305
    %v2395 = vunpack.c.h.b16 %v2305
    %v2396 = vunpack.c.l.b16 %v2306
    %v2397 = vunpack.c.h.b16 %v2306
    %v2398 = vunpack.c.l.b16 %v2307
    %v2399 = vunpack.c.h.b16 %v2307
    %v2400 = vunpack.c.l.b16 %v2308
    %v2401 = vunpack.c.h.b16 %v2308
    %v2402 = vunpack.c.l.b16 %v2309
    %v2403 = vunpack.c.h.b16 %v2309
    %v2404 = vunpack.c.l.b16 %v2310
    %v2405 = vunpack.c.h.b16 %v2310
    %v2406 = vunpack.c.l.b16 %v2311
    %v2407 = vunpack.c.h.b16 %v2311
    %v2408 = vunpack.c.l.b16 %v2312
    %v2409 = vunpack.c.h.b16 %v2312
    %v2410 = vunpack.c.l.b16 %v2313
    %v2411 = vunpack.c.h.b16 %v2313
    %v2412 = vunpack.c.l.b16 %v2314
    %v2413 = vunpack.c.h.b16 %v2314
    %v2414 = vunpack.c.l.b16 %v2315
    %v2415 = vunpack.c.h.b16 %v2315
    %v2416 = vunpack.c.l.b16 %v2316
    %v2417 = vunpack.c.h.b16 %v2316
    %v2418 = vunpack.c.l.b16 %v2317
    %v2419 = vunpack.c.h.b16 %v2317
    %v2420 = vunpack.c.l.b16 %v2318
    %v2421 = vunpack.c.h.b16 %v2318
    %v2422 = vunpack.c.l.b16 %v2319
    %v2423 = vunpack.c.h.b16 %v2319
    %v2424 = vunpack.c.l.b16 %v2320
    %v2425 = vunpack.c.h.b16 %v2320
    %v2426 = vunpack.c.l.b16 %v2321
    %v2427 = vunpack.c.h.b16 %v2321
    %v2428 = vunpack.c.l.b16 %v2322
    %v2429 = vunpack.c.h.b16 %v2322
    %v2430 = vunpack.c.l.b16 %v2323
    %v2431 = vunpack.c.h.b16 %v2323
    %v2432 = vunpack.c.l.b16 %v2324
    %v2433 = vunpack.c.h.b16 %v2324
    %v2434 = vpack.c.b16 %v2372, %v2370
    %v2435 = vpack.c.b16 %v2373, %v2371
    %v2436 = vpack.c.b16 %v2376, %v2374
    %v2437 = vpack.c.b16 %v2377, %v2375
    %v2438 = vpack.c.b16 %v2380, %v2378
    %v2439 = vpack.c.b16 %v2381, %v2379
    %v2440 = vpack.c.b16 %v2384, %v2382
    %v2441 = vpack.c.b16 %v2385, %v2383
    %v2442 = vpack.c.b16 %v2388, %v2386
    %v2443 = vpack.c.b16 %v2389, %v2387
    %v2444 = vpack.c.b16 %v2392, %v2390
    %v2445 = vpack.c.b16 %v2393, %v2391
    %v2446 = vpack.c.b16 %v2396, %v2394
    %v2447 = vpack.c.b16 %v2397, %v2395
    %v2448 = vpack.c.b16 %v2400, %v2398
    %v2449 = vpack.c.b16 %v2401, %v2399
    %v2450 = vpack.c.b16 %v2404, %v2402
    %v2451 = vpack.c.b16 %v2405, %v2403
    %v2452 = vpack.c.b16 %v2408, %v2406
    %v2453 = vpack.c.b16 %v2409, %v2407
    %v2454 = vpack.c.b16 %v2412, %v2410
    %v2455 = vpack.c.b16 %v2413, %v2411
    %v2456 = vpack.c.b16 %v2416, %v2414
    %v2457 = vpack.c.b16 %v2417, %v2415
    %v2458 = vpack.c.b16 %v2420, %v2418
    %v2459 = vpack.c.b16 %v2421, %v2419
    %v2460 = vpack.c.b16 %v2424, %v2422
    %v2461 = vpack.c.b16 %v2425, %v2423
    %v2462 = vpack.c.b16 %v2428, %v2426
    %v2463 = vpack.c.b16 %v2429, %v2427
    %v2464 = vpack.c.b16 %v2432, %v2430
    %v2465 = vpack.c.b16 %v2433, %v2431
    %2498 = vmatprep.subr.bf16.mxu0 %v2449
    %2499 = vmatpush1.bf16.msra.mxu0 %v2448
    %2500 = vmatprep.subr.bf16.mxu0 %v2447
    %2501 = vmatpush1.bf16.msra.mxu0 %v2446
    %2502 = vmatprep.subr.bf16.mxu0 %v2445
    %2503 = vmatpush1.bf16.msra.mxu0 %v2444
    %2504 = vmatprep.subr.bf16.mxu0 %v2443
    %2505 = vmatpush1.bf16.msra.mxu0 %v2442
    %2506 = vmatprep.subr.bf16.mxu0 %v2441
    %2507 = vmatpush1.bf16.msra.mxu0 %v2440
    %2508 = vmatprep.subr.bf16.mxu0 %v2439
    %2509 = vmatpush1.bf16.msra.mxu0 %v2438
    %2510 = vmatprep.subr.bf16.mxu0 %v2437
    %2511 = vmatpush1.bf16.msra.mxu0 %v2436
    %2512 = vmatprep.subr.bf16.mxu0 %v2435
    %2513 = vmatpush1.bf16.msra.mxu0 %v2434
    %2514 = vmatprep.subr.bf16.mxu0 %v2465
    %2515 = vmatpush2.bf16.msra.mxu0 %v2464
    %2516 = vmatprep.subr.bf16.mxu0 %v2463
    %2517 = vmatpush2.bf16.msra.mxu0 %v2462
    %2518 = vmatprep.subr.bf16.mxu0 %v2461
    %2519 = vmatpush2.bf16.msra.mxu0 %v2460
    %2520 = vmatprep.subr.bf16.mxu0 %v2459
    %2521 = vmatpush2.bf16.msra.mxu0 %v2458
    %2522 = vmatprep.subr.bf16.mxu0 %v2457
    %2523 = vmatpush2.bf16.msra.mxu0 %v2456
    %2524 = vmatprep.subr.bf16.mxu0 %v2455
    %2525 = vmatpush2.bf16.msra.mxu0 %v2454
    %2526 = vmatprep.subr.bf16.mxu0 %v2453
    %2527 = vmatpush2.bf16.msra.mxu0 %v2452
    %2528 = vmatprep.subr.bf16.mxu0 %v2451
    %2529 = vmatpush2.bf16.msra.mxu0 %v2450
    %2530 = vmatprep.mubr.bf16.mxu0 %v2291
    %2531 = vmatmul.mubr.bf16.gmra.mxu0 %v2288
    %v2532 = vpop.f32.mrf.mxu0
    %v2533 = vadd.f32 %v2331, %v2532
    %v2534 = vpop.f32.mrf.mxu0
    %v2535 = vadd.f32 %v2335, %v2534
    %v2536 = vpop.f32.mrf.mxu0
    %v2537 = vpop.f32.mrf.mxu0
    %2538 = vdwg.mxu0
    %v2539 = vxor.u32 %v2533, 2147483648
    %v2540 = vmul.f32 %v2539, 1.442695
    %v2541 = vpow.pop %v2540
    %v2542 = vadd.f32 %v2541, 1.0
    %v2543 = vrcp.pop %v2542
    %v2544 = vmul.f32 1.0, %v2543
    %v2545 = vxor.u32 %v2535, 2147483648
    %v2546 = vmul.f32 %v2545, 1.442695
    %v2547 = vpow.pop %v2546
    %v2548 = vadd.f32 %v2547, 1.0
    %v2549 = vrcp.pop %v2548
    %v2550 = vmul.f32 1.0, %v2549
    %s2551 = scalar_lea.vmem [#allocation8], 256
    %v2552 = vld [vmem:[%s2551] sm:$0xf]
    %v2553 = vld [vmem:[%s2551 + $0x4] sm:$0xf]
    %v2554 = vld [vmem:[%s2551 + $0x8] sm:$0xf]
    %v2555 = vld [vmem:[%s2551 + $0xc] sm:$0xf]
    %v2556 = vld [vmem:[%s2551 + $0x10] sm:$0xf]
    %v2557 = vld [vmem:[%s2551 + $0x14] sm:$0xf]
    %v2558 = vld [vmem:[%s2551 + $0x18] sm:$0xf]
    %v2559 = vld [vmem:[%s2551 + $0x1c] sm:$0xf]
    %v2560 = vld [vmem:[%s2551 + $0x20] sm:$0xf]
    %v2561 = vld [vmem:[%s2551 + $0x24] sm:$0xf]
    %v2562 = vld [vmem:[%s2551 + $0x28] sm:$0xf]
    %v2563 = vld [vmem:[%s2551 + $0x2c] sm:$0xf]
    %v2564 = vld [vmem:[%s2551 + $0x30] sm:$0xf]
    %v2565 = vld [vmem:[%s2551 + $0x34] sm:$0xf]
    %v2566 = vld [vmem:[%s2551 + $0x38] sm:$0xf]
    %v2567 = vld [vmem:[%s2551 + $0x3c] sm:$0xf]
    %s2568 = scalar_lea.vmem %s7, 4
    %v2569 = vld [vmem:[%s2568] sm:$0x1]
    %v2571 = vlaneseq
    %v2572 = vshrl.u32 %v2571, 7
    %v2573 = vsub.s32 0, %v2572
    %v2574 = vrot.slane %v2569, %v2573
    %v2592 = vunpack.c.l.b16 %v2552
    %v2593 = vunpack.c.l.b16 %v2553
    %v2594 = vunpack.c.l.b16 %v2554
    %v2595 = vunpack.c.l.b16 %v2555
    %v2596 = vunpack.c.l.b16 %v2556
    %v2597 = vunpack.c.l.b16 %v2557
    %v2598 = vunpack.c.l.b16 %v2558
    %v2599 = vunpack.c.l.b16 %v2559
    %v2600 = vunpack.c.l.b16 %v2560
    %v2601 = vunpack.c.l.b16 %v2561
    %v2602 = vunpack.c.l.b16 %v2562
    %v2603 = vunpack.c.l.b16 %v2563
    %v2604 = vunpack.c.l.b16 %v2564
    %v2605 = vunpack.c.l.b16 %v2565
    %v2606 = vunpack.c.l.b16 %v2566
    %v2607 = vunpack.c.l.b16 %v2567
    %v2608 = vpack.c.b16 %v2593, %v2592
    %v2609 = vpack.c.b16 %v2595, %v2594
    %v2610 = vpack.c.b16 %v2597, %v2596
    %v2611 = vpack.c.b16 %v2599, %v2598
    %v2612 = vpack.c.b16 %v2601, %v2600
    %v2613 = vpack.c.b16 %v2603, %v2602
    %v2614 = vpack.c.b16 %v2605, %v2604
    %v2615 = vpack.c.b16 %v2607, %v2606
    %2624 = vmatprep.subr.bf16.mxu0 0
    %2625 = vmatpush1.bf16.msra.mxu0 %v2615
    %2626 = vmatprep.subr.bf16.mxu0 0
    %2627 = vmatpush1.bf16.msra.mxu0 %v2614
    %2628 = vmatprep.subr.bf16.mxu0 0
    %2629 = vmatpush1.bf16.msra.mxu0 %v2613
    %2630 = vmatprep.subr.bf16.mxu0 0
    %2631 = vmatpush1.bf16.msra.mxu0 %v2612
    %2632 = vmatprep.subr.bf16.mxu0 0
    %2633 = vmatpush1.bf16.msra.mxu0 %v2611
    %2634 = vmatprep.subr.bf16.mxu0 0
    %2635 = vmatpush1.bf16.msra.mxu0 %v2610
    %2636 = vmatprep.subr.bf16.mxu0 0
    %2637 = vmatpush1.bf16.msra.mxu0 %v2609
    %2638 = vmatprep.subr.bf16.mxu0 0
    %2639 = vmatpush1.bf16.msra.mxu0 %v2608
    %2640 = vmatprep.subr.bf16.mxu0 0
    %2641 = vmatpush2.bf16.msra.mxu0 0
    %2642 = vmatprep.subr.bf16.mxu0 0
    %2643 = vmatpush2.bf16.msra.mxu0 0
    %2644 = vmatprep.subr.bf16.mxu0 0
    %2645 = vmatpush2.bf16.msra.mxu0 0
    %2646 = vmatprep.subr.bf16.mxu0 0
    %2647 = vmatpush2.bf16.msra.mxu0 0
    %2648 = vmatprep.subr.bf16.mxu0 0
    %2649 = vmatpush2.bf16.msra.mxu0 0
    %2650 = vmatprep.subr.bf16.mxu0 0
    %2651 = vmatpush2.bf16.msra.mxu0 0
    %2652 = vmatprep.subr.bf16.mxu0 0
    %2653 = vmatpush2.bf16.msra.mxu0 0
    %2654 = vmatprep.subr.bf16.mxu0 0
    %2655 = vmatpush2.bf16.msra.mxu0 0
    %2656 = vmatprep.mubr.bf16.mxu0 0
    %2657 = vmatmul.mubr.bf16.gmra.mxu0 %v2288
    %v2658 = vpop.f32.mrf.mxu0
    %v2659 = vadd.f32 %v2574, %v2658
    %v2660 = vpop.f32.mrf.mxu0
    %v2661 = vpop.f32.mrf.mxu0
    %v2662 = vpop.f32.mrf.mxu0
    %2663 = vdwg.mxu0
    %s2664 = scalar_lea.vmem [#allocation9], 256
    %v2665 = vld [vmem:[%s2664] sm:$0xf]
    %v2666 = vld [vmem:[%s2664 + $0x4] sm:$0xf]
    %v2667 = vld [vmem:[%s2664 + $0x8] sm:$0xf]
    %v2668 = vld [vmem:[%s2664 + $0xc] sm:$0xf]
    %v2669 = vld [vmem:[%s2664 + $0x10] sm:$0xf]
    %v2670 = vld [vmem:[%s2664 + $0x14] sm:$0xf]
    %v2671 = vld [vmem:[%s2664 + $0x18] sm:$0xf]
    %v2672 = vld [vmem:[%s2664 + $0x1c] sm:$0xf]
    %v2673 = vld [vmem:[%s2664 + $0x20] sm:$0xf]
    %v2674 = vld [vmem:[%s2664 + $0x24] sm:$0xf]
    %v2675 = vld [vmem:[%s2664 + $0x28] sm:$0xf]
    %v2676 = vld [vmem:[%s2664 + $0x2c] sm:$0xf]
    %v2677 = vld [vmem:[%s2664 + $0x30] sm:$0xf]
    %v2678 = vld [vmem:[%s2664 + $0x34] sm:$0xf]
    %v2679 = vld [vmem:[%s2664 + $0x38] sm:$0xf]
    %v2680 = vld [vmem:[%s2664 + $0x3c] sm:$0xf]
    %s2681 = scalar_lea.vmem %s8, 4
    %v2682 = vld [vmem:[%s2681] sm:$0x1]
    %v2684 = vlaneseq
    %v2685 = vshrl.u32 %v2684, 7
    %v2686 = vsub.s32 0, %v2685
    %v2687 = vrot.slane %v2682, %v2686
    %v2705 = vunpack.c.l.b16 %v2665
    %v2706 = vunpack.c.l.b16 %v2666
    %v2707 = vunpack.c.l.b16 %v2667
    %v2708 = vunpack.c.l.b16 %v2668
    %v2709 = vunpack.c.l.b16 %v2669
    %v2710 = vunpack.c.l.b16 %v2670
    %v2711 = vunpack.c.l.b16 %v2671
    %v2712 = vunpack.c.l.b16 %v2672
    %v2713 = vunpack.c.l.b16 %v2673
    %v2714 = vunpack.c.l.b16 %v2674
    %v2715 = vunpack.c.l.b16 %v2675
    %v2716 = vunpack.c.l.b16 %v2676
    %v2717 = vunpack.c.l.b16 %v2677
    %v2718 = vunpack.c.l.b16 %v2678
    %v2719 = vunpack.c.l.b16 %v2679
    %v2720 = vunpack.c.l.b16 %v2680
    %v2721 = vpack.c.b16 %v2706, %v2705
    %v2722 = vpack.c.b16 %v2708, %v2707
    %v2723 = vpack.c.b16 %v2710, %v2709
    %v2724 = vpack.c.b16 %v2712, %v2711
    %v2725 = vpack.c.b16 %v2714, %v2713
    %v2726 = vpack.c.b16 %v2716, %v2715
    %v2727 = vpack.c.b16 %v2718, %v2717
    %v2728 = vpack.c.b16 %v2720, %v2719
    %2737 = vmatprep.subr.bf16.mxu0 0
    %2738 = vmatpush1.bf16.msra.mxu0 %v2728
    %2739 = vmatprep.subr.bf16.mxu0 0
    %2740 = vmatpush1.bf16.msra.mxu0 %v2727
    %2741 = vmatprep.subr.bf16.mxu0 0
    %2742 = vmatpush1.bf16.msra.mxu0 %v2726
    %2743 = vmatprep.subr.bf16.mxu0 0
    %2744 = vmatpush1.bf16.msra.mxu0 %v2725
    %2745 = vmatprep.subr.bf16.mxu0 0
    %2746 = vmatpush1.bf16.msra.mxu0 %v2724
    %2747 = vmatprep.subr.bf16.mxu0 0
    %2748 = vmatpush1.bf16.msra.mxu0 %v2723
    %2749 = vmatprep.subr.bf16.mxu0 0
    %2750 = vmatpush1.bf16.msra.mxu0 %v2722
    %2751 = vmatprep.subr.bf16.mxu0 0
    %2752 = vmatpush1.bf16.msra.mxu0 %v2721
    %2753 = vmatprep.subr.bf16.mxu0 0
    %2754 = vmatpush2.bf16.msra.mxu0 0
    %2755 = vmatprep.subr.bf16.mxu0 0
    %2756 = vmatpush2.bf16.msra.mxu0 0
    %2757 = vmatprep.subr.bf16.mxu0 0
    %2758 = vmatpush2.bf16.msra.mxu0 0
    %2759 = vmatprep.subr.bf16.mxu0 0
    %2760 = vmatpush2.bf16.msra.mxu0 0
    %2761 = vmatprep.subr.bf16.mxu0 0
    %2762 = vmatpush2.bf16.msra.mxu0 0
    %2763 = vmatprep.subr.bf16.mxu0 0
    %2764 = vmatpush2.bf16.msra.mxu0 0
    %2765 = vmatprep.subr.bf16.mxu0 0
    %2766 = vmatpush2.bf16.msra.mxu0 0
    %2767 = vmatprep.subr.bf16.mxu0 0
    %2768 = vmatpush2.bf16.msra.mxu0 0
    %2769 = vmatprep.mubr.bf16.mxu0 0
    %2770 = vmatmul.mubr.bf16.gmra.mxu0 %v2291
    %v2771 = vpop.f32.mrf.mxu0
    %v2772 = vadd.f32 %v2687, %v2771
    %v2773 = vpop.f32.mrf.mxu0
    %v2774 = vpop.f32.mrf.mxu0
    %v2775 = vpop.f32.mrf.mxu0
    %2776 = vdwg.mxu0
    %v2777 = vmul.f32 %v2544, %v2772
    %v2778 = vadd.f32 %v2659, %v2777
    %v2779 = vtanh.pop %v2778
    %v2780 = vsub.f32 1.0, %v2550
    %v2781 = vmul.f32 %v2780, %v2779
    %v2782 = vmul.f32 %v2550, %v2290
    %v2783 = vadd.f32 %v2781, %v2782
    %2784 = vst [vmem:[%s2289] sm:$0xff] %v2783
    %v2785 = vpack.c.bf16 %v2783, %v2783
    %v2786 = vld [vmem:[#allocation11] sm:$0xff]
    %v2787 = vld [vmem:[#allocation11 + $0x8] sm:$0xff]
    %v2788 = vld [vmem:[#allocation11 + $0x10] sm:$0xff]
    %v2789 = vld [vmem:[#allocation11 + $0x18] sm:$0xff]
    %v2790 = vld [vmem:[#allocation11 + $0x20] sm:$0xff]
    %v2791 = vld [vmem:[#allocation11 + $0x28] sm:$0xff]
    %v2792 = vld [vmem:[#allocation11 + $0x30] sm:$0xff]
    %v2793 = vld [vmem:[#allocation11 + $0x38] sm:$0xff]
    %v2794 = vld [vmem:[#allocation11 + $0x40] sm:$0xff]
    %v2795 = vld [vmem:[#allocation11 + $0x48] sm:$0xff]
    %v2796 = vld [vmem:[#allocation11 + $0x50] sm:$0xff]
    %v2797 = vld [vmem:[#allocation11 + $0x58] sm:$0xff]
    %v2798 = vld [vmem:[#allocation11 + $0x60] sm:$0xff]
    %v2799 = vld [vmem:[#allocation11 + $0x68] sm:$0xff]
    %v2800 = vld [vmem:[#allocation11 + $0x70] sm:$0xff]
    %v2801 = vld [vmem:[#allocation11 + $0x78] sm:$0xff]
    %v2802 = vld [vmem:[%s10] sm:$0x3]
    %v2804 = vlaneseq
    %v2805 = vshrl.u32 %v2804, 7
    %v2806 = vsub.s32 0, %v2805
    %v2807 = vrot.slane %v2802, %v2806
    %v2808 = vlaneseq
    %v2809 = vshrl.u32 %v2808, 7
    %v2810 = vsub.s32 1, %v2809
    %v2811 = vrot.slane %v2802, %v2810
    %v2830 = vunpack.c.l.b16 %v2786
    %v2831 = vunpack.c.h.b16 %v2786
    %v2832 = vunpack.c.l.b16 %v2787
    %v2833 = vunpack.c.h.b16 %v2787
    %v2834 = vunpack.c.l.b16 %v2788
    %v2835 = vunpack.c.h.b16 %v2788
    %v2836 = vunpack.c.l.b16 %v2789
    %v2837 = vunpack.c.h.b16 %v2789
    %v2838 = vunpack.c.l.b16 %v2790
    %v2839 = vunpack.c.h.b16 %v2790
    %v2840 = vunpack.c.l.b16 %v2791
    %v2841 = vunpack.c.h.b16 %v2791
    %v2842 = vunpack.c.l.b16 %v2792
    %v2843 = vunpack.c.h.b16 %v2792
    %v2844 = vunpack.c.l.b16 %v2793
    %v2845 = vunpack.c.h.b16 %v2793
    %v2846 = vunpack.c.l.b16 %v2794
    %v2847 = vunpack.c.h.b16 %v2794
    %v2848 = vunpack.c.l.b16 %v2795
    %v2849 = vunpack.c.h.b16 %v2795
    %v2850 = vunpack.c.l.b16 %v2796
    %v2851 = vunpack.c.h.b16 %v2796
    %v2852 = vunpack.c.l.b16 %v2797
    %v2853 = vunpack.c.h.b16 %v2797
    %v2854 = vunpack.c.l.b16 %v2798
    %v2855 = vunpack.c.h.b16 %v2798
    %v2856 = vunpack.c.l.b16 %v2799
    %v2857 = vunpack.c.h.b16 %v2799
    %v2858 = vunpack.c.l.b16 %v2800
    %v2859 = vunpack.c.h.b16 %v2800
    %v2860 = vunpack.c.l.b16 %v2801
    %v2861 = vunpack.c.h.b16 %v2801
    %v2862 = vpack.c.b16 %v2832, %v2830
    %v2863 = vpack.c.b16 %v2833, %v2831
    %v2864 = vpack.c.b16 %v2836, %v2834
    %v2865 = vpack.c.b16 %v2837, %v2835
    %v2866 = vpack.c.b16 %v2840, %v2838
    %v2867 = vpack.c.b16 %v2841, %v2839
    %v2868 = vpack.c.b16 %v2844, %v2842
    %v2869 = vpack.c.b16 %v2845, %v2843
    %v2870 = vpack.c.b16 %v2848, %v2846
    %v2871 = vpack.c.b16 %v2849, %v2847
    %v2872 = vpack.c.b16 %v2852, %v2850
    %v2873 = vpack.c.b16 %v2853, %v2851
    %v2874 = vpack.c.b16 %v2856, %v2854
    %v2875 = vpack.c.b16 %v2857, %v2855
    %v2876 = vpack.c.b16 %v2860, %v2858
    %v2877 = vpack.c.b16 %v2861, %v2859
    %2894 = vmatprep.subr.bf16.mxu0 %v2877
    %2895 = vmatpush1.bf16.msra.mxu0 %v2876
    %2896 = vmatprep.subr.bf16.mxu0 %v2875
    %2897 = vmatpush1.bf16.msra.mxu0 %v2874
    %2898 = vmatprep.subr.bf16.mxu0 %v2873
    %2899 = vmatpush1.bf16.msra.mxu0 %v2872
    %2900 = vmatprep.subr.bf16.mxu0 %v2871
    %2901 = vmatpush1.bf16.msra.mxu0 %v2870
    %2902 = vmatprep.subr.bf16.mxu0 %v2869
    %2903 = vmatpush1.bf16.msra.mxu0 %v2868
    %2904 = vmatprep.subr.bf16.mxu0 %v2867
    %2905 = vmatpush1.bf16.msra.mxu0 %v2866
    %2906 = vmatprep.subr.bf16.mxu0 %v2865
    %2907 = vmatpush1.bf16.msra.mxu0 %v2864
    %2908 = vmatprep.subr.bf16.mxu0 %v2863
    %2909 = vmatpush1.bf16.msra.mxu0 %v2862
    %2910 = vmatprep.subr.bf16.mxu0 0
    %2911 = vmatpush2.bf16.msra.mxu0 0
    %2912 = vmatprep.subr.bf16.mxu0 0
    %2913 = vmatpush2.bf16.msra.mxu0 0
    %2914 = vmatprep.subr.bf16.mxu0 0
    %2915 = vmatpush2.bf16.msra.mxu0 0
    %2916 = vmatprep.subr.bf16.mxu0 0
    %2917 = vmatpush2.bf16.msra.mxu0 0
    %2918 = vmatprep.subr.bf16.mxu0 0
    %2919 = vmatpush2.bf16.msra.mxu0 0
    %2920 = vmatprep.subr.bf16.mxu0 0
    %2921 = vmatpush2.bf16.msra.mxu0 0
    %2922 = vmatprep.subr.bf16.mxu0 0
    %2923 = vmatpush2.bf16.msra.mxu0 0
    %2924 = vmatprep.subr.bf16.mxu0 0
    %2925 = vmatpush2.bf16.msra.mxu0 0
    %2926 = vmatprep.mubr.bf16.mxu0 0
    %2927 = vmatmul.mubr.bf16.gmra.mxu0 %v2785
    %v2928 = vpop.f32.mrf.mxu0
    %v2929 = vadd.f32 %v2807, %v2928
    %v2930 = vpop.f32.mrf.mxu0
    %v2931 = vadd.f32 %v2811, %v2930
    %v2932 = vpop.f32.mrf.mxu0
    %v2933 = vpop.f32.mrf.mxu0
    %2934 = vdwg.mxu0
    %2935 = vst [vmem:[#allocation12] sm:$0xff] %v2929
    %2936 = vst [vmem:[#allocation12 + $0x8] sm:$0xff] %v2931
    // Predicated region
    $region70: #{decoder_step.1} parent=1 // pred_check
      %p2937 = pneg %p110
    $region71: #{decoder_step.1} parent=1 // pred_check_branch
      %2939 = sbr.rel (%p2937) target = $region73
    $region72: #{decoder_step.1} parent=1 // pred_region
      %v2940 = vld [vmem:[#allocation2] sm:$0xff]
      %v2941 = vld [vmem:[#allocation2 + $0x8] sm:$0xff]
      %v2942 = vld [vmem:[#allocation2 + $0x10] sm:$0xff]
      %v2943 = vld [vmem:[#allocation2 + $0x18] sm:$0xff]
      %v2944 = vld [vmem:[#allocation2 + $0x20] sm:$0xff]
      %2945 = vst [vmem:[%s12] sm:$0xff] %v2940
      %2946 = vst [vmem:[%s12 + $0x8] sm:$0xff] %v2941
      %2947 = vst [vmem:[%s12 + $0x10] sm:$0xff] %v2942
      %2948 = vst [vmem:[%s12 + $0x18] sm:$0xff] %v2943
      %2949 = vst [vmem:[%s12 + $0x20] sm:$0xff] %v2944
    $region73: #{decoder_step.1} parent=1 // pred_fallthru
      _
    // Predicated region
    $region74: #{decoder_step.1} parent=1 // pred_check
      _
    $region75: #{decoder_step.1} parent=1 // pred_check_branch
      %2951 = sbr.rel (0) target = $region77
    $region76: #{decoder_step.1} parent=1 // pred_region
      %s2953 = ssub.s32 256, 256
      %2954 = vsyncadd [#allocation5], %s2953
      %s2956 = sshll.u32 [#allocation12], 4
      %s2957 = int_to_ptr.vmem [resolvable:$true] %s2956
      %2959 = dma.vmem_to_hbm [thread:$0]  %s2957, 256, %s11, [#allocation5]
    $region77: #{decoder_step.1} parent=1 // pred_fallthru
      _
    // Predicated region
    $region78: #{decoder_step.1} parent=1 // pred_check
      _
    $region79: #{decoder_step.1} parent=1 // pred_check_branch
      %2961 = sbr.rel (0) target = $region81
    $region80: #{decoder_step.1} parent=1 // pred_region
      _
    $region81: #{decoder_step.1} parent=1 // pred_fallthru
      _
    // Predicated region
    $region82: #{decoder_step.1} parent=1 // pred_check
      _
    $region83: #{decoder_step.1} parent=1 // pred_check_branch
      %2963 = sbr.rel (0) target = $region85
    $region84: #{decoder_step.1} parent=1 // pred_region
      %2964 = dma.done [#allocation5], 256
    $region85: #{decoder_step.1} parent=1 // pred_fallthru
      _
    // Predicated region
    $region86: #{decoder_step.1} parent=1 // pred_check
      _
    $region87: #{decoder_step.1} parent=1 // pred_check_branch
      %2966 = sbr.rel (0) target = $region89
    $region88: #{decoder_step.1} parent=1 // pred_region
      _
    $region89: #{decoder_step.1} parent=1 // pred_fallthru
      _
    %2967 = vsyncpa [#allocation4], 1
    %2968 = vsyncpa [#allocation7], 1
    %2969 = vsyncpa [#allocation10], 1
    %2970 = vsyncpa [#allocation5], 1

</llo_original>
